<compile_context>
chip_gen: v7x
topology: tpu7x:2x2x1
jax: 0.10.0
libtpu: 0.0.40
codegen_flags: <defaults>
</compile_context>

<pallas_src>
import functools

import jax
import jax.numpy as jnp
from jax import lax
from jax.experimental import pallas as pl
from jax.experimental.pallas import tpu as pltpu


def _round_up(x: int, m: int) -> int:
    return ((x + m - 1) // m) * m


def _choose_batch_blocks(B: int, max_block_b: int):
    """Balanced batch blocks; >=2 (even) blocks when B >= 16 (v7x dual TC)."""
    nb = max(1, -(-B // max_block_b))
    if B >= 16:
        nb = max(nb, 2)
        if nb % 2:
            nb += 1
    block_b = _round_up(-(-B // nb), 8)     # padding waste bounded by 8*nb rows
    return block_b, nb


def prepare_pnode_params(w1, b1, w2, b2, *, use_bf16_matmul: bool = True):
    """Pad/fold/cast the call-invariant vector-field parameters once.

    w1: (D, H), b1: (1, H), w2: (H, D), b2: (1, D).
    Biases are folded into the zero-padded contraction rows of the weights
    (row D of W1, row H of W2) whenever such a row exists.
    """
    D, H = w1.shape
    Dp, Hp = _round_up(D, 128), _round_up(H, 128)
    fold_b1 = D < Dp
    fold_b2 = H < Hp
    f32 = jnp.float32

    w1_p = jnp.zeros((Dp, Hp), f32).at[:D, :H].set(w1.astype(f32))
    if fold_b1:
        w1_p = w1_p.at[D, :H].set(b1.astype(f32).reshape(H))
    w2_p = jnp.zeros((Hp, Dp), f32).at[:H, :D].set(w2.astype(f32))
    if fold_b2:
        w2_p = w2_p.at[H, :D].set(b2.astype(f32).reshape(D))

    mm_dtype = jnp.bfloat16 if use_bf16_matmul else f32
    w1_p = w1_p.astype(mm_dtype)
    w2_p = w2_p.astype(mm_dtype)

    # Kept (tiny) for the fallback path when folding is impossible.
    b1_p = jnp.zeros((1, Hp), f32).at[:, :H].set(b1.astype(f32).reshape(1, H))
    b2_p = jnp.zeros((1, Dp), f32).at[:, :D].set(b2.astype(f32).reshape(1, D))

    return dict(w1=w1_p, b1=b1_p, w2=w2_p, b2=b2_p,
                D=D, H=H, Dp=Dp, Hp=Hp, fold_b1=fold_b1, fold_b2=fold_b2)


def _pnode_kernel(scalar_ref, h_ref, w1_ref, b1_ref, w2_ref, b2_ref, out_ref, *,
                  num_steps: int, unroll, d_real: int, h_real: int,
                  fold_b1: bool, fold_b2: bool):
    h_raw = h_ref[...].astype(jnp.float32)        # (block_b, Dp)
    w1 = w1_ref[...]                              # (Dp, Hp) f32 or bf16
    w2 = w2_ref[...]                              # (Hp, Dp)
    mm_dtype = w1.dtype

    block_b, dp = h_raw.shape
    hp = w1.shape[1]
    one = jnp.float32(1.0)

    # Runtime scalars from SMEM (no recompile when prob changes).
    t0 = scalar_ref[0]
    t1 = scalar_ref[1]
    prob = scalar_ref[2]

    dt = (t1 - t0) / jnp.float32(num_steps)
    half_dt = 0.5 * dt
    dt_3 = dt / 3.0
    dt_6 = dt / 6.0

    # --- bias handling (hoisted once) -------------------------------------
    if fold_b1:
        # Persistent bias lane: column d_real of the state is set to 1 once and
        # stays exactly 1 (W2_p output column d_real is all-zero, so every
        # vf() contributes 0 there and the RK4 update adds 0).
        lane_d = lax.broadcasted_iota(jnp.int32, (block_b, dp), 1)
        y0 = jnp.where(lane_d == d_real, one, h_raw)
        b1_bc = None
    else:
        y0 = h_raw
        b1_bc = pl.broadcast_to(b1_ref[...].astype(jnp.float32), (block_b, hp))

    if fold_b2:
        lane_h = lax.broadcasted_iota(jnp.int32, (block_b, hp), 1)
        ones_h = lane_h == h_real
        b2_bc = None
    else:
        ones_h = None
        b2_bc = pl.broadcast_to(b2_ref[...].astype(jnp.float32), (block_b, dp))

    # --- vector field ------------------------------------------------------
    def vf(y):
        s = jnp.dot(y.astype(mm_dtype), w1, preferred_element_type=jnp.float32)
        if not fold_b1:
            s = s + b1_bc
        z = jnp.tanh(s)
        if fold_b2:
            # Refresh the "1" bias lane before every 2nd matmul (z is fresh).
            z = jnp.where(ones_h, one, z)
            return jnp.dot(z.astype(mm_dtype), w2,
                           preferred_element_type=jnp.float32)
        return jnp.dot(z.astype(mm_dtype), w2,
                       preferred_element_type=jnp.float32) + b2_bc

    # --- RK4 with in-place accumulation (live: y, acc, k) -------------------
    def rk4_step(_, y):
        k = vf(y)                       # k1
        acc = y + dt_6 * k
        k = vf(y + half_dt * k)         # k2
        acc = acc + dt_3 * k
        k = vf(y + half_dt * k)         # k3
        acc = acc + dt_3 * k
        k = vf(y + dt * k)              # k4
        return acc + dt_6 * k

    y_final = lax.fori_loop(0, num_steps, rk4_step, y0, unroll=unroll)

    # Poisson-probability blend of identity path and ODE path (last time point).
    out_ref[...] = ((one - prob) * h_raw + prob * y_final).astype(out_ref.dtype)


def poisson_prob_node_forward(h, t_span, params, *, num_steps: int, prob: float,
                              max_block_b: int = 512, vmem_limit_bytes=None):
    """Eval-mode forward of PoissonProbNODE with return_only_last_h_in_ode=True.

    h: (B, D) state, t_span: (2,); `params` from prepare_pnode_params().
    NOTE: if D/H grow to >=1024, cap max_block_b at 256 on v7x (64 MiB VMEM)
    and/or set vmem_limit_bytes explicitly.
    """
    B, D = h.shape
    assert D == params["D"], "h feature dim must match prepared params"
    Dp, Hp, H = params["Dp"], params["Hp"], params["H"]

    block_b, num_blocks = _choose_batch_blocks(B, max_block_b)
    Bp = block_b * num_blocks

    f32 = jnp.float32
    h_p = jnp.zeros((Bp, Dp), f32).at[:B, :D].set(h.astype(f32))

    # Runtime scalars: [t0, t1, prob]  (prob varies with num_forwards -> SMEM).
    scalars = jnp.stack([t_span[0].astype(f32), t_span[1].astype(f32),
                         jnp.float32(prob)])

    # Full unroll for short chains; partial unroll bounds code size / spills.
    unroll = True if num_steps <= 8 else 4

    kernel = functools.partial(
        _pnode_kernel, num_steps=num_steps, unroll=unroll,
        d_real=D, h_real=H,
        fold_b1=params["fold_b1"], fold_b2=params["fold_b2"])

    cost = pl.CostEstimate(
        flops=int(num_steps * 16 * Bp * Dp * Hp),
        transcendentals=int(num_steps * 4 * Bp * Hp),
        bytes_accessed=int(h_p.nbytes + params["w1"].nbytes + params["w2"].nbytes
                           + params["b1"].nbytes + params["b2"].nbytes
                           + Bp * Dp * 4),
    )

    out_dtype = h.dtype
    # Alias padded h -> padded output when dtypes match (h fully read first).
    aliases = {1: 0} if out_dtype == jnp.float32 else {}

    out_padded = pl.pallas_call(
        kernel,
        out_shape=jax.ShapeDtypeStruct((Bp, Dp), out_dtype),
        grid_spec=pltpu.PrefetchScalarGridSpec(
            num_scalar_prefetch=0,
            grid=(num_blocks,),
            in_specs=[
                pl.BlockSpec(memory_space=pltpu.MemorySpace.SMEM),   # scalars (3,)
                pl.BlockSpec((block_b, Dp), lambda i: (i, 0)),       # h
                pl.BlockSpec((Dp, Hp), lambda i: (0, 0)),            # W1 resident
                pl.BlockSpec((1, Hp), lambda i: (0, 0)),             # b1 resident
                pl.BlockSpec((Hp, Dp), lambda i: (0, 0)),            # W2 resident
                pl.BlockSpec((1, Dp), lambda i: (0, 0)),             # b2 resident
            ],
            out_specs=pl.BlockSpec((block_b, Dp), lambda i: (i, 0)),
        ),
        compiler_params=pltpu.CompilerParams(
            dimension_semantics=("parallel",),
            vmem_limit_bytes=vmem_limit_bytes),
        cost_estimate=cost,
        input_output_aliases=aliases,
    )(scalars, h_p, params["w1"], params["b1"], params["w2"], params["b2"])

    return out_padded[:B, :D]


# ----------------------------- reference ------------------------------------
def _reference_forward(h, t_span, w1, b1, w2, b2, *, num_steps, prob,
                       mm_dtype=jnp.float32):
    f32 = jnp.float32
    w1m = w1.astype(mm_dtype)
    w2m = w2.astype(mm_dtype)
    # Mirror the kernel's folded-bias quantization for the bf16 path.
    b1f = b1.astype(mm_dtype).astype(f32)
    b2f = b2.astype(mm_dtype).astype(f32)

    def vf(y):
        z = jnp.tanh(jnp.dot(y.astype(mm_dtype), w1m,
                             preferred_element_type=f32) + b1f)
        return jnp.dot(z.astype(mm_dtype), w2m,
                       preferred_element_type=f32) + b2f

    h0 = h.astype(f32)
    dt = (t_span[1] - t_span[0]).astype(f32) / num_steps
    y = h0
    for _ in range(num_steps):
        k1 = vf(y)
        k2 = vf(y + 0.5 * dt * k1)
        k3 = vf(y + 0.5 * dt * k2)
        k4 = vf(y + dt * k3)
        y = y + (dt / 6.0) * (k1 + 2.0 * k2 + 2.0 * k3 + k4)
    return ((1.0 - prob) * h0 + prob * y).astype(h.dtype)


if __name__ == "__main__":
    B, D, H = 8, 32, 64          # batch, feature dim, vector-field hidden dim
    NUM_STEPS = 8                # fixed RK4 steps over t_span
    NUM_FORWARDS = 3             # module state -> prob = 1 / (num_forwards + 1)
    PROB = 1.0 / (NUM_FORWARDS + 1)

    key = jax.random.PRNGKey(0)
    k_h, k_w1, k_b1, k_w2, k_b2 = jax.random.split(key, 5)

    h = jax.random.normal(k_h, (B, D), dtype=jnp.float32)
    t_span = jnp.array([0.0, 1.0], dtype=jnp.float32)

    w1 = jax.random.normal(k_w1, (D, H), dtype=jnp.float32) / jnp.sqrt(D)
    b1 = jax.random.normal(k_b1, (1, H), dtype=jnp.float32) * 0.01
    w2 = jax.random.normal(k_w2, (H, D), dtype=jnp.float32) / jnp.sqrt(H)
    b2 = jax.random.normal(k_b2, (1, D), dtype=jnp.float32) * 0.01

    # 1) f32 matmul path: strict check against the f32 reference.
    params_f32 = prepare_pnode_params(w1, b1, w2, b2, use_bf16_matmul=False)
    out_f32 = poisson_prob_node_forward(h, t_span, params_f32,
                                        num_steps=NUM_STEPS, prob=PROB)
    out_f32 = jax.block_until_ready(out_f32)
    ref_f32 = _reference_forward(h, t_span, w1, b1, w2, b2,
                                 num_steps=NUM_STEPS, prob=PROB,
                                 mm_dtype=jnp.float32)
    assert out_f32.shape == (B, D)
    assert jnp.allclose(out_f32, ref_f32, atol=1e-5, rtol=1e-4)

    # 2) bf16 matmul path (the new default): check against a matching bf16
    #    reference and against the exact f32 answer with a looser tolerance.
    params_bf16 = prepare_pnode_params(w1, b1, w2, b2)   # use_bf16_matmul=True
    out_bf16 = poisson_prob_node_forward(h, t_span, params_bf16,
                                         num_steps=NUM_STEPS, prob=PROB)
    out_bf16 = jax.block_until_ready(out_bf16)
    ref_bf16 = _reference_forward(h, t_span, w1, b1, w2, b2,
                                  num_steps=NUM_STEPS, prob=PROB,
                                  mm_dtype=jnp.bfloat16)
    assert out_bf16.shape == (B, D)
    assert jnp.allclose(out_bf16, ref_bf16, atol=1e-2, rtol=1e-2)
    assert jnp.allclose(out_bf16, ref_f32, atol=5e-2, rtol=5e-2)

    print("KERNEL_OK")
</pallas_src>

<mosaic_0001>
module attributes {stable_mosaic.version = 11 : i64} {
  func.func @_pnode_kernel(%arg0: i32, %arg1: memref<3xf32, #tpu.memory_space<smem>>, %arg2: memref<8x128xf32, #tpu.memory_space<vmem>>, %arg3: memref<128x128xf32, #tpu.memory_space<vmem>>, %arg4: memref<1x128xf32, #tpu.memory_space<vmem>>, %arg5: memref<128x128xf32, #tpu.memory_space<vmem>>, %arg6: memref<1x128xf32, #tpu.memory_space<vmem>>, %arg7: memref<8x128xf32, #tpu.memory_space<vmem>>) attributes {dimension_semantics = [#tpu.dimension_semantics<parallel>], iteration_bounds = array<i64: 1>, scalar_prefetch = 0 : i64, scratch_operands = 0 : i64, tpu.core_type = #tpu.core_type<tc>, window_params = [{transform_indices = @transform_0, window_bounds = array<i64: 3>}, {transform_indices = @transform_1, window_bounds = array<i64: 8, 128>}, {pipeline_mode = #tpu.pipeline_mode<synchronous>, transform_indices = @transform_2, window_bounds = array<i64: 128, 128>}, {pipeline_mode = #tpu.pipeline_mode<synchronous>, transform_indices = @transform_3, window_bounds = array<i64: 1, 128>}, {pipeline_mode = #tpu.pipeline_mode<synchronous>, transform_indices = @transform_4, window_bounds = array<i64: 128, 128>}, {pipeline_mode = #tpu.pipeline_mode<synchronous>, transform_indices = @transform_5, window_bounds = array<i64: 1, 128>}, {transform_indices = @transform_6, window_bounds = array<i64: 8, 128>}]} {
    %c0 = arith.constant 0 : index
    %c0_0 = arith.constant 0 : index
    %0 = vector.load %arg2[%c0, %c0_0] : memref<8x128xf32, #tpu.memory_space<vmem>>, vector<8x128xf32>
    %c0_1 = arith.constant 0 : index
    %c0_2 = arith.constant 0 : index
    %1 = vector.load %arg3[%c0_1, %c0_2] : memref<128x128xf32, #tpu.memory_space<vmem>>, vector<128x128xf32>
    %c0_3 = arith.constant 0 : index
    %c0_4 = arith.constant 0 : index
    %2 = vector.load %arg5[%c0_3, %c0_4] : memref<128x128xf32, #tpu.memory_space<vmem>>, vector<128x128xf32>
    %c0_5 = arith.constant 0 : index
    %3 = memref.load %arg1[%c0_5] : memref<3xf32, #tpu.memory_space<smem>>
    %c1 = arith.constant 1 : index
    %4 = memref.load %arg1[%c1] : memref<3xf32, #tpu.memory_space<smem>>
    %c2 = arith.constant 2 : index
    %5 = memref.load %arg1[%c2] : memref<3xf32, #tpu.memory_space<smem>>
    %6 = arith.subf %4, %3 : f32
    %cst = arith.constant 8.000000e+00 : f32
    %7 = arith.divf %6, %cst : f32
    %cst_6 = arith.constant 5.000000e-01 : f32
    %8 = arith.mulf %cst_6, %7 : f32
    %cst_7 = arith.constant 3.000000e+00 : f32
    %9 = arith.divf %7, %cst_7 : f32
    %cst_8 = arith.constant 6.000000e+00 : f32
    %10 = arith.divf %7, %cst_8 : f32
    %11 = tpu.iota {dimensions = array<i32: 1>} : vector<8x128xi32>
    %c32_i32 = arith.constant 32 : i32
    %12 = vector.broadcast %c32_i32 : i32 to vector<8x128xi32>
    %13 = arith.cmpi eq, %11, %12 : vector<8x128xi32>
    %cst_9 = arith.constant 1.000000e+00 : f32
    %14 = vector.broadcast %cst_9 : f32 to vector<8x128xf32>
    %15 = arith.select %13, %14, %0 : vector<8x128xi1>, vector<8x128xf32>
    %16 = tpu.iota {dimensions = array<i32: 1>} : vector<8x128xi32>
    %c64_i32 = arith.constant 64 : i32
    %17 = vector.broadcast %c64_i32 : i32 to vector<8x128xi32>
    %18 = arith.cmpi eq, %16, %17 : vector<8x128xi32>
    %cst_10 = arith.constant 1.000000e+00 : f32
    %c0_i32 = arith.constant 0 : i32
    %cst_11 = arith.constant dense<0.000000e+00> : vector<8x128xf32>
    %19 = tpu.matmul %15, %1, %cst_11 {dimension_numbers = #tpu.dot_dimension_numbers<[1], [0], [0], [1], [0, 0, 1, 1], [], []>} : vector<8x128xf32>, vector<128x128xf32>, vector<8x128xf32> -> vector<8x128xf32>
    %20 = math.tanh %19 : vector<8x128xf32>
    %21 = vector.broadcast %cst_10 : f32 to vector<8x128xf32>
    %22 = arith.select %18, %21, %20 : vector<8x128xi1>, vector<8x128xf32>
    %cst_12 = arith.constant dense<0.000000e+00> : vector<8x128xf32>
    %23 = tpu.matmul %22, %2, %cst_12 {dimension_numbers = #tpu.dot_dimension_numbers<[1], [0], [0], [1], [0, 0, 1, 1], [], []>} : vector<8x128xf32>, vector<128x128xf32>, vector<8x128xf32> -> vector<8x128xf32>
    %24 = vector.broadcast %10 : f32 to vector<8x128xf32>
    %25 = arith.mulf %24, %23 : vector<8x128xf32>
    %26 = arith.addf %15, %25 : vector<8x128xf32>
    %27 = vector.broadcast %8 : f32 to vector<8x128xf32>
    %28 = arith.mulf %27, %23 : vector<8x128xf32>
    %29 = arith.addf %15, %28 : vector<8x128xf32>
    %cst_13 = arith.constant dense<0.000000e+00> : vector<8x128xf32>
    %30 = tpu.matmul %29, %1, %cst_13 {dimension_numbers = #tpu.dot_dimension_numbers<[1], [0], [0], [1], [0, 0, 1, 1], [], []>} : vector<8x128xf32>, vector<128x128xf32>, vector<8x128xf32> -> vector<8x128xf32>
    %31 = math.tanh %30 : vector<8x128xf32>
    %32 = vector.broadcast %cst_10 : f32 to vector<8x128xf32>
    %33 = arith.select %18, %32, %31 : vector<8x128xi1>, vector<8x128xf32>
    %cst_14 = arith.constant dense<0.000000e+00> : vector<8x128xf32>
    %34 = tpu.matmul %33, %2, %cst_14 {dimension_numbers = #tpu.dot_dimension_numbers<[1], [0], [0], [1], [0, 0, 1, 1], [], []>} : vector<8x128xf32>, vector<128x128xf32>, vector<8x128xf32> -> vector<8x128xf32>
    %35 = vector.broadcast %9 : f32 to vector<8x128xf32>
    %36 = arith.mulf %35, %34 : vector<8x128xf32>
    %37 = arith.addf %26, %36 : vector<8x128xf32>
    %38 = vector.broadcast %8 : f32 to vector<8x128xf32>
    %39 = arith.mulf %38, %34 : vector<8x128xf32>
    %40 = arith.addf %15, %39 : vector<8x128xf32>
    %cst_15 = arith.constant dense<0.000000e+00> : vector<8x128xf32>
    %41 = tpu.matmul %40, %1, %cst_15 {dimension_numbers = #tpu.dot_dimension_numbers<[1], [0], [0], [1], [0, 0, 1, 1], [], []>} : vector<8x128xf32>, vector<128x128xf32>, vector<8x128xf32> -> vector<8x128xf32>
    %42 = math.tanh %41 : vector<8x128xf32>
    %43 = vector.broadcast %cst_10 : f32 to vector<8x128xf32>
    %44 = arith.select %18, %43, %42 : vector<8x128xi1>, vector<8x128xf32>
    %cst_16 = arith.constant dense<0.000000e+00> : vector<8x128xf32>
    %45 = tpu.matmul %44, %2, %cst_16 {dimension_numbers = #tpu.dot_dimension_numbers<[1], [0], [0], [1], [0, 0, 1, 1], [], []>} : vector<8x128xf32>, vector<128x128xf32>, vector<8x128xf32> -> vector<8x128xf32>
    %46 = vector.broadcast %9 : f32 to vector<8x128xf32>
    %47 = arith.mulf %46, %45 : vector<8x128xf32>
    %48 = arith.addf %37, %47 : vector<8x128xf32>
    %49 = vector.broadcast %7 : f32 to vector<8x128xf32>
    %50 = arith.mulf %49, %45 : vector<8x128xf32>
    %51 = arith.addf %15, %50 : vector<8x128xf32>
    %cst_17 = arith.constant dense<0.000000e+00> : vector<8x128xf32>
    %52 = tpu.matmul %51, %1, %cst_17 {dimension_numbers = #tpu.dot_dimension_numbers<[1], [0], [0], [1], [0, 0, 1, 1], [], []>} : vector<8x128xf32>, vector<128x128xf32>, vector<8x128xf32> -> vector<8x128xf32>
    %53 = math.tanh %52 : vector<8x128xf32>
    %54 = vector.broadcast %cst_10 : f32 to vector<8x128xf32>
    %55 = arith.select %18, %54, %53 : vector<8x128xi1>, vector<8x128xf32>
    %cst_18 = arith.constant dense<0.000000e+00> : vector<8x128xf32>
    %56 = tpu.matmul %55, %2, %cst_18 {dimension_numbers = #tpu.dot_dimension_numbers<[1], [0], [0], [1], [0, 0, 1, 1], [], []>} : vector<8x128xf32>, vector<128x128xf32>, vector<8x128xf32> -> vector<8x128xf32>
    %57 = vector.broadcast %10 : f32 to vector<8x128xf32>
    %58 = arith.mulf %57, %56 : vector<8x128xf32>
    %59 = arith.addf %48, %58 : vector<8x128xf32>
    %c1_i32 = arith.constant 1 : i32
    %cst_19 = arith.constant dense<0.000000e+00> : vector<8x128xf32>
    %60 = tpu.matmul %59, %1, %cst_19 {dimension_numbers = #tpu.dot_dimension_numbers<[1], [0], [0], [1], [0, 0, 1, 1], [], []>} : vector<8x128xf32>, vector<128x128xf32>, vector<8x128xf32> -> vector<8x128xf32>
    %61 = math.tanh %60 : vector<8x128xf32>
    %62 = vector.broadcast %cst_10 : f32 to vector<8x128xf32>
    %63 = arith.select %18, %62, %61 : vector<8x128xi1>, vector<8x128xf32>
    %cst_20 = arith.constant dense<0.000000e+00> : vector<8x128xf32>
    %64 = tpu.matmul %63, %2, %cst_20 {dimension_numbers = #tpu.dot_dimension_numbers<[1], [0], [0], [1], [0, 0, 1, 1], [], []>} : vector<8x128xf32>, vector<128x128xf32>, vector<8x128xf32> -> vector<8x128xf32>
    %65 = vector.broadcast %10 : f32 to vector<8x128xf32>
    %66 = arith.mulf %65, %64 : vector<8x128xf32>
    %67 = arith.addf %59, %66 : vector<8x128xf32>
    %68 = vector.broadcast %8 : f32 to vector<8x128xf32>
    %69 = arith.mulf %68, %64 : vector<8x128xf32>
    %70 = arith.addf %59, %69 : vector<8x128xf32>
    %cst_21 = arith.constant dense<0.000000e+00> : vector<8x128xf32>
    %71 = tpu.matmul %70, %1, %cst_21 {dimension_numbers = #tpu.dot_dimension_numbers<[1], [0], [0], [1], [0, 0, 1, 1], [], []>} : vector<8x128xf32>, vector<128x128xf32>, vector<8x128xf32> -> vector<8x128xf32>
    %72 = math.tanh %71 : vector<8x128xf32>
    %73 = vector.broadcast %cst_10 : f32 to vector<8x128xf32>
    %74 = arith.select %18, %73, %72 : vector<8x128xi1>, vector<8x128xf32>
    %cst_22 = arith.constant dense<0.000000e+00> : vector<8x128xf32>
    %75 = tpu.matmul %74, %2, %cst_22 {dimension_numbers = #tpu.dot_dimension_numbers<[1], [0], [0], [1], [0, 0, 1, 1], [], []>} : vector<8x128xf32>, vector<128x128xf32>, vector<8x128xf32> -> vector<8x128xf32>
    %76 = vector.broadcast %9 : f32 to vector<8x128xf32>
    %77 = arith.mulf %76, %75 : vector<8x128xf32>
    %78 = arith.addf %67, %77 : vector<8x128xf32>
    %79 = vector.broadcast %8 : f32 to vector<8x128xf32>
    %80 = arith.mulf %79, %75 : vector<8x128xf32>
    %81 = arith.addf %59, %80 : vector<8x128xf32>
    %cst_23 = arith.constant dense<0.000000e+00> : vector<8x128xf32>
    %82 = tpu.matmul %81, %1, %cst_23 {dimension_numbers = #tpu.dot_dimension_numbers<[1], [0], [0], [1], [0, 0, 1, 1], [], []>} : vector<8x128xf32>, vector<128x128xf32>, vector<8x128xf32> -> vector<8x128xf32>
    %83 = math.tanh %82 : vector<8x128xf32>
    %84 = vector.broadcast %cst_10 : f32 to vector<8x128xf32>
    %85 = arith.select %18, %84, %83 : vector<8x128xi1>, vector<8x128xf32>
    %cst_24 = arith.constant dense<0.000000e+00> : vector<8x128xf32>
    %86 = tpu.matmul %85, %2, %cst_24 {dimension_numbers = #tpu.dot_dimension_numbers<[1], [0], [0], [1], [0, 0, 1, 1], [], []>} : vector<8x128xf32>, vector<128x128xf32>, vector<8x128xf32> -> vector<8x128xf32>
    %87 = vector.broadcast %9 : f32 to vector<8x128xf32>
    %88 = arith.mulf %87, %86 : vector<8x128xf32>
    %89 = arith.addf %78, %88 : vector<8x128xf32>
    %90 = vector.broadcast %7 : f32 to vector<8x128xf32>
    %91 = arith.mulf %90, %86 : vector<8x128xf32>
    %92 = arith.addf %59, %91 : vector<8x128xf32>
    %cst_25 = arith.constant dense<0.000000e+00> : vector<8x128xf32>
    %93 = tpu.matmul %92, %1, %cst_25 {dimension_numbers = #tpu.dot_dimension_numbers<[1], [0], [0], [1], [0, 0, 1, 1], [], []>} : vector<8x128xf32>, vector<128x128xf32>, vector<8x128xf32> -> vector<8x128xf32>
    %94 = math.tanh %93 : vector<8x128xf32>
    %95 = vector.broadcast %cst_10 : f32 to vector<8x128xf32>
    %96 = arith.select %18, %95, %94 : vector<8x128xi1>, vector<8x128xf32>
    %cst_26 = arith.constant dense<0.000000e+00> : vector<8x128xf32>
    %97 = tpu.matmul %96, %2, %cst_26 {dimension_numbers = #tpu.dot_dimension_numbers<[1], [0], [0], [1], [0, 0, 1, 1], [], []>} : vector<8x128xf32>, vector<128x128xf32>, vector<8x128xf32> -> vector<8x128xf32>
    %98 = vector.broadcast %10 : f32 to vector<8x128xf32>
    %99 = arith.mulf %98, %97 : vector<8x128xf32>
    %100 = arith.addf %89, %99 : vector<8x128xf32>
    %c2_i32 = arith.constant 2 : i32
    %cst_27 = arith.constant dense<0.000000e+00> : vector<8x128xf32>
    %101 = tpu.matmul %100, %1, %cst_27 {dimension_numbers = #tpu.dot_dimension_numbers<[1], [0], [0], [1], [0, 0, 1, 1], [], []>} : vector<8x128xf32>, vector<128x128xf32>, vector<8x128xf32> -> vector<8x128xf32>
    %102 = math.tanh %101 : vector<8x128xf32>
    %103 = vector.broadcast %cst_10 : f32 to vector<8x128xf32>
    %104 = arith.select %18, %103, %102 : vector<8x128xi1>, vector<8x128xf32>
    %cst_28 = arith.constant dense<0.000000e+00> : vector<8x128xf32>
    %105 = tpu.matmul %104, %2, %cst_28 {dimension_numbers = #tpu.dot_dimension_numbers<[1], [0], [0], [1], [0, 0, 1, 1], [], []>} : vector<8x128xf32>, vector<128x128xf32>, vector<8x128xf32> -> vector<8x128xf32>
    %106 = vector.broadcast %10 : f32 to vector<8x128xf32>
    %107 = arith.mulf %106, %105 : vector<8x128xf32>
    %108 = arith.addf %100, %107 : vector<8x128xf32>
    %109 = vector.broadcast %8 : f32 to vector<8x128xf32>
    %110 = arith.mulf %109, %105 : vector<8x128xf32>
    %111 = arith.addf %100, %110 : vector<8x128xf32>
    %cst_29 = arith.constant dense<0.000000e+00> : vector<8x128xf32>
    %112 = tpu.matmul %111, %1, %cst_29 {dimension_numbers = #tpu.dot_dimension_numbers<[1], [0], [0], [1], [0, 0, 1, 1], [], []>} : vector<8x128xf32>, vector<128x128xf32>, vector<8x128xf32> -> vector<8x128xf32>
    %113 = math.tanh %112 : vector<8x128xf32>
    %114 = vector.broadcast %cst_10 : f32 to vector<8x128xf32>
    %115 = arith.select %18, %114, %113 : vector<8x128xi1>, vector<8x128xf32>
    %cst_30 = arith.constant dense<0.000000e+00> : vector<8x128xf32>
    %116 = tpu.matmul %115, %2, %cst_30 {dimension_numbers = #tpu.dot_dimension_numbers<[1], [0], [0], [1], [0, 0, 1, 1], [], []>} : vector<8x128xf32>, vector<128x128xf32>, vector<8x128xf32> -> vector<8x128xf32>
    %117 = vector.broadcast %9 : f32 to vector<8x128xf32>
    %118 = arith.mulf %117, %116 : vector<8x128xf32>
    %119 = arith.addf %108, %118 : vector<8x128xf32>
    %120 = vector.broadcast %8 : f32 to vector<8x128xf32>
    %121 = arith.mulf %120, %116 : vector<8x128xf32>
    %122 = arith.addf %100, %121 : vector<8x128xf32>
    %cst_31 = arith.constant dense<0.000000e+00> : vector<8x128xf32>
    %123 = tpu.matmul %122, %1, %cst_31 {dimension_numbers = #tpu.dot_dimension_numbers<[1], [0], [0], [1], [0, 0, 1, 1], [], []>} : vector<8x128xf32>, vector<128x128xf32>, vector<8x128xf32> -> vector<8x128xf32>
    %124 = math.tanh %123 : vector<8x128xf32>
    %125 = vector.broadcast %cst_10 : f32 to vector<8x128xf32>
    %126 = arith.select %18, %125, %124 : vector<8x128xi1>, vector<8x128xf32>
    %cst_32 = arith.constant dense<0.000000e+00> : vector<8x128xf32>
    %127 = tpu.matmul %126, %2, %cst_32 {dimension_numbers = #tpu.dot_dimension_numbers<[1], [0], [0], [1], [0, 0, 1, 1], [], []>} : vector<8x128xf32>, vector<128x128xf32>, vector<8x128xf32> -> vector<8x128xf32>
    %128 = vector.broadcast %9 : f32 to vector<8x128xf32>
    %129 = arith.mulf %128, %127 : vector<8x128xf32>
    %130 = arith.addf %119, %129 : vector<8x128xf32>
    %131 = vector.broadcast %7 : f32 to vector<8x128xf32>
    %132 = arith.mulf %131, %127 : vector<8x128xf32>
    %133 = arith.addf %100, %132 : vector<8x128xf32>
    %cst_33 = arith.constant dense<0.000000e+00> : vector<8x128xf32>
    %134 = tpu.matmul %133, %1, %cst_33 {dimension_numbers = #tpu.dot_dimension_numbers<[1], [0], [0], [1], [0, 0, 1, 1], [], []>} : vector<8x128xf32>, vector<128x128xf32>, vector<8x128xf32> -> vector<8x128xf32>
    %135 = math.tanh %134 : vector<8x128xf32>
    %136 = vector.broadcast %cst_10 : f32 to vector<8x128xf32>
    %137 = arith.select %18, %136, %135 : vector<8x128xi1>, vector<8x128xf32>
    %cst_34 = arith.constant dense<0.000000e+00> : vector<8x128xf32>
    %138 = tpu.matmul %137, %2, %cst_34 {dimension_numbers = #tpu.dot_dimension_numbers<[1], [0], [0], [1], [0, 0, 1, 1], [], []>} : vector<8x128xf32>, vector<128x128xf32>, vector<8x128xf32> -> vector<8x128xf32>
    %139 = vector.broadcast %10 : f32 to vector<8x128xf32>
    %140 = arith.mulf %139, %138 : vector<8x128xf32>
    %141 = arith.addf %130, %140 : vector<8x128xf32>
    %c3_i32 = arith.constant 3 : i32
    %cst_35 = arith.constant dense<0.000000e+00> : vector<8x128xf32>
    %142 = tpu.matmul %141, %1, %cst_35 {dimension_numbers = #tpu.dot_dimension_numbers<[1], [0], [0], [1], [0, 0, 1, 1], [], []>} : vector<8x128xf32>, vector<128x128xf32>, vector<8x128xf32> -> vector<8x128xf32>
    %143 = math.tanh %142 : vector<8x128xf32>
    %144 = vector.broadcast %cst_10 : f32 to vector<8x128xf32>
    %145 = arith.select %18, %144, %143 : vector<8x128xi1>, vector<8x128xf32>
    %cst_36 = arith.constant dense<0.000000e+00> : vector<8x128xf32>
    %146 = tpu.matmul %145, %2, %cst_36 {dimension_numbers = #tpu.dot_dimension_numbers<[1], [0], [0], [1], [0, 0, 1, 1], [], []>} : vector<8x128xf32>, vector<128x128xf32>, vector<8x128xf32> -> vector<8x128xf32>
    %147 = vector.broadcast %10 : f32 to vector<8x128xf32>
    %148 = arith.mulf %147, %146 : vector<8x128xf32>
    %149 = arith.addf %141, %148 : vector<8x128xf32>
    %150 = vector.broadcast %8 : f32 to vector<8x128xf32>
    %151 = arith.mulf %150, %146 : vector<8x128xf32>
    %152 = arith.addf %141, %151 : vector<8x128xf32>
    %cst_37 = arith.constant dense<0.000000e+00> : vector<8x128xf32>
    %153 = tpu.matmul %152, %1, %cst_37 {dimension_numbers = #tpu.dot_dimension_numbers<[1], [0], [0], [1], [0, 0, 1, 1], [], []>} : vector<8x128xf32>, vector<128x128xf32>, vector<8x128xf32> -> vector<8x128xf32>
    %154 = math.tanh %153 : vector<8x128xf32>
    %155 = vector.broadcast %cst_10 : f32 to vector<8x128xf32>
    %156 = arith.select %18, %155, %154 : vector<8x128xi1>, vector<8x128xf32>
    %cst_38 = arith.constant dense<0.000000e+00> : vector<8x128xf32>
    %157 = tpu.matmul %156, %2, %cst_38 {dimension_numbers = #tpu.dot_dimension_numbers<[1], [0], [0], [1], [0, 0, 1, 1], [], []>} : vector<8x128xf32>, vector<128x128xf32>, vector<8x128xf32> -> vector<8x128xf32>
    %158 = vector.broadcast %9 : f32 to vector<8x128xf32>
    %159 = arith.mulf %158, %157 : vector<8x128xf32>
    %160 = arith.addf %149, %159 : vector<8x128xf32>
    %161 = vector.broadcast %8 : f32 to vector<8x128xf32>
    %162 = arith.mulf %161, %157 : vector<8x128xf32>
    %163 = arith.addf %141, %162 : vector<8x128xf32>
    %cst_39 = arith.constant dense<0.000000e+00> : vector<8x128xf32>
    %164 = tpu.matmul %163, %1, %cst_39 {dimension_numbers = #tpu.dot_dimension_numbers<[1], [0], [0], [1], [0, 0, 1, 1], [], []>} : vector<8x128xf32>, vector<128x128xf32>, vector<8x128xf32> -> vector<8x128xf32>
    %165 = math.tanh %164 : vector<8x128xf32>
    %166 = vector.broadcast %cst_10 : f32 to vector<8x128xf32>
    %167 = arith.select %18, %166, %165 : vector<8x128xi1>, vector<8x128xf32>
    %cst_40 = arith.constant dense<0.000000e+00> : vector<8x128xf32>
    %168 = tpu.matmul %167, %2, %cst_40 {dimension_numbers = #tpu.dot_dimension_numbers<[1], [0], [0], [1], [0, 0, 1, 1], [], []>} : vector<8x128xf32>, vector<128x128xf32>, vector<8x128xf32> -> vector<8x128xf32>
    %169 = vector.broadcast %9 : f32 to vector<8x128xf32>
    %170 = arith.mulf %169, %168 : vector<8x128xf32>
    %171 = arith.addf %160, %170 : vector<8x128xf32>
    %172 = vector.broadcast %7 : f32 to vector<8x128xf32>
    %173 = arith.mulf %172, %168 : vector<8x128xf32>
    %174 = arith.addf %141, %173 : vector<8x128xf32>
    %cst_41 = arith.constant dense<0.000000e+00> : vector<8x128xf32>
    %175 = tpu.matmul %174, %1, %cst_41 {dimension_numbers = #tpu.dot_dimension_numbers<[1], [0], [0], [1], [0, 0, 1, 1], [], []>} : vector<8x128xf32>, vector<128x128xf32>, vector<8x128xf32> -> vector<8x128xf32>
    %176 = math.tanh %175 : vector<8x128xf32>
    %177 = vector.broadcast %cst_10 : f32 to vector<8x128xf32>
    %178 = arith.select %18, %177, %176 : vector<8x128xi1>, vector<8x128xf32>
    %cst_42 = arith.constant dense<0.000000e+00> : vector<8x128xf32>
    %179 = tpu.matmul %178, %2, %cst_42 {dimension_numbers = #tpu.dot_dimension_numbers<[1], [0], [0], [1], [0, 0, 1, 1], [], []>} : vector<8x128xf32>, vector<128x128xf32>, vector<8x128xf32> -> vector<8x128xf32>
    %180 = vector.broadcast %10 : f32 to vector<8x128xf32>
    %181 = arith.mulf %180, %179 : vector<8x128xf32>
    %182 = arith.addf %171, %181 : vector<8x128xf32>
    %c4_i32 = arith.constant 4 : i32
    %cst_43 = arith.constant dense<0.000000e+00> : vector<8x128xf32>
    %183 = tpu.matmul %182, %1, %cst_43 {dimension_numbers = #tpu.dot_dimension_numbers<[1], [0], [0], [1], [0, 0, 1, 1], [], []>} : vector<8x128xf32>, vector<128x128xf32>, vector<8x128xf32> -> vector<8x128xf32>
    %184 = math.tanh %183 : vector<8x128xf32>
    %185 = vector.broadcast %cst_10 : f32 to vector<8x128xf32>
    %186 = arith.select %18, %185, %184 : vector<8x128xi1>, vector<8x128xf32>
    %cst_44 = arith.constant dense<0.000000e+00> : vector<8x128xf32>
    %187 = tpu.matmul %186, %2, %cst_44 {dimension_numbers = #tpu.dot_dimension_numbers<[1], [0], [0], [1], [0, 0, 1, 1], [], []>} : vector<8x128xf32>, vector<128x128xf32>, vector<8x128xf32> -> vector<8x128xf32>
    %188 = vector.broadcast %10 : f32 to vector<8x128xf32>
    %189 = arith.mulf %188, %187 : vector<8x128xf32>
    %190 = arith.addf %182, %189 : vector<8x128xf32>
    %191 = vector.broadcast %8 : f32 to vector<8x128xf32>
    %192 = arith.mulf %191, %187 : vector<8x128xf32>
    %193 = arith.addf %182, %192 : vector<8x128xf32>
    %cst_45 = arith.constant dense<0.000000e+00> : vector<8x128xf32>
    %194 = tpu.matmul %193, %1, %cst_45 {dimension_numbers = #tpu.dot_dimension_numbers<[1], [0], [0], [1], [0, 0, 1, 1], [], []>} : vector<8x128xf32>, vector<128x128xf32>, vector<8x128xf32> -> vector<8x128xf32>
    %195 = math.tanh %194 : vector<8x128xf32>
    %196 = vector.broadcast %cst_10 : f32 to vector<8x128xf32>
    %197 = arith.select %18, %196, %195 : vector<8x128xi1>, vector<8x128xf32>
    %cst_46 = arith.constant dense<0.000000e+00> : vector<8x128xf32>
    %198 = tpu.matmul %197, %2, %cst_46 {dimension_numbers = #tpu.dot_dimension_numbers<[1], [0], [0], [1], [0, 0, 1, 1], [], []>} : vector<8x128xf32>, vector<128x128xf32>, vector<8x128xf32> -> vector<8x128xf32>
    %199 = vector.broadcast %9 : f32 to vector<8x128xf32>
    %200 = arith.mulf %199, %198 : vector<8x128xf32>
    %201 = arith.addf %190, %200 : vector<8x128xf32>
    %202 = vector.broadcast %8 : f32 to vector<8x128xf32>
    %203 = arith.mulf %202, %198 : vector<8x128xf32>
    %204 = arith.addf %182, %203 : vector<8x128xf32>
    %cst_47 = arith.constant dense<0.000000e+00> : vector<8x128xf32>
    %205 = tpu.matmul %204, %1, %cst_47 {dimension_numbers = #tpu.dot_dimension_numbers<[1], [0], [0], [1], [0, 0, 1, 1], [], []>} : vector<8x128xf32>, vector<128x128xf32>, vector<8x128xf32> -> vector<8x128xf32>
    %206 = math.tanh %205 : vector<8x128xf32>
    %207 = vector.broadcast %cst_10 : f32 to vector<8x128xf32>
    %208 = arith.select %18, %207, %206 : vector<8x128xi1>, vector<8x128xf32>
    %cst_48 = arith.constant dense<0.000000e+00> : vector<8x128xf32>
    %209 = tpu.matmul %208, %2, %cst_48 {dimension_numbers = #tpu.dot_dimension_numbers<[1], [0], [0], [1], [0, 0, 1, 1], [], []>} : vector<8x128xf32>, vector<128x128xf32>, vector<8x128xf32> -> vector<8x128xf32>
    %210 = vector.broadcast %9 : f32 to vector<8x128xf32>
    %211 = arith.mulf %210, %209 : vector<8x128xf32>
    %212 = arith.addf %201, %211 : vector<8x128xf32>
    %213 = vector.broadcast %7 : f32 to vector<8x128xf32>
    %214 = arith.mulf %213, %209 : vector<8x128xf32>
    %215 = arith.addf %182, %214 : vector<8x128xf32>
    %cst_49 = arith.constant dense<0.000000e+00> : vector<8x128xf32>
    %216 = tpu.matmul %215, %1, %cst_49 {dimension_numbers = #tpu.dot_dimension_numbers<[1], [0], [0], [1], [0, 0, 1, 1], [], []>} : vector<8x128xf32>, vector<128x128xf32>, vector<8x128xf32> -> vector<8x128xf32>
    %217 = math.tanh %216 : vector<8x128xf32>
    %218 = vector.broadcast %cst_10 : f32 to vector<8x128xf32>
    %219 = arith.select %18, %218, %217 : vector<8x128xi1>, vector<8x128xf32>
    %cst_50 = arith.constant dense<0.000000e+00> : vector<8x128xf32>
    %220 = tpu.matmul %219, %2, %cst_50 {dimension_numbers = #tpu.dot_dimension_numbers<[1], [0], [0], [1], [0, 0, 1, 1], [], []>} : vector<8x128xf32>, vector<128x128xf32>, vector<8x128xf32> -> vector<8x128xf32>
    %221 = vector.broadcast %10 : f32 to vector<8x128xf32>
    %222 = arith.mulf %221, %220 : vector<8x128xf32>
    %223 = arith.addf %212, %222 : vector<8x128xf32>
    %c5_i32 = arith.constant 5 : i32
    %cst_51 = arith.constant dense<0.000000e+00> : vector<8x128xf32>
    %224 = tpu.matmul %223, %1, %cst_51 {dimension_numbers = #tpu.dot_dimension_numbers<[1], [0], [0], [1], [0, 0, 1, 1], [], []>} : vector<8x128xf32>, vector<128x128xf32>, vector<8x128xf32> -> vector<8x128xf32>
    %225 = math.tanh %224 : vector<8x128xf32>
    %226 = vector.broadcast %cst_10 : f32 to vector<8x128xf32>
    %227 = arith.select %18, %226, %225 : vector<8x128xi1>, vector<8x128xf32>
    %cst_52 = arith.constant dense<0.000000e+00> : vector<8x128xf32>
    %228 = tpu.matmul %227, %2, %cst_52 {dimension_numbers = #tpu.dot_dimension_numbers<[1], [0], [0], [1], [0, 0, 1, 1], [], []>} : vector<8x128xf32>, vector<128x128xf32>, vector<8x128xf32> -> vector<8x128xf32>
    %229 = vector.broadcast %10 : f32 to vector<8x128xf32>
    %230 = arith.mulf %229, %228 : vector<8x128xf32>
    %231 = arith.addf %223, %230 : vector<8x128xf32>
    %232 = vector.broadcast %8 : f32 to vector<8x128xf32>
    %233 = arith.mulf %232, %228 : vector<8x128xf32>
    %234 = arith.addf %223, %233 : vector<8x128xf32>
    %cst_53 = arith.constant dense<0.000000e+00> : vector<8x128xf32>
    %235 = tpu.matmul %234, %1, %cst_53 {dimension_numbers = #tpu.dot_dimension_numbers<[1], [0], [0], [1], [0, 0, 1, 1], [], []>} : vector<8x128xf32>, vector<128x128xf32>, vector<8x128xf32> -> vector<8x128xf32>
    %236 = math.tanh %235 : vector<8x128xf32>
    %237 = vector.broadcast %cst_10 : f32 to vector<8x128xf32>
    %238 = arith.select %18, %237, %236 : vector<8x128xi1>, vector<8x128xf32>
    %cst_54 = arith.constant dense<0.000000e+00> : vector<8x128xf32>
    %239 = tpu.matmul %238, %2, %cst_54 {dimension_numbers = #tpu.dot_dimension_numbers<[1], [0], [0], [1], [0, 0, 1, 1], [], []>} : vector<8x128xf32>, vector<128x128xf32>, vector<8x128xf32> -> vector<8x128xf32>
    %240 = vector.broadcast %9 : f32 to vector<8x128xf32>
    %241 = arith.mulf %240, %239 : vector<8x128xf32>
    %242 = arith.addf %231, %241 : vector<8x128xf32>
    %243 = vector.broadcast %8 : f32 to vector<8x128xf32>
    %244 = arith.mulf %243, %239 : vector<8x128xf32>
    %245 = arith.addf %223, %244 : vector<8x128xf32>
    %cst_55 = arith.constant dense<0.000000e+00> : vector<8x128xf32>
    %246 = tpu.matmul %245, %1, %cst_55 {dimension_numbers = #tpu.dot_dimension_numbers<[1], [0], [0], [1], [0, 0, 1, 1], [], []>} : vector<8x128xf32>, vector<128x128xf32>, vector<8x128xf32> -> vector<8x128xf32>
    %247 = math.tanh %246 : vector<8x128xf32>
    %248 = vector.broadcast %cst_10 : f32 to vector<8x128xf32>
    %249 = arith.select %18, %248, %247 : vector<8x128xi1>, vector<8x128xf32>
    %cst_56 = arith.constant dense<0.000000e+00> : vector<8x128xf32>
    %250 = tpu.matmul %249, %2, %cst_56 {dimension_numbers = #tpu.dot_dimension_numbers<[1], [0], [0], [1], [0, 0, 1, 1], [], []>} : vector<8x128xf32>, vector<128x128xf32>, vector<8x128xf32> -> vector<8x128xf32>
    %251 = vector.broadcast %9 : f32 to vector<8x128xf32>
    %252 = arith.mulf %251, %250 : vector<8x128xf32>
    %253 = arith.addf %242, %252 : vector<8x128xf32>
    %254 = vector.broadcast %7 : f32 to vector<8x128xf32>
    %255 = arith.mulf %254, %250 : vector<8x128xf32>
    %256 = arith.addf %223, %255 : vector<8x128xf32>
    %cst_57 = arith.constant dense<0.000000e+00> : vector<8x128xf32>
    %257 = tpu.matmul %256, %1, %cst_57 {dimension_numbers = #tpu.dot_dimension_numbers<[1], [0], [0], [1], [0, 0, 1, 1], [], []>} : vector<8x128xf32>, vector<128x128xf32>, vector<8x128xf32> -> vector<8x128xf32>
    %258 = math.tanh %257 : vector<8x128xf32>
    %259 = vector.broadcast %cst_10 : f32 to vector<8x128xf32>
    %260 = arith.select %18, %259, %258 : vector<8x128xi1>, vector<8x128xf32>
    %cst_58 = arith.constant dense<0.000000e+00> : vector<8x128xf32>
    %261 = tpu.matmul %260, %2, %cst_58 {dimension_numbers = #tpu.dot_dimension_numbers<[1], [0], [0], [1], [0, 0, 1, 1], [], []>} : vector<8x128xf32>, vector<128x128xf32>, vector<8x128xf32> -> vector<8x128xf32>
    %262 = vector.broadcast %10 : f32 to vector<8x128xf32>
    %263 = arith.mulf %262, %261 : vector<8x128xf32>
    %264 = arith.addf %253, %263 : vector<8x128xf32>
    %c6_i32 = arith.constant 6 : i32
    %cst_59 = arith.constant dense<0.000000e+00> : vector<8x128xf32>
    %265 = tpu.matmul %264, %1, %cst_59 {dimension_numbers = #tpu.dot_dimension_numbers<[1], [0], [0], [1], [0, 0, 1, 1], [], []>} : vector<8x128xf32>, vector<128x128xf32>, vector<8x128xf32> -> vector<8x128xf32>
    %266 = math.tanh %265 : vector<8x128xf32>
    %267 = vector.broadcast %cst_10 : f32 to vector<8x128xf32>
    %268 = arith.select %18, %267, %266 : vector<8x128xi1>, vector<8x128xf32>
    %cst_60 = arith.constant dense<0.000000e+00> : vector<8x128xf32>
    %269 = tpu.matmul %268, %2, %cst_60 {dimension_numbers = #tpu.dot_dimension_numbers<[1], [0], [0], [1], [0, 0, 1, 1], [], []>} : vector<8x128xf32>, vector<128x128xf32>, vector<8x128xf32> -> vector<8x128xf32>
    %270 = vector.broadcast %10 : f32 to vector<8x128xf32>
    %271 = arith.mulf %270, %269 : vector<8x128xf32>
    %272 = arith.addf %264, %271 : vector<8x128xf32>
    %273 = vector.broadcast %8 : f32 to vector<8x128xf32>
    %274 = arith.mulf %273, %269 : vector<8x128xf32>
    %275 = arith.addf %264, %274 : vector<8x128xf32>
    %cst_61 = arith.constant dense<0.000000e+00> : vector<8x128xf32>
    %276 = tpu.matmul %275, %1, %cst_61 {dimension_numbers = #tpu.dot_dimension_numbers<[1], [0], [0], [1], [0, 0, 1, 1], [], []>} : vector<8x128xf32>, vector<128x128xf32>, vector<8x128xf32> -> vector<8x128xf32>
    %277 = math.tanh %276 : vector<8x128xf32>
    %278 = vector.broadcast %cst_10 : f32 to vector<8x128xf32>
    %279 = arith.select %18, %278, %277 : vector<8x128xi1>, vector<8x128xf32>
    %cst_62 = arith.constant dense<0.000000e+00> : vector<8x128xf32>
    %280 = tpu.matmul %279, %2, %cst_62 {dimension_numbers = #tpu.dot_dimension_numbers<[1], [0], [0], [1], [0, 0, 1, 1], [], []>} : vector<8x128xf32>, vector<128x128xf32>, vector<8x128xf32> -> vector<8x128xf32>
    %281 = vector.broadcast %9 : f32 to vector<8x128xf32>
    %282 = arith.mulf %281, %280 : vector<8x128xf32>
    %283 = arith.addf %272, %282 : vector<8x128xf32>
    %284 = vector.broadcast %8 : f32 to vector<8x128xf32>
    %285 = arith.mulf %284, %280 : vector<8x128xf32>
    %286 = arith.addf %264, %285 : vector<8x128xf32>
    %cst_63 = arith.constant dense<0.000000e+00> : vector<8x128xf32>
    %287 = tpu.matmul %286, %1, %cst_63 {dimension_numbers = #tpu.dot_dimension_numbers<[1], [0], [0], [1], [0, 0, 1, 1], [], []>} : vector<8x128xf32>, vector<128x128xf32>, vector<8x128xf32> -> vector<8x128xf32>
    %288 = math.tanh %287 : vector<8x128xf32>
    %289 = vector.broadcast %cst_10 : f32 to vector<8x128xf32>
    %290 = arith.select %18, %289, %288 : vector<8x128xi1>, vector<8x128xf32>
    %cst_64 = arith.constant dense<0.000000e+00> : vector<8x128xf32>
    %291 = tpu.matmul %290, %2, %cst_64 {dimension_numbers = #tpu.dot_dimension_numbers<[1], [0], [0], [1], [0, 0, 1, 1], [], []>} : vector<8x128xf32>, vector<128x128xf32>, vector<8x128xf32> -> vector<8x128xf32>
    %292 = vector.broadcast %9 : f32 to vector<8x128xf32>
    %293 = arith.mulf %292, %291 : vector<8x128xf32>
    %294 = arith.addf %283, %293 : vector<8x128xf32>
    %295 = vector.broadcast %7 : f32 to vector<8x128xf32>
    %296 = arith.mulf %295, %291 : vector<8x128xf32>
    %297 = arith.addf %264, %296 : vector<8x128xf32>
    %cst_65 = arith.constant dense<0.000000e+00> : vector<8x128xf32>
    %298 = tpu.matmul %297, %1, %cst_65 {dimension_numbers = #tpu.dot_dimension_numbers<[1], [0], [0], [1], [0, 0, 1, 1], [], []>} : vector<8x128xf32>, vector<128x128xf32>, vector<8x128xf32> -> vector<8x128xf32>
    %299 = math.tanh %298 : vector<8x128xf32>
    %300 = vector.broadcast %cst_10 : f32 to vector<8x128xf32>
    %301 = arith.select %18, %300, %299 : vector<8x128xi1>, vector<8x128xf32>
    %cst_66 = arith.constant dense<0.000000e+00> : vector<8x128xf32>
    %302 = tpu.matmul %301, %2, %cst_66 {dimension_numbers = #tpu.dot_dimension_numbers<[1], [0], [0], [1], [0, 0, 1, 1], [], []>} : vector<8x128xf32>, vector<128x128xf32>, vector<8x128xf32> -> vector<8x128xf32>
    %303 = vector.broadcast %10 : f32 to vector<8x128xf32>
    %304 = arith.mulf %303, %302 : vector<8x128xf32>
    %305 = arith.addf %294, %304 : vector<8x128xf32>
    %c7_i32 = arith.constant 7 : i32
    %cst_67 = arith.constant dense<0.000000e+00> : vector<8x128xf32>
    %306 = tpu.matmul %305, %1, %cst_67 {dimension_numbers = #tpu.dot_dimension_numbers<[1], [0], [0], [1], [0, 0, 1, 1], [], []>} : vector<8x128xf32>, vector<128x128xf32>, vector<8x128xf32> -> vector<8x128xf32>
    %307 = math.tanh %306 : vector<8x128xf32>
    %308 = vector.broadcast %cst_10 : f32 to vector<8x128xf32>
    %309 = arith.select %18, %308, %307 : vector<8x128xi1>, vector<8x128xf32>
    %cst_68 = arith.constant dense<0.000000e+00> : vector<8x128xf32>
    %310 = tpu.matmul %309, %2, %cst_68 {dimension_numbers = #tpu.dot_dimension_numbers<[1], [0], [0], [1], [0, 0, 1, 1], [], []>} : vector<8x128xf32>, vector<128x128xf32>, vector<8x128xf32> -> vector<8x128xf32>
    %311 = vector.broadcast %10 : f32 to vector<8x128xf32>
    %312 = arith.mulf %311, %310 : vector<8x128xf32>
    %313 = arith.addf %305, %312 : vector<8x128xf32>
    %314 = vector.broadcast %8 : f32 to vector<8x128xf32>
    %315 = arith.mulf %314, %310 : vector<8x128xf32>
    %316 = arith.addf %305, %315 : vector<8x128xf32>
    %cst_69 = arith.constant dense<0.000000e+00> : vector<8x128xf32>
    %317 = tpu.matmul %316, %1, %cst_69 {dimension_numbers = #tpu.dot_dimension_numbers<[1], [0], [0], [1], [0, 0, 1, 1], [], []>} : vector<8x128xf32>, vector<128x128xf32>, vector<8x128xf32> -> vector<8x128xf32>
    %318 = math.tanh %317 : vector<8x128xf32>
    %319 = vector.broadcast %cst_10 : f32 to vector<8x128xf32>
    %320 = arith.select %18, %319, %318 : vector<8x128xi1>, vector<8x128xf32>
    %cst_70 = arith.constant dense<0.000000e+00> : vector<8x128xf32>
    %321 = tpu.matmul %320, %2, %cst_70 {dimension_numbers = #tpu.dot_dimension_numbers<[1], [0], [0], [1], [0, 0, 1, 1], [], []>} : vector<8x128xf32>, vector<128x128xf32>, vector<8x128xf32> -> vector<8x128xf32>
    %322 = vector.broadcast %9 : f32 to vector<8x128xf32>
    %323 = arith.mulf %322, %321 : vector<8x128xf32>
    %324 = arith.addf %313, %323 : vector<8x128xf32>
    %325 = vector.broadcast %8 : f32 to vector<8x128xf32>
    %326 = arith.mulf %325, %321 : vector<8x128xf32>
    %327 = arith.addf %305, %326 : vector<8x128xf32>
    %cst_71 = arith.constant dense<0.000000e+00> : vector<8x128xf32>
    %328 = tpu.matmul %327, %1, %cst_71 {dimension_numbers = #tpu.dot_dimension_numbers<[1], [0], [0], [1], [0, 0, 1, 1], [], []>} : vector<8x128xf32>, vector<128x128xf32>, vector<8x128xf32> -> vector<8x128xf32>
    %329 = math.tanh %328 : vector<8x128xf32>
    %330 = vector.broadcast %cst_10 : f32 to vector<8x128xf32>
    %331 = arith.select %18, %330, %329 : vector<8x128xi1>, vector<8x128xf32>
    %cst_72 = arith.constant dense<0.000000e+00> : vector<8x128xf32>
    %332 = tpu.matmul %331, %2, %cst_72 {dimension_numbers = #tpu.dot_dimension_numbers<[1], [0], [0], [1], [0, 0, 1, 1], [], []>} : vector<8x128xf32>, vector<128x128xf32>, vector<8x128xf32> -> vector<8x128xf32>
    %333 = vector.broadcast %9 : f32 to vector<8x128xf32>
    %334 = arith.mulf %333, %332 : vector<8x128xf32>
    %335 = arith.addf %324, %334 : vector<8x128xf32>
    %336 = vector.broadcast %7 : f32 to vector<8x128xf32>
    %337 = arith.mulf %336, %332 : vector<8x128xf32>
    %338 = arith.addf %305, %337 : vector<8x128xf32>
    %cst_73 = arith.constant dense<0.000000e+00> : vector<8x128xf32>
    %339 = tpu.matmul %338, %1, %cst_73 {dimension_numbers = #tpu.dot_dimension_numbers<[1], [0], [0], [1], [0, 0, 1, 1], [], []>} : vector<8x128xf32>, vector<128x128xf32>, vector<8x128xf32> -> vector<8x128xf32>
    %340 = math.tanh %339 : vector<8x128xf32>
    %341 = vector.broadcast %cst_10 : f32 to vector<8x128xf32>
    %342 = arith.select %18, %341, %340 : vector<8x128xi1>, vector<8x128xf32>
    %cst_74 = arith.constant dense<0.000000e+00> : vector<8x128xf32>
    %343 = tpu.matmul %342, %2, %cst_74 {dimension_numbers = #tpu.dot_dimension_numbers<[1], [0], [0], [1], [0, 0, 1, 1], [], []>} : vector<8x128xf32>, vector<128x128xf32>, vector<8x128xf32> -> vector<8x128xf32>
    %344 = vector.broadcast %10 : f32 to vector<8x128xf32>
    %345 = arith.mulf %344, %343 : vector<8x128xf32>
    %346 = arith.addf %335, %345 : vector<8x128xf32>
    %cst_75 = arith.constant 1.000000e+00 : f32
    %347 = arith.subf %cst_75, %5 : f32
    %348 = vector.broadcast %347 : f32 to vector<8x128xf32>
    %349 = arith.mulf %348, %0 : vector<8x128xf32>
    %350 = vector.broadcast %5 : f32 to vector<8x128xf32>
    %351 = arith.mulf %350, %346 : vector<8x128xf32>
    %352 = arith.addf %349, %351 : vector<8x128xf32>
    %c0_76 = arith.constant 0 : index
    %c0_77 = arith.constant 0 : index
    %353 = vector.load %arg7[%c0_76, %c0_77] : memref<8x128xf32, #tpu.memory_space<vmem>>, vector<8x128xf32>
    tpu.vector_store %arg7[%c0_76, %c0_77], %352 {strides = array<i32>} : memref<8x128xf32, #tpu.memory_space<vmem>>, vector<8x128xf32>,
    return
  }
  func.func @transform_0(%arg0: i32) -> i32 {
    %c0_i32 = arith.constant 0 : i32
    %c0_i32_0 = arith.constant 0 : i32
    return %c0_i32 : i32
  }
  func.func @transform_1(%arg0: i32) -> (i32, i32) {
    %c0_i32 = arith.constant 0 : i32
    %c0_i32_0 = arith.constant 0 : i32
    return %arg0, %c0_i32 : i32, i32
  }
  func.func @transform_2(%arg0: i32) -> (i32, i32) {
    %c0_i32 = arith.constant 0 : i32
    %c0_i32_0 = arith.constant 0 : i32
    %c0_i32_1 = arith.constant 0 : i32
    return %c0_i32, %c0_i32_0 : i32, i32
  }
  func.func @transform_3(%arg0: i32) -> (i32, i32) {
    %c0_i32 = arith.constant 0 : i32
    %c0_i32_0 = arith.constant 0 : i32
    %c0_i32_1 = arith.constant 0 : i32
    return %c0_i32, %c0_i32_0 : i32, i32
  }
  func.func @transform_4(%arg0: i32) -> (i32, i32) {
    %c0_i32 = arith.constant 0 : i32
    %c0_i32_0 = arith.constant 0 : i32
    %c0_i32_1 = arith.constant 0 : i32
    return %c0_i32, %c0_i32_0 : i32, i32
  }
  func.func @transform_5(%arg0: i32) -> (i32, i32) {
    %c0_i32 = arith.constant 0 : i32
    %c0_i32_0 = arith.constant 0 : i32
    %c0_i32_1 = arith.constant 0 : i32
    return %c0_i32, %c0_i32_0 : i32, i32
  }
  func.func @transform_6(%arg0: i32) -> (i32, i32) {
    %c0_i32 = arith.constant 0 : i32
    %c0_i32_0 = arith.constant 0 : i32
    return %arg0, %c0_i32 : i32, i32
  }
}

</mosaic_0001>

<llo_original>
// kernel: tpu_custom_call.1
$region0: #{tpu_custom_call.1}
  #allocation0 [shape = 'u32[]', space=smem, size = 0x4, offset = 0x4, fixed_abs, tag = 'smem constant byte address 0x4 - core index']
  #allocation1 [shape = 'u32[144,128]{1,0:T(1,128)}', space=vmem, size = 0x12000, scoped, tag = 'internal scratch']
  %s0 = inlined_call_operand.vmem [shape: f32[3], index: 0, kind: input, shape index: {}]
  %s1 = inlined_call_operand.hbm [shape: f32[8,128], index: 1, kind: input, shape index: {}, may-alias: {1,6}]
  %s2 = inlined_call_operand.hbm [shape: f32[128,128], index: 2, kind: input, shape index: {}]
  %s3 = inlined_call_operand.vmem [shape: f32[1,128], index: 3, kind: input, shape index: {}]
  %s4 = inlined_call_operand.hbm [shape: f32[128,128], index: 4, kind: input, shape index: {}]
  %s5 = inlined_call_operand.vmem [shape: f32[1,128], index: 5, kind: input, shape index: {}]
  %s6 = inlined_call_operand.hbm [shape: f32[8,128], index: 6, kind: output, shape index: {}, may-alias: {1,6}]
  %s7 = sld [smem:[#allocation0]]
  $region50: #{tpu_custom_call.1} parent=0
    _
  %s9 = ssub.s32 1, %s7
  %s10 = scalar_select 0, %s9, %s7
  $region1: #{tpu_custom_call.1} parent=0
    #allocation2 [shape = 'u8[512]{0}', space=smem, size = 0x200, scoped, tag = 'input window, operand 0, single buffered']
    #allocation3 [shape = 's32[1]{0}', space=sflag, size = 0x4, scoped, tag = 'scoped memory for tpu_custom_call.1']
    #allocation4 [shape = 's32[1]{0}', space=sflag, size = 0x4, scoped, tag = 'scoped memory for tpu_custom_call.1']
    #allocation5 [shape = 's32[1]{0}', space=sflag, size = 0x4, scoped, tag = 'scoped memory for tpu_custom_call.1']
    #allocation6 [shape = 'u8[4096]{0}', space=vmem, size = 0x1000, scoped, tag = 'input window, operand 1, single buffered']
    #allocation7 [shape = 'u8[65536]{0}', space=vmem, size = 0x10000, scoped, tag = 'input window, operand 2, single buffered']
    #allocation8 [shape = 's32[1]{0}', space=sflag, size = 0x4, scoped, tag = 'scoped memory for tpu_custom_call.1']
    #allocation9 [shape = 'u8[65536]{0}', space=vmem, size = 0x10000, scoped, tag = 'input window, operand 4, single buffered']
    #allocation10 [shape = 'u8[4096]{0}', space=vmem, size = 0x1000, scoped, tag = 'output window, operand 0, single buffered']
    %11 = vsyncpa [#allocation5], 0
    %12 = vsyncpa [#allocation3], 0
    %13 = vsyncpa [#allocation8], 0
    %14 = vsyncpa [#allocation4], 0
    // Predicated region
    $region2: #{tpu_custom_call.1} parent=1 // pred_check
      _
    $region3: #{tpu_custom_call.1} parent=1 // pred_check_branch
      %16 = sbr.rel (0) target = $region5
    $region4: #{tpu_custom_call.1} parent=1 // pred_region
      %s18 = ssub.s32 16, 16
      %19 = vsyncadd [#allocation5], %s18
      %s21 = sshll.u32 %s0, 4
      %s22 = int_to_ptr.vmem [resolvable:$true] %s21
      %24 = dma.vmem_to_smem %s22, 16, [#allocation2], [#allocation5]
    $region5: #{tpu_custom_call.1} parent=1 // pred_fallthru
      _
    // Predicated region
    $region6: #{tpu_custom_call.1} parent=1 // pred_check
      _
    $region7: #{tpu_custom_call.1} parent=1 // pred_check_branch
      %26 = sbr.rel (0) target = $region9
    $region8: #{tpu_custom_call.1} parent=1 // pred_region
      %s28 = ssub.s32 128, 128
      %29 = vsyncadd [#allocation3], %s28
      %s31 = sshll.u32 [#allocation6], 4
      %s32 = int_to_ptr.vmem [resolvable:$true] %s31
      %34 = dma.hbm_to_vmem [thread:$0]  %s1, 128, %s32, [#allocation3]
    $region9: #{tpu_custom_call.1} parent=1 // pred_fallthru
      _
    // Predicated region
    $region10: #{tpu_custom_call.1} parent=1 // pred_check
      _
    $region11: #{tpu_custom_call.1} parent=1 // pred_check_branch
      %36 = sbr.rel (0) target = $region13
    $region12: #{tpu_custom_call.1} parent=1 // pred_region
      %s38 = ssub.s32 2048, 2048
      %39 = vsyncadd [#allocation8], %s38
      %s40 = sshll.u32 [#allocation7], 4
      %s41 = int_to_ptr.vmem [resolvable:$true] %s40
      %46 = dma.hbm_to_vmem [thread:$0]  %s2, 2048, %s41, [#allocation8], 128, 128, 8
    $region13: #{tpu_custom_call.1} parent=1 // pred_fallthru
      _
    // Predicated region
    $region14: #{tpu_custom_call.1} parent=1 // pred_check
      _
    $region15: #{tpu_custom_call.1} parent=1 // pred_check_branch
      %48 = sbr.rel (0) target = $region17
    $region16: #{tpu_custom_call.1} parent=1 // pred_region
      _
    $region17: #{tpu_custom_call.1} parent=1 // pred_fallthru
      _
    // Predicated region
    $region18: #{tpu_custom_call.1} parent=1 // pred_check
      _
    $region19: #{tpu_custom_call.1} parent=1 // pred_check_branch
      %50 = sbr.rel (0) target = $region21
    $region20: #{tpu_custom_call.1} parent=1 // pred_region
      %s52 = ssub.s32 2048, 2048
      %53 = vsyncadd [#allocation8], %s52
      %s54 = sshll.u32 [#allocation9], 4
      %s55 = int_to_ptr.vmem [resolvable:$true] %s54
      %60 = dma.hbm_to_vmem [thread:$0]  %s4, 2048, %s55, [#allocation8], 128, 128, 8
    $region21: #{tpu_custom_call.1} parent=1 // pred_fallthru
      _
    // Predicated region
    $region22: #{tpu_custom_call.1} parent=1 // pred_check
      _
    $region23: #{tpu_custom_call.1} parent=1 // pred_check_branch
      %62 = sbr.rel (0) target = $region25
    $region24: #{tpu_custom_call.1} parent=1 // pred_region
      _
    $region25: #{tpu_custom_call.1} parent=1 // pred_fallthru
      _
    // Predicated region
    $region26: #{tpu_custom_call.1} parent=1 // pred_check
      _
    $region27: #{tpu_custom_call.1} parent=1 // pred_check_branch
      %64 = sbr.rel (0) target = $region29
    $region28: #{tpu_custom_call.1} parent=1 // pred_region
      %65 = dma.done [#allocation5], 16
    $region29: #{tpu_custom_call.1} parent=1 // pred_fallthru
      _
    // Predicated region
    $region30: #{tpu_custom_call.1} parent=1 // pred_check
      _
    $region31: #{tpu_custom_call.1} parent=1 // pred_check_branch
      %67 = sbr.rel (0) target = $region33
    $region32: #{tpu_custom_call.1} parent=1 // pred_region
      %68 = dma.done [#allocation3], 128
    $region33: #{tpu_custom_call.1} parent=1 // pred_fallthru
      _
    // Predicated region
    $region34: #{tpu_custom_call.1} parent=1 // pred_check
      _
    $region35: #{tpu_custom_call.1} parent=1 // pred_check_branch
      %70 = sbr.rel (0) target = $region37
    $region36: #{tpu_custom_call.1} parent=1 // pred_region
      %71 = dma.done [#allocation8], 2048
    $region37: #{tpu_custom_call.1} parent=1 // pred_fallthru
      _
    // Predicated region
    $region38: #{tpu_custom_call.1} parent=1 // pred_check
      _
    $region39: #{tpu_custom_call.1} parent=1 // pred_check_branch
      %73 = sbr.rel (0) target = $region41
    $region40: #{tpu_custom_call.1} parent=1 // pred_region
      %74 = dma.done [#allocation8], 2048
    $region41: #{tpu_custom_call.1} parent=1 // pred_fallthru
      _
    %75 = sfence
    %v76 = vld [vmem:[#allocation6] sm:$0xff]
    %v77 = vld [vmem:[#allocation7] sm:$0xff]
    %v78 = vld [vmem:[#allocation7 + $0x8] sm:$0xff]
    %v79 = vld [vmem:[#allocation7 + $0x10] sm:$0xff]
    %v80 = vld [vmem:[#allocation7 + $0x18] sm:$0xff]
    %v81 = vld [vmem:[#allocation7 + $0x20] sm:$0xff]
    %v82 = vld [vmem:[#allocation7 + $0x28] sm:$0xff]
    %v83 = vld [vmem:[#allocation7 + $0x30] sm:$0xff]
    %v84 = vld [vmem:[#allocation7 + $0x38] sm:$0xff]
    %v85 = vld [vmem:[#allocation7 + $0x40] sm:$0xff]
    %v86 = vld [vmem:[#allocation7 + $0x48] sm:$0xff]
    %v87 = vld [vmem:[#allocation7 + $0x50] sm:$0xff]
    %v88 = vld [vmem:[#allocation7 + $0x58] sm:$0xff]
    %v89 = vld [vmem:[#allocation7 + $0x60] sm:$0xff]
    %v90 = vld [vmem:[#allocation7 + $0x68] sm:$0xff]
    %v91 = vld [vmem:[#allocation7 + $0x70] sm:$0xff]
    %v92 = vld [vmem:[#allocation7 + $0x78] sm:$0xff]
    %v93 = vld [vmem:[#allocation9] sm:$0xff]
    %v94 = vld [vmem:[#allocation9 + $0x8] sm:$0xff]
    %v95 = vld [vmem:[#allocation9 + $0x10] sm:$0xff]
    %v96 = vld [vmem:[#allocation9 + $0x18] sm:$0xff]
    %v97 = vld [vmem:[#allocation9 + $0x20] sm:$0xff]
    %v98 = vld [vmem:[#allocation9 + $0x28] sm:$0xff]
    %v99 = vld [vmem:[#allocation9 + $0x30] sm:$0xff]
    %v100 = vld [vmem:[#allocation9 + $0x38] sm:$0xff]
    %v101 = vld [vmem:[#allocation9 + $0x40] sm:$0xff]
    %v102 = vld [vmem:[#allocation9 + $0x48] sm:$0xff]
    %v103 = vld [vmem:[#allocation9 + $0x50] sm:$0xff]
    %v104 = vld [vmem:[#allocation9 + $0x58] sm:$0xff]
    %v105 = vld [vmem:[#allocation9 + $0x60] sm:$0xff]
    %v106 = vld [vmem:[#allocation9 + $0x68] sm:$0xff]
    %v107 = vld [vmem:[#allocation9 + $0x70] sm:$0xff]
    %v108 = vld [vmem:[#allocation9 + $0x78] sm:$0xff]
    %s109 = sld [smem:[#allocation2]]
    %s110 = sld [smem:[#allocation2 + $0x1]]
    %s111 = sld [smem:[#allocation2 + $0x2]]
    %s112 = ssub.f32 %s110, %s109
    %v113 = vrcp.pop 8.0
    %s114 = vtos %v113
    %s115 = smul.f32 %s112, %s114
    %s116 = smul.f32 %s115, 0.5
    %v117 = vrcp.pop 3.0
    %s118 = vtos %v117
    %s119 = smul.f32 %s115, %s118
    %v120 = vrcp.pop 6.0
    %s121 = vtos %v120
    %s122 = smul.f32 %s115, %s121
    %v123 = vlaneseq
    %v124 = vand.u32 %v123, 127
    %vm125 = vcmp.eq.s32.totalorder %v124, 32
    %v126 = vsel %vm125, 1.0, %v76
    %vm127 = vcmp.eq.s32.totalorder %v124, 64
    %128 = vmatprep.subr.mxu0 0.0
    %129 = vmatpush1.msra.mxu0 %v77
    %130 = vmatprep.subr.mxu0 0.0
    %131 = vmatpush1.msra.mxu0 %v78
    %132 = vmatprep.subr.mxu0 0.0
    %133 = vmatpush1.msra.mxu0 %v79
    %134 = vmatprep.subr.mxu0 0.0
    %135 = vmatpush1.msra.mxu0 %v80
    %136 = vmatprep.subr.mxu0 0.0
    %137 = vmatpush1.msra.mxu0 %v81
    %138 = vmatprep.subr.mxu0 0.0
    %139 = vmatpush1.msra.mxu0 %v82
    %140 = vmatprep.subr.mxu0 0.0
    %141 = vmatpush1.msra.mxu0 %v83
    %142 = vmatprep.subr.mxu0 0.0
    %143 = vmatpush1.msra.mxu0 %v84
    %144 = vmatprep.subr.mxu0 0.0
    %145 = vmatpush1.msra.mxu0 %v85
    %146 = vmatprep.subr.mxu0 0.0
    %147 = vmatpush1.msra.mxu0 %v86
    %148 = vmatprep.subr.mxu0 0.0
    %149 = vmatpush1.msra.mxu0 %v87
    %150 = vmatprep.subr.mxu0 0.0
    %151 = vmatpush1.msra.mxu0 %v88
    %152 = vmatprep.subr.mxu0 0.0
    %153 = vmatpush1.msra.mxu0 %v89
    %154 = vmatprep.subr.mxu0 0.0
    %155 = vmatpush1.msra.mxu0 %v90
    %156 = vmatprep.subr.mxu0 0.0
    %157 = vmatpush1.msra.mxu0 %v91
    %158 = vmatprep.subr.mxu0 0.0
    %159 = vmatpush1.msra.mxu0 %v92
    %160 = vmatprep.subr.mxu0 0.0
    %161 = vmatpush1.msra.mxu0 0.0
    %162 = vmatprep.subr.mxu0 0.0
    %163 = vmatpush1.msra.mxu0 0.0
    %164 = vmatprep.subr.mxu0 0.0
    %165 = vmatpush1.msra.mxu0 0.0
    %166 = vmatprep.subr.mxu0 0.0
    %167 = vmatpush1.msra.mxu0 0.0
    %168 = vmatprep.subr.mxu0 0.0
    %169 = vmatpush1.msra.mxu0 0.0
    %170 = vmatprep.subr.mxu0 0.0
    %171 = vmatpush1.msra.mxu0 0.0
    %172 = vmatprep.subr.mxu0 0.0
    %173 = vmatpush1.msra.mxu0 0.0
    %174 = vmatprep.subr.mxu0 0.0
    %175 = vmatpush1.msra.mxu0 0.0
    %176 = vmatprep.subr.mxu0 0.0
    %177 = vmatpush1.msra.mxu0 0.0
    %178 = vmatprep.subr.mxu0 0.0
    %179 = vmatpush1.msra.mxu0 0.0
    %180 = vmatprep.subr.mxu0 0.0
    %181 = vmatpush1.msra.mxu0 0.0
    %182 = vmatprep.subr.mxu0 0.0
    %183 = vmatpush1.msra.mxu0 0.0
    %184 = vmatprep.subr.mxu0 0.0
    %185 = vmatpush1.msra.mxu0 0.0
    %186 = vmatprep.subr.mxu0 0.0
    %187 = vmatpush1.msra.mxu0 0.0
    %188 = vmatprep.subr.mxu0 0.0
    %189 = vmatpush1.msra.mxu0 0.0
    %190 = vmatprep.subr.mxu0 0.0
    %191 = vmatpush1.msra.mxu0 0.0
    %192 = vmatprep.mubr.f32.mxu0 0.0
    %193 = vmatmul.mubr.f32.gmra.mrb[0].mxu0 %v126
    %v194 = vpop.f32.mrb[0].mxu0
    %v195 = vadd.f32 0.0, %v194
    %v196 = vpop.f32.mrb[0].mxu0
    %197 = vdwg.mxu0
    %v198 = vtanh.pop %v195
    %v199 = vsel %vm127, 1.0, %v198
    %200 = vmatprep.subr.mxu0 0.0
    %201 = vmatpush1.msra.mxu0 %v93
    %202 = vmatprep.subr.mxu0 0.0
    %203 = vmatpush1.msra.mxu0 %v94
    %204 = vmatprep.subr.mxu0 0.0
    %205 = vmatpush1.msra.mxu0 %v95
    %206 = vmatprep.subr.mxu0 0.0
    %207 = vmatpush1.msra.mxu0 %v96
    %208 = vmatprep.subr.mxu0 0.0
    %209 = vmatpush1.msra.mxu0 %v97
    %210 = vmatprep.subr.mxu0 0.0
    %211 = vmatpush1.msra.mxu0 %v98
    %212 = vmatprep.subr.mxu0 0.0
    %213 = vmatpush1.msra.mxu0 %v99
    %214 = vmatprep.subr.mxu0 0.0
    %215 = vmatpush1.msra.mxu0 %v100
    %216 = vmatprep.subr.mxu0 0.0
    %217 = vmatpush1.msra.mxu0 %v101
    %218 = vmatprep.subr.mxu0 0.0
    %219 = vmatpush1.msra.mxu0 %v102
    %220 = vmatprep.subr.mxu0 0.0
    %221 = vmatpush1.msra.mxu0 %v103
    %222 = vmatprep.subr.mxu0 0.0
    %223 = vmatpush1.msra.mxu0 %v104
    %224 = vmatprep.subr.mxu0 0.0
    %225 = vmatpush1.msra.mxu0 %v105
    %226 = vmatprep.subr.mxu0 0.0
    %227 = vmatpush1.msra.mxu0 %v106
    %228 = vmatprep.subr.mxu0 0.0
    %229 = vmatpush1.msra.mxu0 %v107
    %230 = vmatprep.subr.mxu0 0.0
    %231 = vmatpush1.msra.mxu0 %v108
    %232 = vmatprep.subr.mxu0 0.0
    %233 = vmatpush1.msra.mxu0 0.0
    %234 = vmatprep.subr.mxu0 0.0
    %235 = vmatpush1.msra.mxu0 0.0
    %236 = vmatprep.subr.mxu0 0.0
    %237 = vmatpush1.msra.mxu0 0.0
    %238 = vmatprep.subr.mxu0 0.0
    %239 = vmatpush1.msra.mxu0 0.0
    %240 = vmatprep.subr.mxu0 0.0
    %241 = vmatpush1.msra.mxu0 0.0
    %242 = vmatprep.subr.mxu0 0.0
    %243 = vmatpush1.msra.mxu0 0.0
    %244 = vmatprep.subr.mxu0 0.0
    %245 = vmatpush1.msra.mxu0 0.0
    %246 = vmatprep.subr.mxu0 0.0
    %247 = vmatpush1.msra.mxu0 0.0
    %248 = vmatprep.subr.mxu0 0.0
    %249 = vmatpush1.msra.mxu0 0.0
    %250 = vmatprep.subr.mxu0 0.0
    %251 = vmatpush1.msra.mxu0 0.0
    %252 = vmatprep.subr.mxu0 0.0
    %253 = vmatpush1.msra.mxu0 0.0
    %254 = vmatprep.subr.mxu0 0.0
    %255 = vmatpush1.msra.mxu0 0.0
    %256 = vmatprep.subr.mxu0 0.0
    %257 = vmatpush1.msra.mxu0 0.0
    %258 = vmatprep.subr.mxu0 0.0
    %259 = vmatpush1.msra.mxu0 0.0
    %260 = vmatprep.subr.mxu0 0.0
    %261 = vmatpush1.msra.mxu0 0.0
    %262 = vmatprep.subr.mxu0 0.0
    %263 = vmatpush1.msra.mxu0 0.0
    %264 = vmatprep.mubr.f32.mxu0 0.0
    %265 = vmatmul.mubr.f32.gmra.mrb[0].mxu0 %v199
    %v266 = vpop.f32.mrb[0].mxu0
    %v267 = vadd.f32 0.0, %v266
    %v268 = vpop.f32.mrb[0].mxu0
    %269 = vdwg.mxu0
    %v270 = vstv %s122
    %v271 = vmul.f32 %v270, %v267
    %v272 = vadd.f32 %v126, %v271
    %v273 = vstv %s116
    %v274 = vmul.f32 %v273, %v267
    %v275 = vadd.f32 %v126, %v274
    %276 = vmatprep.subr.mxu0 0.0
    %277 = vmatpush1.msra.mxu0 %v77
    %278 = vmatprep.subr.mxu0 0.0
    %279 = vmatpush1.msra.mxu0 %v78
    %280 = vmatprep.subr.mxu0 0.0
    %281 = vmatpush1.msra.mxu0 %v79
    %282 = vmatprep.subr.mxu0 0.0
    %283 = vmatpush1.msra.mxu0 %v80
    %284 = vmatprep.subr.mxu0 0.0
    %285 = vmatpush1.msra.mxu0 %v81
    %286 = vmatprep.subr.mxu0 0.0
    %287 = vmatpush1.msra.mxu0 %v82
    %288 = vmatprep.subr.mxu0 0.0
    %289 = vmatpush1.msra.mxu0 %v83
    %290 = vmatprep.subr.mxu0 0.0
    %291 = vmatpush1.msra.mxu0 %v84
    %292 = vmatprep.subr.mxu0 0.0
    %293 = vmatpush1.msra.mxu0 %v85
    %294 = vmatprep.subr.mxu0 0.0
    %295 = vmatpush1.msra.mxu0 %v86
    %296 = vmatprep.subr.mxu0 0.0
    %297 = vmatpush1.msra.mxu0 %v87
    %298 = vmatprep.subr.mxu0 0.0
    %299 = vmatpush1.msra.mxu0 %v88
    %300 = vmatprep.subr.mxu0 0.0
    %301 = vmatpush1.msra.mxu0 %v89
    %302 = vmatprep.subr.mxu0 0.0
    %303 = vmatpush1.msra.mxu0 %v90
    %304 = vmatprep.subr.mxu0 0.0
    %305 = vmatpush1.msra.mxu0 %v91
    %306 = vmatprep.subr.mxu0 0.0
    %307 = vmatpush1.msra.mxu0 %v92
    %308 = vmatprep.subr.mxu0 0.0
    %309 = vmatpush1.msra.mxu0 0.0
    %310 = vmatprep.subr.mxu0 0.0
    %311 = vmatpush1.msra.mxu0 0.0
    %312 = vmatprep.subr.mxu0 0.0
    %313 = vmatpush1.msra.mxu0 0.0
    %314 = vmatprep.subr.mxu0 0.0
    %315 = vmatpush1.msra.mxu0 0.0
    %316 = vmatprep.subr.mxu0 0.0
    %317 = vmatpush1.msra.mxu0 0.0
    %318 = vmatprep.subr.mxu0 0.0
    %319 = vmatpush1.msra.mxu0 0.0
    %320 = vmatprep.subr.mxu0 0.0
    %321 = vmatpush1.msra.mxu0 0.0
    %322 = vmatprep.subr.mxu0 0.0
    %323 = vmatpush1.msra.mxu0 0.0
    %324 = vmatprep.subr.mxu0 0.0
    %325 = vmatpush1.msra.mxu0 0.0
    %326 = vmatprep.subr.mxu0 0.0
    %327 = vmatpush1.msra.mxu0 0.0
    %328 = vmatprep.subr.mxu0 0.0
    %329 = vmatpush1.msra.mxu0 0.0
    %330 = vmatprep.subr.mxu0 0.0
    %331 = vmatpush1.msra.mxu0 0.0
    %332 = vmatprep.subr.mxu0 0.0
    %333 = vmatpush1.msra.mxu0 0.0
    %334 = vmatprep.subr.mxu0 0.0
    %335 = vmatpush1.msra.mxu0 0.0
    %336 = vmatprep.subr.mxu0 0.0
    %337 = vmatpush1.msra.mxu0 0.0
    %338 = vmatprep.subr.mxu0 0.0
    %339 = vmatpush1.msra.mxu0 0.0
    %340 = vmatprep.mubr.f32.mxu0 0.0
    %341 = vmatmul.mubr.f32.gmra.mrb[0].mxu0 %v275
    %v342 = vpop.f32.mrb[0].mxu0
    %v343 = vadd.f32 0.0, %v342
    %v344 = vpop.f32.mrb[0].mxu0
    %345 = vdwg.mxu0
    %v346 = vtanh.pop %v343
    %v347 = vsel %vm127, 1.0, %v346
    %348 = vmatprep.subr.mxu0 0.0
    %349 = vmatpush1.msra.mxu0 %v93
    %350 = vmatprep.subr.mxu0 0.0
    %351 = vmatpush1.msra.mxu0 %v94
    %352 = vmatprep.subr.mxu0 0.0
    %353 = vmatpush1.msra.mxu0 %v95
    %354 = vmatprep.subr.mxu0 0.0
    %355 = vmatpush1.msra.mxu0 %v96
    %356 = vmatprep.subr.mxu0 0.0
    %357 = vmatpush1.msra.mxu0 %v97
    %358 = vmatprep.subr.mxu0 0.0
    %359 = vmatpush1.msra.mxu0 %v98
    %360 = vmatprep.subr.mxu0 0.0
    %361 = vmatpush1.msra.mxu0 %v99
    %362 = vmatprep.subr.mxu0 0.0
    %363 = vmatpush1.msra.mxu0 %v100
    %364 = vmatprep.subr.mxu0 0.0
    %365 = vmatpush1.msra.mxu0 %v101
    %366 = vmatprep.subr.mxu0 0.0
    %367 = vmatpush1.msra.mxu0 %v102
    %368 = vmatprep.subr.mxu0 0.0
    %369 = vmatpush1.msra.mxu0 %v103
    %370 = vmatprep.subr.mxu0 0.0
    %371 = vmatpush1.msra.mxu0 %v104
    %372 = vmatprep.subr.mxu0 0.0
    %373 = vmatpush1.msra.mxu0 %v105
    %374 = vmatprep.subr.mxu0 0.0
    %375 = vmatpush1.msra.mxu0 %v106
    %376 = vmatprep.subr.mxu0 0.0
    %377 = vmatpush1.msra.mxu0 %v107
    %378 = vmatprep.subr.mxu0 0.0
    %379 = vmatpush1.msra.mxu0 %v108
    %380 = vmatprep.subr.mxu0 0.0
    %381 = vmatpush1.msra.mxu0 0.0
    %382 = vmatprep.subr.mxu0 0.0
    %383 = vmatpush1.msra.mxu0 0.0
    %384 = vmatprep.subr.mxu0 0.0
    %385 = vmatpush1.msra.mxu0 0.0
    %386 = vmatprep.subr.mxu0 0.0
    %387 = vmatpush1.msra.mxu0 0.0
    %388 = vmatprep.subr.mxu0 0.0
    %389 = vmatpush1.msra.mxu0 0.0
    %390 = vmatprep.subr.mxu0 0.0
    %391 = vmatpush1.msra.mxu0 0.0
    %392 = vmatprep.subr.mxu0 0.0
    %393 = vmatpush1.msra.mxu0 0.0
    %394 = vmatprep.subr.mxu0 0.0
    %395 = vmatpush1.msra.mxu0 0.0
    %396 = vmatprep.subr.mxu0 0.0
    %397 = vmatpush1.msra.mxu0 0.0
    %398 = vmatprep.subr.mxu0 0.0
    %399 = vmatpush1.msra.mxu0 0.0
    %400 = vmatprep.subr.mxu0 0.0
    %401 = vmatpush1.msra.mxu0 0.0
    %402 = vmatprep.subr.mxu0 0.0
    %403 = vmatpush1.msra.mxu0 0.0
    %404 = vmatprep.subr.mxu0 0.0
    %405 = vmatpush1.msra.mxu0 0.0
    %406 = vmatprep.subr.mxu0 0.0
    %407 = vmatpush1.msra.mxu0 0.0
    %408 = vmatprep.subr.mxu0 0.0
    %409 = vmatpush1.msra.mxu0 0.0
    %410 = vmatprep.subr.mxu0 0.0
    %411 = vmatpush1.msra.mxu0 0.0
    %412 = vmatprep.mubr.f32.mxu0 0.0
    %413 = vmatmul.mubr.f32.gmra.mrb[0].mxu0 %v347
    %v414 = vpop.f32.mrb[0].mxu0
    %v415 = vadd.f32 0.0, %v414
    %v416 = vpop.f32.mrb[0].mxu0
    %417 = vdwg.mxu0
    %v418 = vstv %s119
    %v419 = vmul.f32 %v418, %v415
    %v420 = vadd.f32 %v272, %v419
    %v421 = vmul.f32 %v273, %v415
    %v422 = vadd.f32 %v126, %v421
    %423 = vmatprep.subr.mxu0 0.0
    %424 = vmatpush1.msra.mxu0 %v77
    %425 = vmatprep.subr.mxu0 0.0
    %426 = vmatpush1.msra.mxu0 %v78
    %427 = vmatprep.subr.mxu0 0.0
    %428 = vmatpush1.msra.mxu0 %v79
    %429 = vmatprep.subr.mxu0 0.0
    %430 = vmatpush1.msra.mxu0 %v80
    %431 = vmatprep.subr.mxu0 0.0
    %432 = vmatpush1.msra.mxu0 %v81
    %433 = vmatprep.subr.mxu0 0.0
    %434 = vmatpush1.msra.mxu0 %v82
    %435 = vmatprep.subr.mxu0 0.0
    %436 = vmatpush1.msra.mxu0 %v83
    %437 = vmatprep.subr.mxu0 0.0
    %438 = vmatpush1.msra.mxu0 %v84
    %439 = vmatprep.subr.mxu0 0.0
    %440 = vmatpush1.msra.mxu0 %v85
    %441 = vmatprep.subr.mxu0 0.0
    %442 = vmatpush1.msra.mxu0 %v86
    %443 = vmatprep.subr.mxu0 0.0
    %444 = vmatpush1.msra.mxu0 %v87
    %445 = vmatprep.subr.mxu0 0.0
    %446 = vmatpush1.msra.mxu0 %v88
    %447 = vmatprep.subr.mxu0 0.0
    %448 = vmatpush1.msra.mxu0 %v89
    %449 = vmatprep.subr.mxu0 0.0
    %450 = vmatpush1.msra.mxu0 %v90
    %451 = vmatprep.subr.mxu0 0.0
    %452 = vmatpush1.msra.mxu0 %v91
    %453 = vmatprep.subr.mxu0 0.0
    %454 = vmatpush1.msra.mxu0 %v92
    %455 = vmatprep.subr.mxu0 0.0
    %456 = vmatpush1.msra.mxu0 0.0
    %457 = vmatprep.subr.mxu0 0.0
    %458 = vmatpush1.msra.mxu0 0.0
    %459 = vmatprep.subr.mxu0 0.0
    %460 = vmatpush1.msra.mxu0 0.0
    %461 = vmatprep.subr.mxu0 0.0
    %462 = vmatpush1.msra.mxu0 0.0
    %463 = vmatprep.subr.mxu0 0.0
    %464 = vmatpush1.msra.mxu0 0.0
    %465 = vmatprep.subr.mxu0 0.0
    %466 = vmatpush1.msra.mxu0 0.0
    %467 = vmatprep.subr.mxu0 0.0
    %468 = vmatpush1.msra.mxu0 0.0
    %469 = vmatprep.subr.mxu0 0.0
    %470 = vmatpush1.msra.mxu0 0.0
    %471 = vmatprep.subr.mxu0 0.0
    %472 = vmatpush1.msra.mxu0 0.0
    %473 = vmatprep.subr.mxu0 0.0
    %474 = vmatpush1.msra.mxu0 0.0
    %475 = vmatprep.subr.mxu0 0.0
    %476 = vmatpush1.msra.mxu0 0.0
    %477 = vmatprep.subr.mxu0 0.0
    %478 = vmatpush1.msra.mxu0 0.0
    %479 = vmatprep.subr.mxu0 0.0
    %480 = vmatpush1.msra.mxu0 0.0
    %481 = vmatprep.subr.mxu0 0.0
    %482 = vmatpush1.msra.mxu0 0.0
    %483 = vmatprep.subr.mxu0 0.0
    %484 = vmatpush1.msra.mxu0 0.0
    %485 = vmatprep.subr.mxu0 0.0
    %486 = vmatpush1.msra.mxu0 0.0
    %487 = vmatprep.mubr.f32.mxu0 0.0
    %488 = vmatmul.mubr.f32.gmra.mrb[0].mxu0 %v422
    %v489 = vpop.f32.mrb[0].mxu0
    %v490 = vadd.f32 0.0, %v489
    %v491 = vpop.f32.mrb[0].mxu0
    %492 = vdwg.mxu0
    %v493 = vtanh.pop %v490
    %v494 = vsel %vm127, 1.0, %v493
    %495 = vmatprep.subr.mxu0 0.0
    %496 = vmatpush1.msra.mxu0 %v93
    %497 = vmatprep.subr.mxu0 0.0
    %498 = vmatpush1.msra.mxu0 %v94
    %499 = vmatprep.subr.mxu0 0.0
    %500 = vmatpush1.msra.mxu0 %v95
    %501 = vmatprep.subr.mxu0 0.0
    %502 = vmatpush1.msra.mxu0 %v96
    %503 = vmatprep.subr.mxu0 0.0
    %504 = vmatpush1.msra.mxu0 %v97
    %505 = vmatprep.subr.mxu0 0.0
    %506 = vmatpush1.msra.mxu0 %v98
    %507 = vmatprep.subr.mxu0 0.0
    %508 = vmatpush1.msra.mxu0 %v99
    %509 = vmatprep.subr.mxu0 0.0
    %510 = vmatpush1.msra.mxu0 %v100
    %511 = vmatprep.subr.mxu0 0.0
    %512 = vmatpush1.msra.mxu0 %v101
    %513 = vmatprep.subr.mxu0 0.0
    %514 = vmatpush1.msra.mxu0 %v102
    %515 = vmatprep.subr.mxu0 0.0
    %516 = vmatpush1.msra.mxu0 %v103
    %517 = vmatprep.subr.mxu0 0.0
    %518 = vmatpush1.msra.mxu0 %v104
    %519 = vmatprep.subr.mxu0 0.0
    %520 = vmatpush1.msra.mxu0 %v105
    %521 = vmatprep.subr.mxu0 0.0
    %522 = vmatpush1.msra.mxu0 %v106
    %523 = vmatprep.subr.mxu0 0.0
    %524 = vmatpush1.msra.mxu0 %v107
    %525 = vmatprep.subr.mxu0 0.0
    %526 = vmatpush1.msra.mxu0 %v108
    %527 = vmatprep.subr.mxu0 0.0
    %528 = vmatpush1.msra.mxu0 0.0
    %529 = vmatprep.subr.mxu0 0.0
    %530 = vmatpush1.msra.mxu0 0.0
    %531 = vmatprep.subr.mxu0 0.0
    %532 = vmatpush1.msra.mxu0 0.0
    %533 = vmatprep.subr.mxu0 0.0
    %534 = vmatpush1.msra.mxu0 0.0
    %535 = vmatprep.subr.mxu0 0.0
    %536 = vmatpush1.msra.mxu0 0.0
    %537 = vmatprep.subr.mxu0 0.0
    %538 = vmatpush1.msra.mxu0 0.0
    %539 = vmatprep.subr.mxu0 0.0
    %540 = vmatpush1.msra.mxu0 0.0
    %541 = vmatprep.subr.mxu0 0.0
    %542 = vmatpush1.msra.mxu0 0.0
    %543 = vmatprep.subr.mxu0 0.0
    %544 = vmatpush1.msra.mxu0 0.0
    %545 = vmatprep.subr.mxu0 0.0
    %546 = vmatpush1.msra.mxu0 0.0
    %547 = vmatprep.subr.mxu0 0.0
    %548 = vmatpush1.msra.mxu0 0.0
    %549 = vmatprep.subr.mxu0 0.0
    %550 = vmatpush1.msra.mxu0 0.0
    %551 = vmatprep.subr.mxu0 0.0
    %552 = vmatpush1.msra.mxu0 0.0
    %553 = vmatprep.subr.mxu0 0.0
    %554 = vmatpush1.msra.mxu0 0.0
    %555 = vmatprep.subr.mxu0 0.0
    %556 = vmatpush1.msra.mxu0 0.0
    %557 = vmatprep.subr.mxu0 0.0
    %558 = vmatpush1.msra.mxu0 0.0
    %559 = vmatprep.mubr.f32.mxu0 0.0
    %560 = vmatmul.mubr.f32.gmra.mrb[0].mxu0 %v494
    %v561 = vpop.f32.mrb[0].mxu0
    %v562 = vadd.f32 0.0, %v561
    %v563 = vpop.f32.mrb[0].mxu0
    %564 = vdwg.mxu0
    %v565 = vmul.f32 %v418, %v562
    %v566 = vadd.f32 %v420, %v565
    %v567 = vstv %s115
    %v568 = vmul.f32 %v567, %v562
    %v569 = vadd.f32 %v126, %v568
    %570 = vmatprep.subr.mxu0 0.0
    %571 = vmatpush1.msra.mxu0 %v77
    %572 = vmatprep.subr.mxu0 0.0
    %573 = vmatpush1.msra.mxu0 %v78
    %574 = vmatprep.subr.mxu0 0.0
    %575 = vmatpush1.msra.mxu0 %v79
    %576 = vmatprep.subr.mxu0 0.0
    %577 = vmatpush1.msra.mxu0 %v80
    %578 = vmatprep.subr.mxu0 0.0
    %579 = vmatpush1.msra.mxu0 %v81
    %580 = vmatprep.subr.mxu0 0.0
    %581 = vmatpush1.msra.mxu0 %v82
    %582 = vmatprep.subr.mxu0 0.0
    %583 = vmatpush1.msra.mxu0 %v83
    %584 = vmatprep.subr.mxu0 0.0
    %585 = vmatpush1.msra.mxu0 %v84
    %586 = vmatprep.subr.mxu0 0.0
    %587 = vmatpush1.msra.mxu0 %v85
    %588 = vmatprep.subr.mxu0 0.0
    %589 = vmatpush1.msra.mxu0 %v86
    %590 = vmatprep.subr.mxu0 0.0
    %591 = vmatpush1.msra.mxu0 %v87
    %592 = vmatprep.subr.mxu0 0.0
    %593 = vmatpush1.msra.mxu0 %v88
    %594 = vmatprep.subr.mxu0 0.0
    %595 = vmatpush1.msra.mxu0 %v89
    %596 = vmatprep.subr.mxu0 0.0
    %597 = vmatpush1.msra.mxu0 %v90
    %598 = vmatprep.subr.mxu0 0.0
    %599 = vmatpush1.msra.mxu0 %v91
    %600 = vmatprep.subr.mxu0 0.0
    %601 = vmatpush1.msra.mxu0 %v92
    %602 = vmatprep.subr.mxu0 0.0
    %603 = vmatpush1.msra.mxu0 0.0
    %604 = vmatprep.subr.mxu0 0.0
    %605 = vmatpush1.msra.mxu0 0.0
    %606 = vmatprep.subr.mxu0 0.0
    %607 = vmatpush1.msra.mxu0 0.0
    %608 = vmatprep.subr.mxu0 0.0
    %609 = vmatpush1.msra.mxu0 0.0
    %610 = vmatprep.subr.mxu0 0.0
    %611 = vmatpush1.msra.mxu0 0.0
    %612 = vmatprep.subr.mxu0 0.0
    %613 = vmatpush1.msra.mxu0 0.0
    %614 = vmatprep.subr.mxu0 0.0
    %615 = vmatpush1.msra.mxu0 0.0
    %616 = vmatprep.subr.mxu0 0.0
    %617 = vmatpush1.msra.mxu0 0.0
    %618 = vmatprep.subr.mxu0 0.0
    %619 = vmatpush1.msra.mxu0 0.0
    %620 = vmatprep.subr.mxu0 0.0
    %621 = vmatpush1.msra.mxu0 0.0
    %622 = vmatprep.subr.mxu0 0.0
    %623 = vmatpush1.msra.mxu0 0.0
    %624 = vmatprep.subr.mxu0 0.0
    %625 = vmatpush1.msra.mxu0 0.0
    %626 = vmatprep.subr.mxu0 0.0
    %627 = vmatpush1.msra.mxu0 0.0
    %628 = vmatprep.subr.mxu0 0.0
    %629 = vmatpush1.msra.mxu0 0.0
    %630 = vmatprep.subr.mxu0 0.0
    %631 = vmatpush1.msra.mxu0 0.0
    %632 = vmatprep.subr.mxu0 0.0
    %633 = vmatpush1.msra.mxu0 0.0
    %634 = vmatprep.mubr.f32.mxu0 0.0
    %635 = vmatmul.mubr.f32.gmra.mrb[0].mxu0 %v569
    %v636 = vpop.f32.mrb[0].mxu0
    %v637 = vadd.f32 0.0, %v636
    %v638 = vpop.f32.mrb[0].mxu0
    %639 = vdwg.mxu0
    %v640 = vtanh.pop %v637
    %v641 = vsel %vm127, 1.0, %v640
    %642 = vmatprep.subr.mxu0 0.0
    %643 = vmatpush1.msra.mxu0 %v93
    %644 = vmatprep.subr.mxu0 0.0
    %645 = vmatpush1.msra.mxu0 %v94
    %646 = vmatprep.subr.mxu0 0.0
    %647 = vmatpush1.msra.mxu0 %v95
    %648 = vmatprep.subr.mxu0 0.0
    %649 = vmatpush1.msra.mxu0 %v96
    %650 = vmatprep.subr.mxu0 0.0
    %651 = vmatpush1.msra.mxu0 %v97
    %652 = vmatprep.subr.mxu0 0.0
    %653 = vmatpush1.msra.mxu0 %v98
    %654 = vmatprep.subr.mxu0 0.0
    %655 = vmatpush1.msra.mxu0 %v99
    %656 = vmatprep.subr.mxu0 0.0
    %657 = vmatpush1.msra.mxu0 %v100
    %658 = vmatprep.subr.mxu0 0.0
    %659 = vmatpush1.msra.mxu0 %v101
    %660 = vmatprep.subr.mxu0 0.0
    %661 = vmatpush1.msra.mxu0 %v102
    %662 = vmatprep.subr.mxu0 0.0
    %663 = vmatpush1.msra.mxu0 %v103
    %664 = vmatprep.subr.mxu0 0.0
    %665 = vmatpush1.msra.mxu0 %v104
    %666 = vmatprep.subr.mxu0 0.0
    %667 = vmatpush1.msra.mxu0 %v105
    %668 = vmatprep.subr.mxu0 0.0
    %669 = vmatpush1.msra.mxu0 %v106
    %670 = vmatprep.subr.mxu0 0.0
    %671 = vmatpush1.msra.mxu0 %v107
    %672 = vmatprep.subr.mxu0 0.0
    %673 = vmatpush1.msra.mxu0 %v108
    %674 = vmatprep.subr.mxu0 0.0
    %675 = vmatpush1.msra.mxu0 0.0
    %676 = vmatprep.subr.mxu0 0.0
    %677 = vmatpush1.msra.mxu0 0.0
    %678 = vmatprep.subr.mxu0 0.0
    %679 = vmatpush1.msra.mxu0 0.0
    %680 = vmatprep.subr.mxu0 0.0
    %681 = vmatpush1.msra.mxu0 0.0
    %682 = vmatprep.subr.mxu0 0.0
    %683 = vmatpush1.msra.mxu0 0.0
    %684 = vmatprep.subr.mxu0 0.0
    %685 = vmatpush1.msra.mxu0 0.0
    %686 = vmatprep.subr.mxu0 0.0
    %687 = vmatpush1.msra.mxu0 0.0
    %688 = vmatprep.subr.mxu0 0.0
    %689 = vmatpush1.msra.mxu0 0.0
    %690 = vmatprep.subr.mxu0 0.0
    %691 = vmatpush1.msra.mxu0 0.0
    %692 = vmatprep.subr.mxu0 0.0
    %693 = vmatpush1.msra.mxu0 0.0
    %694 = vmatprep.subr.mxu0 0.0
    %695 = vmatpush1.msra.mxu0 0.0
    %696 = vmatprep.subr.mxu0 0.0
    %697 = vmatpush1.msra.mxu0 0.0
    %698 = vmatprep.subr.mxu0 0.0
    %699 = vmatpush1.msra.mxu0 0.0
    %700 = vmatprep.subr.mxu0 0.0
    %701 = vmatpush1.msra.mxu0 0.0
    %702 = vmatprep.subr.mxu0 0.0
    %703 = vmatpush1.msra.mxu0 0.0
    %704 = vmatprep.subr.mxu0 0.0
    %705 = vmatpush1.msra.mxu0 0.0
    %706 = vmatprep.mubr.f32.mxu0 0.0
    %707 = vmatmul.mubr.f32.gmra.mrb[0].mxu0 %v641
    %v708 = vpop.f32.mrb[0].mxu0
    %v709 = vadd.f32 0.0, %v708
    %v710 = vpop.f32.mrb[0].mxu0
    %711 = vdwg.mxu0
    %v712 = vmul.f32 %v270, %v709
    %v713 = vadd.f32 %v566, %v712
    %714 = vmatprep.subr.mxu0 0.0
    %715 = vmatpush1.msra.mxu0 %v77
    %716 = vmatprep.subr.mxu0 0.0
    %717 = vmatpush1.msra.mxu0 %v78
    %718 = vmatprep.subr.mxu0 0.0
    %719 = vmatpush1.msra.mxu0 %v79
    %720 = vmatprep.subr.mxu0 0.0
    %721 = vmatpush1.msra.mxu0 %v80
    %722 = vmatprep.subr.mxu0 0.0
    %723 = vmatpush1.msra.mxu0 %v81
    %724 = vmatprep.subr.mxu0 0.0
    %725 = vmatpush1.msra.mxu0 %v82
    %726 = vmatprep.subr.mxu0 0.0
    %727 = vmatpush1.msra.mxu0 %v83
    %728 = vmatprep.subr.mxu0 0.0
    %729 = vmatpush1.msra.mxu0 %v84
    %730 = vmatprep.subr.mxu0 0.0
    %731 = vmatpush1.msra.mxu0 %v85
    %732 = vmatprep.subr.mxu0 0.0
    %733 = vmatpush1.msra.mxu0 %v86
    %734 = vmatprep.subr.mxu0 0.0
    %735 = vmatpush1.msra.mxu0 %v87
    %736 = vmatprep.subr.mxu0 0.0
    %737 = vmatpush1.msra.mxu0 %v88
    %738 = vmatprep.subr.mxu0 0.0
    %739 = vmatpush1.msra.mxu0 %v89
    %740 = vmatprep.subr.mxu0 0.0
    %741 = vmatpush1.msra.mxu0 %v90
    %742 = vmatprep.subr.mxu0 0.0
    %743 = vmatpush1.msra.mxu0 %v91
    %744 = vmatprep.subr.mxu0 0.0
    %745 = vmatpush1.msra.mxu0 %v92
    %746 = vmatprep.subr.mxu0 0.0
    %747 = vmatpush1.msra.mxu0 0.0
    %748 = vmatprep.subr.mxu0 0.0
    %749 = vmatpush1.msra.mxu0 0.0
    %750 = vmatprep.subr.mxu0 0.0
    %751 = vmatpush1.msra.mxu0 0.0
    %752 = vmatprep.subr.mxu0 0.0
    %753 = vmatpush1.msra.mxu0 0.0
    %754 = vmatprep.subr.mxu0 0.0
    %755 = vmatpush1.msra.mxu0 0.0
    %756 = vmatprep.subr.mxu0 0.0
    %757 = vmatpush1.msra.mxu0 0.0
    %758 = vmatprep.subr.mxu0 0.0
    %759 = vmatpush1.msra.mxu0 0.0
    %760 = vmatprep.subr.mxu0 0.0
    %761 = vmatpush1.msra.mxu0 0.0
    %762 = vmatprep.subr.mxu0 0.0
    %763 = vmatpush1.msra.mxu0 0.0
    %764 = vmatprep.subr.mxu0 0.0
    %765 = vmatpush1.msra.mxu0 0.0
    %766 = vmatprep.subr.mxu0 0.0
    %767 = vmatpush1.msra.mxu0 0.0
    %768 = vmatprep.subr.mxu0 0.0
    %769 = vmatpush1.msra.mxu0 0.0
    %770 = vmatprep.subr.mxu0 0.0
    %771 = vmatpush1.msra.mxu0 0.0
    %772 = vmatprep.subr.mxu0 0.0
    %773 = vmatpush1.msra.mxu0 0.0
    %774 = vmatprep.subr.mxu0 0.0
    %775 = vmatpush1.msra.mxu0 0.0
    %776 = vmatprep.subr.mxu0 0.0
    %777 = vmatpush1.msra.mxu0 0.0
    %778 = vmatprep.mubr.f32.mxu0 0.0
    %779 = vmatmul.mubr.f32.gmra.mrb[0].mxu0 %v713
    %v780 = vpop.f32.mrb[0].mxu0
    %v781 = vadd.f32 0.0, %v780
    %v782 = vpop.f32.mrb[0].mxu0
    %783 = vdwg.mxu0
    %v784 = vtanh.pop %v781
    %v785 = vsel %vm127, 1.0, %v784
    %786 = vmatprep.subr.mxu0 0.0
    %787 = vmatpush1.msra.mxu0 %v93
    %788 = vmatprep.subr.mxu0 0.0
    %789 = vmatpush1.msra.mxu0 %v94
    %790 = vmatprep.subr.mxu0 0.0
    %791 = vmatpush1.msra.mxu0 %v95
    %792 = vmatprep.subr.mxu0 0.0
    %793 = vmatpush1.msra.mxu0 %v96
    %794 = vmatprep.subr.mxu0 0.0
    %795 = vmatpush1.msra.mxu0 %v97
    %796 = vmatprep.subr.mxu0 0.0
    %797 = vmatpush1.msra.mxu0 %v98
    %798 = vmatprep.subr.mxu0 0.0
    %799 = vmatpush1.msra.mxu0 %v99
    %800 = vmatprep.subr.mxu0 0.0
    %801 = vmatpush1.msra.mxu0 %v100
    %802 = vmatprep.subr.mxu0 0.0
    %803 = vmatpush1.msra.mxu0 %v101
    %804 = vmatprep.subr.mxu0 0.0
    %805 = vmatpush1.msra.mxu0 %v102
    %806 = vmatprep.subr.mxu0 0.0
    %807 = vmatpush1.msra.mxu0 %v103
    %808 = vmatprep.subr.mxu0 0.0
    %809 = vmatpush1.msra.mxu0 %v104
    %810 = vmatprep.subr.mxu0 0.0
    %811 = vmatpush1.msra.mxu0 %v105
    %812 = vmatprep.subr.mxu0 0.0
    %813 = vmatpush1.msra.mxu0 %v106
    %814 = vmatprep.subr.mxu0 0.0
    %815 = vmatpush1.msra.mxu0 %v107
    %816 = vmatprep.subr.mxu0 0.0
    %817 = vmatpush1.msra.mxu0 %v108
    %818 = vmatprep.subr.mxu0 0.0
    %819 = vmatpush1.msra.mxu0 0.0
    %820 = vmatprep.subr.mxu0 0.0
    %821 = vmatpush1.msra.mxu0 0.0
    %822 = vmatprep.subr.mxu0 0.0
    %823 = vmatpush1.msra.mxu0 0.0
    %824 = vmatprep.subr.mxu0 0.0
    %825 = vmatpush1.msra.mxu0 0.0
    %826 = vmatprep.subr.mxu0 0.0
    %827 = vmatpush1.msra.mxu0 0.0
    %828 = vmatprep.subr.mxu0 0.0
    %829 = vmatpush1.msra.mxu0 0.0
    %830 = vmatprep.subr.mxu0 0.0
    %831 = vmatpush1.msra.mxu0 0.0
    %832 = vmatprep.subr.mxu0 0.0
    %833 = vmatpush1.msra.mxu0 0.0
    %834 = vmatprep.subr.mxu0 0.0
    %835 = vmatpush1.msra.mxu0 0.0
    %836 = vmatprep.subr.mxu0 0.0
    %837 = vmatpush1.msra.mxu0 0.0
    %838 = vmatprep.subr.mxu0 0.0
    %839 = vmatpush1.msra.mxu0 0.0
    %840 = vmatprep.subr.mxu0 0.0
    %841 = vmatpush1.msra.mxu0 0.0
    %842 = vmatprep.subr.mxu0 0.0
    %843 = vmatpush1.msra.mxu0 0.0
    %844 = vmatprep.subr.mxu0 0.0
    %845 = vmatpush1.msra.mxu0 0.0
    %846 = vmatprep.subr.mxu0 0.0
    %847 = vmatpush1.msra.mxu0 0.0
    %848 = vmatprep.subr.mxu0 0.0
    %849 = vmatpush1.msra.mxu0 0.0
    %850 = vmatprep.mubr.f32.mxu0 0.0
    %851 = vmatmul.mubr.f32.gmra.mrb[0].mxu0 %v785
    %v852 = vpop.f32.mrb[0].mxu0
    %v853 = vadd.f32 0.0, %v852
    %v854 = vpop.f32.mrb[0].mxu0
    %855 = vdwg.mxu0
    %v856 = vmul.f32 %v270, %v853
    %v857 = vadd.f32 %v713, %v856
    %v858 = vmul.f32 %v273, %v853
    %v859 = vadd.f32 %v713, %v858
    %860 = vmatprep.subr.mxu0 0.0
    %861 = vmatpush1.msra.mxu0 %v77
    %862 = vmatprep.subr.mxu0 0.0
    %863 = vmatpush1.msra.mxu0 %v78
    %864 = vmatprep.subr.mxu0 0.0
    %865 = vmatpush1.msra.mxu0 %v79
    %866 = vmatprep.subr.mxu0 0.0
    %867 = vmatpush1.msra.mxu0 %v80
    %868 = vmatprep.subr.mxu0 0.0
    %869 = vmatpush1.msra.mxu0 %v81
    %870 = vmatprep.subr.mxu0 0.0
    %871 = vmatpush1.msra.mxu0 %v82
    %872 = vmatprep.subr.mxu0 0.0
    %873 = vmatpush1.msra.mxu0 %v83
    %874 = vmatprep.subr.mxu0 0.0
    %875 = vmatpush1.msra.mxu0 %v84
    %876 = vmatprep.subr.mxu0 0.0
    %877 = vmatpush1.msra.mxu0 %v85
    %878 = vmatprep.subr.mxu0 0.0
    %879 = vmatpush1.msra.mxu0 %v86
    %880 = vmatprep.subr.mxu0 0.0
    %881 = vmatpush1.msra.mxu0 %v87
    %882 = vmatprep.subr.mxu0 0.0
    %883 = vmatpush1.msra.mxu0 %v88
    %884 = vmatprep.subr.mxu0 0.0
    %885 = vmatpush1.msra.mxu0 %v89
    %886 = vmatprep.subr.mxu0 0.0
    %887 = vmatpush1.msra.mxu0 %v90
    %888 = vmatprep.subr.mxu0 0.0
    %889 = vmatpush1.msra.mxu0 %v91
    %890 = vmatprep.subr.mxu0 0.0
    %891 = vmatpush1.msra.mxu0 %v92
    %892 = vmatprep.subr.mxu0 0.0
    %893 = vmatpush1.msra.mxu0 0.0
    %894 = vmatprep.subr.mxu0 0.0
    %895 = vmatpush1.msra.mxu0 0.0
    %896 = vmatprep.subr.mxu0 0.0
    %897 = vmatpush1.msra.mxu0 0.0
    %898 = vmatprep.subr.mxu0 0.0
    %899 = vmatpush1.msra.mxu0 0.0
    %900 = vmatprep.subr.mxu0 0.0
    %901 = vmatpush1.msra.mxu0 0.0
    %902 = vmatprep.subr.mxu0 0.0
    %903 = vmatpush1.msra.mxu0 0.0
    %904 = vmatprep.subr.mxu0 0.0
    %905 = vmatpush1.msra.mxu0 0.0
    %906 = vmatprep.subr.mxu0 0.0
    %907 = vmatpush1.msra.mxu0 0.0
    %908 = vmatprep.subr.mxu0 0.0
    %909 = vmatpush1.msra.mxu0 0.0
    %910 = vmatprep.subr.mxu0 0.0
    %911 = vmatpush1.msra.mxu0 0.0
    %912 = vmatprep.subr.mxu0 0.0
    %913 = vmatpush1.msra.mxu0 0.0
    %914 = vmatprep.subr.mxu0 0.0
    %915 = vmatpush1.msra.mxu0 0.0
    %916 = vmatprep.subr.mxu0 0.0
    %917 = vmatpush1.msra.mxu0 0.0
    %918 = vmatprep.subr.mxu0 0.0
    %919 = vmatpush1.msra.mxu0 0.0
    %920 = vmatprep.subr.mxu0 0.0
    %921 = vmatpush1.msra.mxu0 0.0
    %922 = vmatprep.subr.mxu0 0.0
    %923 = vmatpush1.msra.mxu0 0.0
    %924 = vmatprep.mubr.f32.mxu0 0.0
    %925 = vmatmul.mubr.f32.gmra.mrb[0].mxu0 %v859
    %v926 = vpop.f32.mrb[0].mxu0
    %v927 = vadd.f32 0.0, %v926
    %v928 = vpop.f32.mrb[0].mxu0
    %929 = vdwg.mxu0
    %v930 = vtanh.pop %v927
    %v931 = vsel %vm127, 1.0, %v930
    %932 = vmatprep.subr.mxu0 0.0
    %933 = vmatpush1.msra.mxu0 %v93
    %934 = vmatprep.subr.mxu0 0.0
    %935 = vmatpush1.msra.mxu0 %v94
    %936 = vmatprep.subr.mxu0 0.0
    %937 = vmatpush1.msra.mxu0 %v95
    %938 = vmatprep.subr.mxu0 0.0
    %939 = vmatpush1.msra.mxu0 %v96
    %940 = vmatprep.subr.mxu0 0.0
    %941 = vmatpush1.msra.mxu0 %v97
    %942 = vmatprep.subr.mxu0 0.0
    %943 = vmatpush1.msra.mxu0 %v98
    %944 = vmatprep.subr.mxu0 0.0
    %945 = vmatpush1.msra.mxu0 %v99
    %946 = vmatprep.subr.mxu0 0.0
    %947 = vmatpush1.msra.mxu0 %v100
    %948 = vmatprep.subr.mxu0 0.0
    %949 = vmatpush1.msra.mxu0 %v101
    %950 = vmatprep.subr.mxu0 0.0
    %951 = vmatpush1.msra.mxu0 %v102
    %952 = vmatprep.subr.mxu0 0.0
    %953 = vmatpush1.msra.mxu0 %v103
    %954 = vmatprep.subr.mxu0 0.0
    %955 = vmatpush1.msra.mxu0 %v104
    %956 = vmatprep.subr.mxu0 0.0
    %957 = vmatpush1.msra.mxu0 %v105
    %958 = vmatprep.subr.mxu0 0.0
    %959 = vmatpush1.msra.mxu0 %v106
    %960 = vmatprep.subr.mxu0 0.0
    %961 = vmatpush1.msra.mxu0 %v107
    %962 = vmatprep.subr.mxu0 0.0
    %963 = vmatpush1.msra.mxu0 %v108
    %964 = vmatprep.subr.mxu0 0.0
    %965 = vmatpush1.msra.mxu0 0.0
    %966 = vmatprep.subr.mxu0 0.0
    %967 = vmatpush1.msra.mxu0 0.0
    %968 = vmatprep.subr.mxu0 0.0
    %969 = vmatpush1.msra.mxu0 0.0
    %970 = vmatprep.subr.mxu0 0.0
    %971 = vmatpush1.msra.mxu0 0.0
    %972 = vmatprep.subr.mxu0 0.0
    %973 = vmatpush1.msra.mxu0 0.0
    %974 = vmatprep.subr.mxu0 0.0
    %975 = vmatpush1.msra.mxu0 0.0
    %976 = vmatprep.subr.mxu0 0.0
    %977 = vmatpush1.msra.mxu0 0.0
    %978 = vmatprep.subr.mxu0 0.0
    %979 = vmatpush1.msra.mxu0 0.0
    %980 = vmatprep.subr.mxu0 0.0
    %981 = vmatpush1.msra.mxu0 0.0
    %982 = vmatprep.subr.mxu0 0.0
    %983 = vmatpush1.msra.mxu0 0.0
    %984 = vmatprep.subr.mxu0 0.0
    %985 = vmatpush1.msra.mxu0 0.0
    %986 = vmatprep.subr.mxu0 0.0
    %987 = vmatpush1.msra.mxu0 0.0
    %988 = vmatprep.subr.mxu0 0.0
    %989 = vmatpush1.msra.mxu0 0.0
    %990 = vmatprep.subr.mxu0 0.0
    %991 = vmatpush1.msra.mxu0 0.0
    %992 = vmatprep.subr.mxu0 0.0
    %993 = vmatpush1.msra.mxu0 0.0
    %994 = vmatprep.subr.mxu0 0.0
    %995 = vmatpush1.msra.mxu0 0.0
    %996 = vmatprep.mubr.f32.mxu0 0.0
    %997 = vmatmul.mubr.f32.gmra.mrb[0].mxu0 %v931
    %v998 = vpop.f32.mrb[0].mxu0
    %v999 = vadd.f32 0.0, %v998
    %v1000 = vpop.f32.mrb[0].mxu0
    %1001 = vdwg.mxu0
    %v1002 = vmul.f32 %v418, %v999
    %v1003 = vadd.f32 %v857, %v1002
    %v1004 = vmul.f32 %v273, %v999
    %v1005 = vadd.f32 %v713, %v1004
    %1006 = vmatprep.subr.mxu0 0.0
    %1007 = vmatpush1.msra.mxu0 %v77
    %1008 = vmatprep.subr.mxu0 0.0
    %1009 = vmatpush1.msra.mxu0 %v78
    %1010 = vmatprep.subr.mxu0 0.0
    %1011 = vmatpush1.msra.mxu0 %v79
    %1012 = vmatprep.subr.mxu0 0.0
    %1013 = vmatpush1.msra.mxu0 %v80
    %1014 = vmatprep.subr.mxu0 0.0
    %1015 = vmatpush1.msra.mxu0 %v81
    %1016 = vmatprep.subr.mxu0 0.0
    %1017 = vmatpush1.msra.mxu0 %v82
    %1018 = vmatprep.subr.mxu0 0.0
    %1019 = vmatpush1.msra.mxu0 %v83
    %1020 = vmatprep.subr.mxu0 0.0
    %1021 = vmatpush1.msra.mxu0 %v84
    %1022 = vmatprep.subr.mxu0 0.0
    %1023 = vmatpush1.msra.mxu0 %v85
    %1024 = vmatprep.subr.mxu0 0.0
    %1025 = vmatpush1.msra.mxu0 %v86
    %1026 = vmatprep.subr.mxu0 0.0
    %1027 = vmatpush1.msra.mxu0 %v87
    %1028 = vmatprep.subr.mxu0 0.0
    %1029 = vmatpush1.msra.mxu0 %v88
    %1030 = vmatprep.subr.mxu0 0.0
    %1031 = vmatpush1.msra.mxu0 %v89
    %1032 = vmatprep.subr.mxu0 0.0
    %1033 = vmatpush1.msra.mxu0 %v90
    %1034 = vmatprep.subr.mxu0 0.0
    %1035 = vmatpush1.msra.mxu0 %v91
    %1036 = vmatprep.subr.mxu0 0.0
    %1037 = vmatpush1.msra.mxu0 %v92
    %1038 = vmatprep.subr.mxu0 0.0
    %1039 = vmatpush1.msra.mxu0 0.0
    %1040 = vmatprep.subr.mxu0 0.0
    %1041 = vmatpush1.msra.mxu0 0.0
    %1042 = vmatprep.subr.mxu0 0.0
    %1043 = vmatpush1.msra.mxu0 0.0
    %1044 = vmatprep.subr.mxu0 0.0
    %1045 = vmatpush1.msra.mxu0 0.0
    %1046 = vmatprep.subr.mxu0 0.0
    %1047 = vmatpush1.msra.mxu0 0.0
    %1048 = vmatprep.subr.mxu0 0.0
    %1049 = vmatpush1.msra.mxu0 0.0
    %1050 = vmatprep.subr.mxu0 0.0
    %1051 = vmatpush1.msra.mxu0 0.0
    %1052 = vmatprep.subr.mxu0 0.0
    %1053 = vmatpush1.msra.mxu0 0.0
    %1054 = vmatprep.subr.mxu0 0.0
    %1055 = vmatpush1.msra.mxu0 0.0
    %1056 = vmatprep.subr.mxu0 0.0
    %1057 = vmatpush1.msra.mxu0 0.0
    %1058 = vmatprep.subr.mxu0 0.0
    %1059 = vmatpush1.msra.mxu0 0.0
    %1060 = vmatprep.subr.mxu0 0.0
    %1061 = vmatpush1.msra.mxu0 0.0
    %1062 = vmatprep.subr.mxu0 0.0
    %1063 = vmatpush1.msra.mxu0 0.0
    %1064 = vmatprep.subr.mxu0 0.0
    %1065 = vmatpush1.msra.mxu0 0.0
    %1066 = vmatprep.subr.mxu0 0.0
    %1067 = vmatpush1.msra.mxu0 0.0
    %1068 = vmatprep.subr.mxu0 0.0
    %1069 = vmatpush1.msra.mxu0 0.0
    %1070 = vmatprep.mubr.f32.mxu0 0.0
    %1071 = vmatmul.mubr.f32.gmra.mrb[0].mxu0 %v1005
    %v1072 = vpop.f32.mrb[0].mxu0
    %v1073 = vadd.f32 0.0, %v1072
    %v1074 = vpop.f32.mrb[0].mxu0
    %1075 = vdwg.mxu0
    %v1076 = vtanh.pop %v1073
    %v1077 = vsel %vm127, 1.0, %v1076
    %1078 = vmatprep.subr.mxu0 0.0
    %1079 = vmatpush1.msra.mxu0 %v93
    %1080 = vmatprep.subr.mxu0 0.0
    %1081 = vmatpush1.msra.mxu0 %v94
    %1082 = vmatprep.subr.mxu0 0.0
    %1083 = vmatpush1.msra.mxu0 %v95
    %1084 = vmatprep.subr.mxu0 0.0
    %1085 = vmatpush1.msra.mxu0 %v96
    %1086 = vmatprep.subr.mxu0 0.0
    %1087 = vmatpush1.msra.mxu0 %v97
    %1088 = vmatprep.subr.mxu0 0.0
    %1089 = vmatpush1.msra.mxu0 %v98
    %1090 = vmatprep.subr.mxu0 0.0
    %1091 = vmatpush1.msra.mxu0 %v99
    %1092 = vmatprep.subr.mxu0 0.0
    %1093 = vmatpush1.msra.mxu0 %v100
    %1094 = vmatprep.subr.mxu0 0.0
    %1095 = vmatpush1.msra.mxu0 %v101
    %1096 = vmatprep.subr.mxu0 0.0
    %1097 = vmatpush1.msra.mxu0 %v102
    %1098 = vmatprep.subr.mxu0 0.0
    %1099 = vmatpush1.msra.mxu0 %v103
    %1100 = vmatprep.subr.mxu0 0.0
    %1101 = vmatpush1.msra.mxu0 %v104
    %1102 = vmatprep.subr.mxu0 0.0
    %1103 = vmatpush1.msra.mxu0 %v105
    %1104 = vmatprep.subr.mxu0 0.0
    %1105 = vmatpush1.msra.mxu0 %v106
    %1106 = vmatprep.subr.mxu0 0.0
    %1107 = vmatpush1.msra.mxu0 %v107
    %1108 = vmatprep.subr.mxu0 0.0
    %1109 = vmatpush1.msra.mxu0 %v108
    %1110 = vmatprep.subr.mxu0 0.0
    %1111 = vmatpush1.msra.mxu0 0.0
    %1112 = vmatprep.subr.mxu0 0.0
    %1113 = vmatpush1.msra.mxu0 0.0
    %1114 = vmatprep.subr.mxu0 0.0
    %1115 = vmatpush1.msra.mxu0 0.0
    %1116 = vmatprep.subr.mxu0 0.0
    %1117 = vmatpush1.msra.mxu0 0.0
    %1118 = vmatprep.subr.mxu0 0.0
    %1119 = vmatpush1.msra.mxu0 0.0
    %1120 = vmatprep.subr.mxu0 0.0
    %1121 = vmatpush1.msra.mxu0 0.0
    %1122 = vmatprep.subr.mxu0 0.0
    %1123 = vmatpush1.msra.mxu0 0.0
    %1124 = vmatprep.subr.mxu0 0.0
    %1125 = vmatpush1.msra.mxu0 0.0
    %1126 = vmatprep.subr.mxu0 0.0
    %1127 = vmatpush1.msra.mxu0 0.0
    %1128 = vmatprep.subr.mxu0 0.0
    %1129 = vmatpush1.msra.mxu0 0.0
    %1130 = vmatprep.subr.mxu0 0.0
    %1131 = vmatpush1.msra.mxu0 0.0
    %1132 = vmatprep.subr.mxu0 0.0
    %1133 = vmatpush1.msra.mxu0 0.0
    %1134 = vmatprep.subr.mxu0 0.0
    %1135 = vmatpush1.msra.mxu0 0.0
    %1136 = vmatprep.subr.mxu0 0.0
    %1137 = vmatpush1.msra.mxu0 0.0
    %1138 = vmatprep.subr.mxu0 0.0
    %1139 = vmatpush1.msra.mxu0 0.0
    %1140 = vmatprep.subr.mxu0 0.0
    %1141 = vmatpush1.msra.mxu0 0.0
    %1142 = vmatprep.mubr.f32.mxu0 0.0
    %1143 = vmatmul.mubr.f32.gmra.mrb[0].mxu0 %v1077
    %v1144 = vpop.f32.mrb[0].mxu0
    %v1145 = vadd.f32 0.0, %v1144
    %v1146 = vpop.f32.mrb[0].mxu0
    %1147 = vdwg.mxu0
    %v1148 = vmul.f32 %v418, %v1145
    %v1149 = vadd.f32 %v1003, %v1148
    %v1150 = vmul.f32 %v567, %v1145
    %v1151 = vadd.f32 %v713, %v1150
    %1152 = vmatprep.subr.mxu0 0.0
    %1153 = vmatpush1.msra.mxu0 %v77
    %1154 = vmatprep.subr.mxu0 0.0
    %1155 = vmatpush1.msra.mxu0 %v78
    %1156 = vmatprep.subr.mxu0 0.0
    %1157 = vmatpush1.msra.mxu0 %v79
    %1158 = vmatprep.subr.mxu0 0.0
    %1159 = vmatpush1.msra.mxu0 %v80
    %1160 = vmatprep.subr.mxu0 0.0
    %1161 = vmatpush1.msra.mxu0 %v81
    %1162 = vmatprep.subr.mxu0 0.0
    %1163 = vmatpush1.msra.mxu0 %v82
    %1164 = vmatprep.subr.mxu0 0.0
    %1165 = vmatpush1.msra.mxu0 %v83
    %1166 = vmatprep.subr.mxu0 0.0
    %1167 = vmatpush1.msra.mxu0 %v84
    %1168 = vmatprep.subr.mxu0 0.0
    %1169 = vmatpush1.msra.mxu0 %v85
    %1170 = vmatprep.subr.mxu0 0.0
    %1171 = vmatpush1.msra.mxu0 %v86
    %1172 = vmatprep.subr.mxu0 0.0
    %1173 = vmatpush1.msra.mxu0 %v87
    %1174 = vmatprep.subr.mxu0 0.0
    %1175 = vmatpush1.msra.mxu0 %v88
    %1176 = vmatprep.subr.mxu0 0.0
    %1177 = vmatpush1.msra.mxu0 %v89
    %1178 = vmatprep.subr.mxu0 0.0
    %1179 = vmatpush1.msra.mxu0 %v90
    %1180 = vmatprep.subr.mxu0 0.0
    %1181 = vmatpush1.msra.mxu0 %v91
    %1182 = vmatprep.subr.mxu0 0.0
    %1183 = vmatpush1.msra.mxu0 %v92
    %1184 = vmatprep.subr.mxu0 0.0
    %1185 = vmatpush1.msra.mxu0 0.0
    %1186 = vmatprep.subr.mxu0 0.0
    %1187 = vmatpush1.msra.mxu0 0.0
    %1188 = vmatprep.subr.mxu0 0.0
    %1189 = vmatpush1.msra.mxu0 0.0
    %1190 = vmatprep.subr.mxu0 0.0
    %1191 = vmatpush1.msra.mxu0 0.0
    %1192 = vmatprep.subr.mxu0 0.0
    %1193 = vmatpush1.msra.mxu0 0.0
    %1194 = vmatprep.subr.mxu0 0.0
    %1195 = vmatpush1.msra.mxu0 0.0
    %1196 = vmatprep.subr.mxu0 0.0
    %1197 = vmatpush1.msra.mxu0 0.0
    %1198 = vmatprep.subr.mxu0 0.0
    %1199 = vmatpush1.msra.mxu0 0.0
    %1200 = vmatprep.subr.mxu0 0.0
    %1201 = vmatpush1.msra.mxu0 0.0
    %1202 = vmatprep.subr.mxu0 0.0
    %1203 = vmatpush1.msra.mxu0 0.0
    %1204 = vmatprep.subr.mxu0 0.0
    %1205 = vmatpush1.msra.mxu0 0.0
    %1206 = vmatprep.subr.mxu0 0.0
    %1207 = vmatpush1.msra.mxu0 0.0
    %1208 = vmatprep.subr.mxu0 0.0
    %1209 = vmatpush1.msra.mxu0 0.0
    %1210 = vmatprep.subr.mxu0 0.0
    %1211 = vmatpush1.msra.mxu0 0.0
    %1212 = vmatprep.subr.mxu0 0.0
    %1213 = vmatpush1.msra.mxu0 0.0
    %1214 = vmatprep.subr.mxu0 0.0
    %1215 = vmatpush1.msra.mxu0 0.0
    %1216 = vmatprep.mubr.f32.mxu0 0.0
    %1217 = vmatmul.mubr.f32.gmra.mrb[0].mxu0 %v1151
    %v1218 = vpop.f32.mrb[0].mxu0
    %v1219 = vadd.f32 0.0, %v1218
    %v1220 = vpop.f32.mrb[0].mxu0
    %1221 = vdwg.mxu0
    %v1222 = vtanh.pop %v1219
    %v1223 = vsel %vm127, 1.0, %v1222
    %1224 = vmatprep.subr.mxu0 0.0
    %1225 = vmatpush1.msra.mxu0 %v93
    %1226 = vmatprep.subr.mxu0 0.0
    %1227 = vmatpush1.msra.mxu0 %v94
    %1228 = vmatprep.subr.mxu0 0.0
    %1229 = vmatpush1.msra.mxu0 %v95
    %1230 = vmatprep.subr.mxu0 0.0
    %1231 = vmatpush1.msra.mxu0 %v96
    %1232 = vmatprep.subr.mxu0 0.0
    %1233 = vmatpush1.msra.mxu0 %v97
    %1234 = vmatprep.subr.mxu0 0.0
    %1235 = vmatpush1.msra.mxu0 %v98
    %1236 = vmatprep.subr.mxu0 0.0
    %1237 = vmatpush1.msra.mxu0 %v99
    %1238 = vmatprep.subr.mxu0 0.0
    %1239 = vmatpush1.msra.mxu0 %v100
    %1240 = vmatprep.subr.mxu0 0.0
    %1241 = vmatpush1.msra.mxu0 %v101
    %1242 = vmatprep.subr.mxu0 0.0
    %1243 = vmatpush1.msra.mxu0 %v102
    %1244 = vmatprep.subr.mxu0 0.0
    %1245 = vmatpush1.msra.mxu0 %v103
    %1246 = vmatprep.subr.mxu0 0.0
    %1247 = vmatpush1.msra.mxu0 %v104
    %1248 = vmatprep.subr.mxu0 0.0
    %1249 = vmatpush1.msra.mxu0 %v105
    %1250 = vmatprep.subr.mxu0 0.0
    %1251 = vmatpush1.msra.mxu0 %v106
    %1252 = vmatprep.subr.mxu0 0.0
    %1253 = vmatpush1.msra.mxu0 %v107
    %1254 = vmatprep.subr.mxu0 0.0
    %1255 = vmatpush1.msra.mxu0 %v108
    %1256 = vmatprep.subr.mxu0 0.0
    %1257 = vmatpush1.msra.mxu0 0.0
    %1258 = vmatprep.subr.mxu0 0.0
    %1259 = vmatpush1.msra.mxu0 0.0
    %1260 = vmatprep.subr.mxu0 0.0
    %1261 = vmatpush1.msra.mxu0 0.0
    %1262 = vmatprep.subr.mxu0 0.0
    %1263 = vmatpush1.msra.mxu0 0.0
    %1264 = vmatprep.subr.mxu0 0.0
    %1265 = vmatpush1.msra.mxu0 0.0
    %1266 = vmatprep.subr.mxu0 0.0
    %1267 = vmatpush1.msra.mxu0 0.0
    %1268 = vmatprep.subr.mxu0 0.0
    %1269 = vmatpush1.msra.mxu0 0.0
    %1270 = vmatprep.subr.mxu0 0.0
    %1271 = vmatpush1.msra.mxu0 0.0
    %1272 = vmatprep.subr.mxu0 0.0
    %1273 = vmatpush1.msra.mxu0 0.0
    %1274 = vmatprep.subr.mxu0 0.0
    %1275 = vmatpush1.msra.mxu0 0.0
    %1276 = vmatprep.subr.mxu0 0.0
    %1277 = vmatpush1.msra.mxu0 0.0
    %1278 = vmatprep.subr.mxu0 0.0
    %1279 = vmatpush1.msra.mxu0 0.0
    %1280 = vmatprep.subr.mxu0 0.0
    %1281 = vmatpush1.msra.mxu0 0.0
    %1282 = vmatprep.subr.mxu0 0.0
    %1283 = vmatpush1.msra.mxu0 0.0
    %1284 = vmatprep.subr.mxu0 0.0
    %1285 = vmatpush1.msra.mxu0 0.0
    %1286 = vmatprep.subr.mxu0 0.0
    %1287 = vmatpush1.msra.mxu0 0.0
    %1288 = vmatprep.mubr.f32.mxu0 0.0
    %1289 = vmatmul.mubr.f32.gmra.mrb[0].mxu0 %v1223
    %v1290 = vpop.f32.mrb[0].mxu0
    %v1291 = vadd.f32 0.0, %v1290
    %v1292 = vpop.f32.mrb[0].mxu0
    %1293 = vdwg.mxu0
    %v1294 = vmul.f32 %v270, %v1291
    %v1295 = vadd.f32 %v1149, %v1294
    %1296 = vmatprep.subr.mxu0 0.0
    %1297 = vmatpush1.msra.mxu0 %v77
    %1298 = vmatprep.subr.mxu0 0.0
    %1299 = vmatpush1.msra.mxu0 %v78
    %1300 = vmatprep.subr.mxu0 0.0
    %1301 = vmatpush1.msra.mxu0 %v79
    %1302 = vmatprep.subr.mxu0 0.0
    %1303 = vmatpush1.msra.mxu0 %v80
    %1304 = vmatprep.subr.mxu0 0.0
    %1305 = vmatpush1.msra.mxu0 %v81
    %1306 = vmatprep.subr.mxu0 0.0
    %1307 = vmatpush1.msra.mxu0 %v82
    %1308 = vmatprep.subr.mxu0 0.0
    %1309 = vmatpush1.msra.mxu0 %v83
    %1310 = vmatprep.subr.mxu0 0.0
    %1311 = vmatpush1.msra.mxu0 %v84
    %1312 = vmatprep.subr.mxu0 0.0
    %1313 = vmatpush1.msra.mxu0 %v85
    %1314 = vmatprep.subr.mxu0 0.0
    %1315 = vmatpush1.msra.mxu0 %v86
    %1316 = vmatprep.subr.mxu0 0.0
    %1317 = vmatpush1.msra.mxu0 %v87
    %1318 = vmatprep.subr.mxu0 0.0
    %1319 = vmatpush1.msra.mxu0 %v88
    %1320 = vmatprep.subr.mxu0 0.0
    %1321 = vmatpush1.msra.mxu0 %v89
    %1322 = vmatprep.subr.mxu0 0.0
    %1323 = vmatpush1.msra.mxu0 %v90
    %1324 = vmatprep.subr.mxu0 0.0
    %1325 = vmatpush1.msra.mxu0 %v91
    %1326 = vmatprep.subr.mxu0 0.0
    %1327 = vmatpush1.msra.mxu0 %v92
    %1328 = vmatprep.subr.mxu0 0.0
    %1329 = vmatpush1.msra.mxu0 0.0
    %1330 = vmatprep.subr.mxu0 0.0
    %1331 = vmatpush1.msra.mxu0 0.0
    %1332 = vmatprep.subr.mxu0 0.0
    %1333 = vmatpush1.msra.mxu0 0.0
    %1334 = vmatprep.subr.mxu0 0.0
    %1335 = vmatpush1.msra.mxu0 0.0
    %1336 = vmatprep.subr.mxu0 0.0
    %1337 = vmatpush1.msra.mxu0 0.0
    %1338 = vmatprep.subr.mxu0 0.0
    %1339 = vmatpush1.msra.mxu0 0.0
    %1340 = vmatprep.subr.mxu0 0.0
    %1341 = vmatpush1.msra.mxu0 0.0
    %1342 = vmatprep.subr.mxu0 0.0
    %1343 = vmatpush1.msra.mxu0 0.0
    %1344 = vmatprep.subr.mxu0 0.0
    %1345 = vmatpush1.msra.mxu0 0.0
    %1346 = vmatprep.subr.mxu0 0.0
    %1347 = vmatpush1.msra.mxu0 0.0
    %1348 = vmatprep.subr.mxu0 0.0
    %1349 = vmatpush1.msra.mxu0 0.0
    %1350 = vmatprep.subr.mxu0 0.0
    %1351 = vmatpush1.msra.mxu0 0.0
    %1352 = vmatprep.subr.mxu0 0.0
    %1353 = vmatpush1.msra.mxu0 0.0
    %1354 = vmatprep.subr.mxu0 0.0
    %1355 = vmatpush1.msra.mxu0 0.0
    %1356 = vmatprep.subr.mxu0 0.0
    %1357 = vmatpush1.msra.mxu0 0.0
    %1358 = vmatprep.subr.mxu0 0.0
    %1359 = vmatpush1.msra.mxu0 0.0
    %1360 = vmatprep.mubr.f32.mxu0 0.0
    %1361 = vmatmul.mubr.f32.gmra.mrb[0].mxu0 %v1295
    %v1362 = vpop.f32.mrb[0].mxu0
    %v1363 = vadd.f32 0.0, %v1362
    %v1364 = vpop.f32.mrb[0].mxu0
    %1365 = vdwg.mxu0
    %v1366 = vtanh.pop %v1363
    %v1367 = vsel %vm127, 1.0, %v1366
    %1368 = vmatprep.subr.mxu0 0.0
    %1369 = vmatpush1.msra.mxu0 %v93
    %1370 = vmatprep.subr.mxu0 0.0
    %1371 = vmatpush1.msra.mxu0 %v94
    %1372 = vmatprep.subr.mxu0 0.0
    %1373 = vmatpush1.msra.mxu0 %v95
    %1374 = vmatprep.subr.mxu0 0.0
    %1375 = vmatpush1.msra.mxu0 %v96
    %1376 = vmatprep.subr.mxu0 0.0
    %1377 = vmatpush1.msra.mxu0 %v97
    %1378 = vmatprep.subr.mxu0 0.0
    %1379 = vmatpush1.msra.mxu0 %v98
    %1380 = vmatprep.subr.mxu0 0.0
    %1381 = vmatpush1.msra.mxu0 %v99
    %1382 = vmatprep.subr.mxu0 0.0
    %1383 = vmatpush1.msra.mxu0 %v100
    %1384 = vmatprep.subr.mxu0 0.0
    %1385 = vmatpush1.msra.mxu0 %v101
    %1386 = vmatprep.subr.mxu0 0.0
    %1387 = vmatpush1.msra.mxu0 %v102
    %1388 = vmatprep.subr.mxu0 0.0
    %1389 = vmatpush1.msra.mxu0 %v103
    %1390 = vmatprep.subr.mxu0 0.0
    %1391 = vmatpush1.msra.mxu0 %v104
    %1392 = vmatprep.subr.mxu0 0.0
    %1393 = vmatpush1.msra.mxu0 %v105
    %1394 = vmatprep.subr.mxu0 0.0
    %1395 = vmatpush1.msra.mxu0 %v106
    %1396 = vmatprep.subr.mxu0 0.0
    %1397 = vmatpush1.msra.mxu0 %v107
    %1398 = vmatprep.subr.mxu0 0.0
    %1399 = vmatpush1.msra.mxu0 %v108
    %1400 = vmatprep.subr.mxu0 0.0
    %1401 = vmatpush1.msra.mxu0 0.0
    %1402 = vmatprep.subr.mxu0 0.0
    %1403 = vmatpush1.msra.mxu0 0.0
    %1404 = vmatprep.subr.mxu0 0.0
    %1405 = vmatpush1.msra.mxu0 0.0
    %1406 = vmatprep.subr.mxu0 0.0
    %1407 = vmatpush1.msra.mxu0 0.0
    %1408 = vmatprep.subr.mxu0 0.0
    %1409 = vmatpush1.msra.mxu0 0.0
    %1410 = vmatprep.subr.mxu0 0.0
    %1411 = vmatpush1.msra.mxu0 0.0
    %1412 = vmatprep.subr.mxu0 0.0
    %1413 = vmatpush1.msra.mxu0 0.0
    %1414 = vmatprep.subr.mxu0 0.0
    %1415 = vmatpush1.msra.mxu0 0.0
    %1416 = vmatprep.subr.mxu0 0.0
    %1417 = vmatpush1.msra.mxu0 0.0
    %1418 = vmatprep.subr.mxu0 0.0
    %1419 = vmatpush1.msra.mxu0 0.0
    %1420 = vmatprep.subr.mxu0 0.0
    %1421 = vmatpush1.msra.mxu0 0.0
    %1422 = vmatprep.subr.mxu0 0.0
    %1423 = vmatpush1.msra.mxu0 0.0
    %1424 = vmatprep.subr.mxu0 0.0
    %1425 = vmatpush1.msra.mxu0 0.0
    %1426 = vmatprep.subr.mxu0 0.0
    %1427 = vmatpush1.msra.mxu0 0.0
    %1428 = vmatprep.subr.mxu0 0.0
    %1429 = vmatpush1.msra.mxu0 0.0
    %1430 = vmatprep.subr.mxu0 0.0
    %1431 = vmatpush1.msra.mxu0 0.0
    %1432 = vmatprep.mubr.f32.mxu0 0.0
    %1433 = vmatmul.mubr.f32.gmra.mrb[0].mxu0 %v1367
    %v1434 = vpop.f32.mrb[0].mxu0
    %v1435 = vadd.f32 0.0, %v1434
    %v1436 = vpop.f32.mrb[0].mxu0
    %1437 = vdwg.mxu0
    %v1438 = vmul.f32 %v270, %v1435
    %v1439 = vadd.f32 %v1295, %v1438
    %v1440 = vmul.f32 %v273, %v1435
    %v1441 = vadd.f32 %v1295, %v1440
    %1442 = vmatprep.subr.mxu0 0.0
    %1443 = vmatpush1.msra.mxu0 %v77
    %1444 = vmatprep.subr.mxu0 0.0
    %1445 = vmatpush1.msra.mxu0 %v78
    %1446 = vmatprep.subr.mxu0 0.0
    %1447 = vmatpush1.msra.mxu0 %v79
    %1448 = vmatprep.subr.mxu0 0.0
    %1449 = vmatpush1.msra.mxu0 %v80
    %1450 = vmatprep.subr.mxu0 0.0
    %1451 = vmatpush1.msra.mxu0 %v81
    %1452 = vmatprep.subr.mxu0 0.0
    %1453 = vmatpush1.msra.mxu0 %v82
    %1454 = vmatprep.subr.mxu0 0.0
    %1455 = vmatpush1.msra.mxu0 %v83
    %1456 = vmatprep.subr.mxu0 0.0
    %1457 = vmatpush1.msra.mxu0 %v84
    %1458 = vmatprep.subr.mxu0 0.0
    %1459 = vmatpush1.msra.mxu0 %v85
    %1460 = vmatprep.subr.mxu0 0.0
    %1461 = vmatpush1.msra.mxu0 %v86
    %1462 = vmatprep.subr.mxu0 0.0
    %1463 = vmatpush1.msra.mxu0 %v87
    %1464 = vmatprep.subr.mxu0 0.0
    %1465 = vmatpush1.msra.mxu0 %v88
    %1466 = vmatprep.subr.mxu0 0.0
    %1467 = vmatpush1.msra.mxu0 %v89
    %1468 = vmatprep.subr.mxu0 0.0
    %1469 = vmatpush1.msra.mxu0 %v90
    %1470 = vmatprep.subr.mxu0 0.0
    %1471 = vmatpush1.msra.mxu0 %v91
    %1472 = vmatprep.subr.mxu0 0.0
    %1473 = vmatpush1.msra.mxu0 %v92
    %1474 = vmatprep.subr.mxu0 0.0
    %1475 = vmatpush1.msra.mxu0 0.0
    %1476 = vmatprep.subr.mxu0 0.0
    %1477 = vmatpush1.msra.mxu0 0.0
    %1478 = vmatprep.subr.mxu0 0.0
    %1479 = vmatpush1.msra.mxu0 0.0
    %1480 = vmatprep.subr.mxu0 0.0
    %1481 = vmatpush1.msra.mxu0 0.0
    %1482 = vmatprep.subr.mxu0 0.0
    %1483 = vmatpush1.msra.mxu0 0.0
    %1484 = vmatprep.subr.mxu0 0.0
    %1485 = vmatpush1.msra.mxu0 0.0
    %1486 = vmatprep.subr.mxu0 0.0
    %1487 = vmatpush1.msra.mxu0 0.0
    %1488 = vmatprep.subr.mxu0 0.0
    %1489 = vmatpush1.msra.mxu0 0.0
    %1490 = vmatprep.subr.mxu0 0.0
    %1491 = vmatpush1.msra.mxu0 0.0
    %1492 = vmatprep.subr.mxu0 0.0
    %1493 = vmatpush1.msra.mxu0 0.0
    %1494 = vmatprep.subr.mxu0 0.0
    %1495 = vmatpush1.msra.mxu0 0.0
    %1496 = vmatprep.subr.mxu0 0.0
    %1497 = vmatpush1.msra.mxu0 0.0
    %1498 = vmatprep.subr.mxu0 0.0
    %1499 = vmatpush1.msra.mxu0 0.0
    %1500 = vmatprep.subr.mxu0 0.0
    %1501 = vmatpush1.msra.mxu0 0.0
    %1502 = vmatprep.subr.mxu0 0.0
    %1503 = vmatpush1.msra.mxu0 0.0
    %1504 = vmatprep.subr.mxu0 0.0
    %1505 = vmatpush1.msra.mxu0 0.0
    %1506 = vmatprep.mubr.f32.mxu0 0.0
    %1507 = vmatmul.mubr.f32.gmra.mrb[0].mxu0 %v1441
    %v1508 = vpop.f32.mrb[0].mxu0
    %v1509 = vadd.f32 0.0, %v1508
    %v1510 = vpop.f32.mrb[0].mxu0
    %1511 = vdwg.mxu0
    %v1512 = vtanh.pop %v1509
    %v1513 = vsel %vm127, 1.0, %v1512
    %1514 = vmatprep.subr.mxu0 0.0
    %1515 = vmatpush1.msra.mxu0 %v93
    %1516 = vmatprep.subr.mxu0 0.0
    %1517 = vmatpush1.msra.mxu0 %v94
    %1518 = vmatprep.subr.mxu0 0.0
    %1519 = vmatpush1.msra.mxu0 %v95
    %1520 = vmatprep.subr.mxu0 0.0
    %1521 = vmatpush1.msra.mxu0 %v96
    %1522 = vmatprep.subr.mxu0 0.0
    %1523 = vmatpush1.msra.mxu0 %v97
    %1524 = vmatprep.subr.mxu0 0.0
    %1525 = vmatpush1.msra.mxu0 %v98
    %1526 = vmatprep.subr.mxu0 0.0
    %1527 = vmatpush1.msra.mxu0 %v99
    %1528 = vmatprep.subr.mxu0 0.0
    %1529 = vmatpush1.msra.mxu0 %v100
    %1530 = vmatprep.subr.mxu0 0.0
    %1531 = vmatpush1.msra.mxu0 %v101
    %1532 = vmatprep.subr.mxu0 0.0
    %1533 = vmatpush1.msra.mxu0 %v102
    %1534 = vmatprep.subr.mxu0 0.0
    %1535 = vmatpush1.msra.mxu0 %v103
    %1536 = vmatprep.subr.mxu0 0.0
    %1537 = vmatpush1.msra.mxu0 %v104
    %1538 = vmatprep.subr.mxu0 0.0
    %1539 = vmatpush1.msra.mxu0 %v105
    %1540 = vmatprep.subr.mxu0 0.0
    %1541 = vmatpush1.msra.mxu0 %v106
    %1542 = vmatprep.subr.mxu0 0.0
    %1543 = vmatpush1.msra.mxu0 %v107
    %1544 = vmatprep.subr.mxu0 0.0
    %1545 = vmatpush1.msra.mxu0 %v108
    %1546 = vmatprep.subr.mxu0 0.0
    %1547 = vmatpush1.msra.mxu0 0.0
    %1548 = vmatprep.subr.mxu0 0.0
    %1549 = vmatpush1.msra.mxu0 0.0
    %1550 = vmatprep.subr.mxu0 0.0
    %1551 = vmatpush1.msra.mxu0 0.0
    %1552 = vmatprep.subr.mxu0 0.0
    %1553 = vmatpush1.msra.mxu0 0.0
    %1554 = vmatprep.subr.mxu0 0.0
    %1555 = vmatpush1.msra.mxu0 0.0
    %1556 = vmatprep.subr.mxu0 0.0
    %1557 = vmatpush1.msra.mxu0 0.0
    %1558 = vmatprep.subr.mxu0 0.0
    %1559 = vmatpush1.msra.mxu0 0.0
    %1560 = vmatprep.subr.mxu0 0.0
    %1561 = vmatpush1.msra.mxu0 0.0
    %1562 = vmatprep.subr.mxu0 0.0
    %1563 = vmatpush1.msra.mxu0 0.0
    %1564 = vmatprep.subr.mxu0 0.0
    %1565 = vmatpush1.msra.mxu0 0.0
    %1566 = vmatprep.subr.mxu0 0.0
    %1567 = vmatpush1.msra.mxu0 0.0
    %1568 = vmatprep.subr.mxu0 0.0
    %1569 = vmatpush1.msra.mxu0 0.0
    %1570 = vmatprep.subr.mxu0 0.0
    %1571 = vmatpush1.msra.mxu0 0.0
    %1572 = vmatprep.subr.mxu0 0.0
    %1573 = vmatpush1.msra.mxu0 0.0
    %1574 = vmatprep.subr.mxu0 0.0
    %1575 = vmatpush1.msra.mxu0 0.0
    %1576 = vmatprep.subr.mxu0 0.0
    %1577 = vmatpush1.msra.mxu0 0.0
    %1578 = vmatprep.mubr.f32.mxu0 0.0
    %1579 = vmatmul.mubr.f32.gmra.mrb[0].mxu0 %v1513
    %v1580 = vpop.f32.mrb[0].mxu0
    %v1581 = vadd.f32 0.0, %v1580
    %v1582 = vpop.f32.mrb[0].mxu0
    %1583 = vdwg.mxu0
    %v1584 = vmul.f32 %v418, %v1581
    %v1585 = vadd.f32 %v1439, %v1584
    %v1586 = vmul.f32 %v273, %v1581
    %v1587 = vadd.f32 %v1295, %v1586
    %1588 = vmatprep.subr.mxu0 0.0
    %1589 = vmatpush1.msra.mxu0 %v77
    %1590 = vmatprep.subr.mxu0 0.0
    %1591 = vmatpush1.msra.mxu0 %v78
    %1592 = vmatprep.subr.mxu0 0.0
    %1593 = vmatpush1.msra.mxu0 %v79
    %1594 = vmatprep.subr.mxu0 0.0
    %1595 = vmatpush1.msra.mxu0 %v80
    %1596 = vmatprep.subr.mxu0 0.0
    %1597 = vmatpush1.msra.mxu0 %v81
    %1598 = vmatprep.subr.mxu0 0.0
    %1599 = vmatpush1.msra.mxu0 %v82
    %1600 = vmatprep.subr.mxu0 0.0
    %1601 = vmatpush1.msra.mxu0 %v83
    %1602 = vmatprep.subr.mxu0 0.0
    %1603 = vmatpush1.msra.mxu0 %v84
    %1604 = vmatprep.subr.mxu0 0.0
    %1605 = vmatpush1.msra.mxu0 %v85
    %1606 = vmatprep.subr.mxu0 0.0
    %1607 = vmatpush1.msra.mxu0 %v86
    %1608 = vmatprep.subr.mxu0 0.0
    %1609 = vmatpush1.msra.mxu0 %v87
    %1610 = vmatprep.subr.mxu0 0.0
    %1611 = vmatpush1.msra.mxu0 %v88
    %1612 = vmatprep.subr.mxu0 0.0
    %1613 = vmatpush1.msra.mxu0 %v89
    %1614 = vmatprep.subr.mxu0 0.0
    %1615 = vmatpush1.msra.mxu0 %v90
    %1616 = vmatprep.subr.mxu0 0.0
    %1617 = vmatpush1.msra.mxu0 %v91
    %1618 = vmatprep.subr.mxu0 0.0
    %1619 = vmatpush1.msra.mxu0 %v92
    %1620 = vmatprep.subr.mxu0 0.0
    %1621 = vmatpush1.msra.mxu0 0.0
    %1622 = vmatprep.subr.mxu0 0.0
    %1623 = vmatpush1.msra.mxu0 0.0
    %1624 = vmatprep.subr.mxu0 0.0
    %1625 = vmatpush1.msra.mxu0 0.0
    %1626 = vmatprep.subr.mxu0 0.0
    %1627 = vmatpush1.msra.mxu0 0.0
    %1628 = vmatprep.subr.mxu0 0.0
    %1629 = vmatpush1.msra.mxu0 0.0
    %1630 = vmatprep.subr.mxu0 0.0
    %1631 = vmatpush1.msra.mxu0 0.0
    %1632 = vmatprep.subr.mxu0 0.0
    %1633 = vmatpush1.msra.mxu0 0.0
    %1634 = vmatprep.subr.mxu0 0.0
    %1635 = vmatpush1.msra.mxu0 0.0
    %1636 = vmatprep.subr.mxu0 0.0
    %1637 = vmatpush1.msra.mxu0 0.0
    %1638 = vmatprep.subr.mxu0 0.0
    %1639 = vmatpush1.msra.mxu0 0.0
    %1640 = vmatprep.subr.mxu0 0.0
    %1641 = vmatpush1.msra.mxu0 0.0
    %1642 = vmatprep.subr.mxu0 0.0
    %1643 = vmatpush1.msra.mxu0 0.0
    %1644 = vmatprep.subr.mxu0 0.0
    %1645 = vmatpush1.msra.mxu0 0.0
    %1646 = vmatprep.subr.mxu0 0.0
    %1647 = vmatpush1.msra.mxu0 0.0
    %1648 = vmatprep.subr.mxu0 0.0
    %1649 = vmatpush1.msra.mxu0 0.0
    %1650 = vmatprep.subr.mxu0 0.0
    %1651 = vmatpush1.msra.mxu0 0.0
    %1652 = vmatprep.mubr.f32.mxu0 0.0
    %1653 = vmatmul.mubr.f32.gmra.mrb[0].mxu0 %v1587
    %v1654 = vpop.f32.mrb[0].mxu0
    %v1655 = vadd.f32 0.0, %v1654
    %v1656 = vpop.f32.mrb[0].mxu0
    %1657 = vdwg.mxu0
    %v1658 = vtanh.pop %v1655
    %v1659 = vsel %vm127, 1.0, %v1658
    %1660 = vmatprep.subr.mxu0 0.0
    %1661 = vmatpush1.msra.mxu0 %v93
    %1662 = vmatprep.subr.mxu0 0.0
    %1663 = vmatpush1.msra.mxu0 %v94
    %1664 = vmatprep.subr.mxu0 0.0
    %1665 = vmatpush1.msra.mxu0 %v95
    %1666 = vmatprep.subr.mxu0 0.0
    %1667 = vmatpush1.msra.mxu0 %v96
    %1668 = vmatprep.subr.mxu0 0.0
    %1669 = vmatpush1.msra.mxu0 %v97
    %1670 = vmatprep.subr.mxu0 0.0
    %1671 = vmatpush1.msra.mxu0 %v98
    %1672 = vmatprep.subr.mxu0 0.0
    %1673 = vmatpush1.msra.mxu0 %v99
    %1674 = vmatprep.subr.mxu0 0.0
    %1675 = vmatpush1.msra.mxu0 %v100
    %1676 = vmatprep.subr.mxu0 0.0
    %1677 = vmatpush1.msra.mxu0 %v101
    %1678 = vmatprep.subr.mxu0 0.0
    %1679 = vmatpush1.msra.mxu0 %v102
    %1680 = vmatprep.subr.mxu0 0.0
    %1681 = vmatpush1.msra.mxu0 %v103
    %1682 = vmatprep.subr.mxu0 0.0
    %1683 = vmatpush1.msra.mxu0 %v104
    %1684 = vmatprep.subr.mxu0 0.0
    %1685 = vmatpush1.msra.mxu0 %v105
    %1686 = vmatprep.subr.mxu0 0.0
    %1687 = vmatpush1.msra.mxu0 %v106
    %1688 = vmatprep.subr.mxu0 0.0
    %1689 = vmatpush1.msra.mxu0 %v107
    %1690 = vmatprep.subr.mxu0 0.0
    %1691 = vmatpush1.msra.mxu0 %v108
    %1692 = vmatprep.subr.mxu0 0.0
    %1693 = vmatpush1.msra.mxu0 0.0
    %1694 = vmatprep.subr.mxu0 0.0
    %1695 = vmatpush1.msra.mxu0 0.0
    %1696 = vmatprep.subr.mxu0 0.0
    %1697 = vmatpush1.msra.mxu0 0.0
    %1698 = vmatprep.subr.mxu0 0.0
    %1699 = vmatpush1.msra.mxu0 0.0
    %1700 = vmatprep.subr.mxu0 0.0
    %1701 = vmatpush1.msra.mxu0 0.0
    %1702 = vmatprep.subr.mxu0 0.0
    %1703 = vmatpush1.msra.mxu0 0.0
    %1704 = vmatprep.subr.mxu0 0.0
    %1705 = vmatpush1.msra.mxu0 0.0
    %1706 = vmatprep.subr.mxu0 0.0
    %1707 = vmatpush1.msra.mxu0 0.0
    %1708 = vmatprep.subr.mxu0 0.0
    %1709 = vmatpush1.msra.mxu0 0.0
    %1710 = vmatprep.subr.mxu0 0.0
    %1711 = vmatpush1.msra.mxu0 0.0
    %1712 = vmatprep.subr.mxu0 0.0
    %1713 = vmatpush1.msra.mxu0 0.0
    %1714 = vmatprep.subr.mxu0 0.0
    %1715 = vmatpush1.msra.mxu0 0.0
    %1716 = vmatprep.subr.mxu0 0.0
    %1717 = vmatpush1.msra.mxu0 0.0
    %1718 = vmatprep.subr.mxu0 0.0
    %1719 = vmatpush1.msra.mxu0 0.0
    %1720 = vmatprep.subr.mxu0 0.0
    %1721 = vmatpush1.msra.mxu0 0.0
    %1722 = vmatprep.subr.mxu0 0.0
    %1723 = vmatpush1.msra.mxu0 0.0
    %1724 = vmatprep.mubr.f32.mxu0 0.0
    %1725 = vmatmul.mubr.f32.gmra.mrb[0].mxu0 %v1659
    %v1726 = vpop.f32.mrb[0].mxu0
    %v1727 = vadd.f32 0.0, %v1726
    %v1728 = vpop.f32.mrb[0].mxu0
    %1729 = vdwg.mxu0
    %v1730 = vmul.f32 %v418, %v1727
    %v1731 = vadd.f32 %v1585, %v1730
    %v1732 = vmul.f32 %v567, %v1727
    %v1733 = vadd.f32 %v1295, %v1732
    %1734 = vmatprep.subr.mxu0 0.0
    %1735 = vmatpush1.msra.mxu0 %v77
    %1736 = vmatprep.subr.mxu0 0.0
    %1737 = vmatpush1.msra.mxu0 %v78
    %1738 = vmatprep.subr.mxu0 0.0
    %1739 = vmatpush1.msra.mxu0 %v79
    %1740 = vmatprep.subr.mxu0 0.0
    %1741 = vmatpush1.msra.mxu0 %v80
    %1742 = vmatprep.subr.mxu0 0.0
    %1743 = vmatpush1.msra.mxu0 %v81
    %1744 = vmatprep.subr.mxu0 0.0
    %1745 = vmatpush1.msra.mxu0 %v82
    %1746 = vmatprep.subr.mxu0 0.0
    %1747 = vmatpush1.msra.mxu0 %v83
    %1748 = vmatprep.subr.mxu0 0.0
    %1749 = vmatpush1.msra.mxu0 %v84
    %1750 = vmatprep.subr.mxu0 0.0
    %1751 = vmatpush1.msra.mxu0 %v85
    %1752 = vmatprep.subr.mxu0 0.0
    %1753 = vmatpush1.msra.mxu0 %v86
    %1754 = vmatprep.subr.mxu0 0.0
    %1755 = vmatpush1.msra.mxu0 %v87
    %1756 = vmatprep.subr.mxu0 0.0
    %1757 = vmatpush1.msra.mxu0 %v88
    %1758 = vmatprep.subr.mxu0 0.0
    %1759 = vmatpush1.msra.mxu0 %v89
    %1760 = vmatprep.subr.mxu0 0.0
    %1761 = vmatpush1.msra.mxu0 %v90
    %1762 = vmatprep.subr.mxu0 0.0
    %1763 = vmatpush1.msra.mxu0 %v91
    %1764 = vmatprep.subr.mxu0 0.0
    %1765 = vmatpush1.msra.mxu0 %v92
    %1766 = vmatprep.subr.mxu0 0.0
    %1767 = vmatpush1.msra.mxu0 0.0
    %1768 = vmatprep.subr.mxu0 0.0
    %1769 = vmatpush1.msra.mxu0 0.0
    %1770 = vmatprep.subr.mxu0 0.0
    %1771 = vmatpush1.msra.mxu0 0.0
    %1772 = vmatprep.subr.mxu0 0.0
    %1773 = vmatpush1.msra.mxu0 0.0
    %1774 = vmatprep.subr.mxu0 0.0
    %1775 = vmatpush1.msra.mxu0 0.0
    %1776 = vmatprep.subr.mxu0 0.0
    %1777 = vmatpush1.msra.mxu0 0.0
    %1778 = vmatprep.subr.mxu0 0.0
    %1779 = vmatpush1.msra.mxu0 0.0
    %1780 = vmatprep.subr.mxu0 0.0
    %1781 = vmatpush1.msra.mxu0 0.0
    %1782 = vmatprep.subr.mxu0 0.0
    %1783 = vmatpush1.msra.mxu0 0.0
    %1784 = vmatprep.subr.mxu0 0.0
    %1785 = vmatpush1.msra.mxu0 0.0
    %1786 = vmatprep.subr.mxu0 0.0
    %1787 = vmatpush1.msra.mxu0 0.0
    %1788 = vmatprep.subr.mxu0 0.0
    %1789 = vmatpush1.msra.mxu0 0.0
    %1790 = vmatprep.subr.mxu0 0.0
    %1791 = vmatpush1.msra.mxu0 0.0
    %1792 = vmatprep.subr.mxu0 0.0
    %1793 = vmatpush1.msra.mxu0 0.0
    %1794 = vmatprep.subr.mxu0 0.0
    %1795 = vmatpush1.msra.mxu0 0.0
    %1796 = vmatprep.subr.mxu0 0.0
    %1797 = vmatpush1.msra.mxu0 0.0
    %1798 = vmatprep.mubr.f32.mxu0 0.0
    %1799 = vmatmul.mubr.f32.gmra.mrb[0].mxu0 %v1733
    %v1800 = vpop.f32.mrb[0].mxu0
    %v1801 = vadd.f32 0.0, %v1800
    %v1802 = vpop.f32.mrb[0].mxu0
    %1803 = vdwg.mxu0
    %v1804 = vtanh.pop %v1801
    %v1805 = vsel %vm127, 1.0, %v1804
    %1806 = vmatprep.subr.mxu0 0.0
    %1807 = vmatpush1.msra.mxu0 %v93
    %1808 = vmatprep.subr.mxu0 0.0
    %1809 = vmatpush1.msra.mxu0 %v94
    %1810 = vmatprep.subr.mxu0 0.0
    %1811 = vmatpush1.msra.mxu0 %v95
    %1812 = vmatprep.subr.mxu0 0.0
    %1813 = vmatpush1.msra.mxu0 %v96
    %1814 = vmatprep.subr.mxu0 0.0
    %1815 = vmatpush1.msra.mxu0 %v97
    %1816 = vmatprep.subr.mxu0 0.0
    %1817 = vmatpush1.msra.mxu0 %v98
    %1818 = vmatprep.subr.mxu0 0.0
    %1819 = vmatpush1.msra.mxu0 %v99
    %1820 = vmatprep.subr.mxu0 0.0
    %1821 = vmatpush1.msra.mxu0 %v100
    %1822 = vmatprep.subr.mxu0 0.0
    %1823 = vmatpush1.msra.mxu0 %v101
    %1824 = vmatprep.subr.mxu0 0.0
    %1825 = vmatpush1.msra.mxu0 %v102
    %1826 = vmatprep.subr.mxu0 0.0
    %1827 = vmatpush1.msra.mxu0 %v103
    %1828 = vmatprep.subr.mxu0 0.0
    %1829 = vmatpush1.msra.mxu0 %v104
    %1830 = vmatprep.subr.mxu0 0.0
    %1831 = vmatpush1.msra.mxu0 %v105
    %1832 = vmatprep.subr.mxu0 0.0
    %1833 = vmatpush1.msra.mxu0 %v106
    %1834 = vmatprep.subr.mxu0 0.0
    %1835 = vmatpush1.msra.mxu0 %v107
    %1836 = vmatprep.subr.mxu0 0.0
    %1837 = vmatpush1.msra.mxu0 %v108
    %1838 = vmatprep.subr.mxu0 0.0
    %1839 = vmatpush1.msra.mxu0 0.0
    %1840 = vmatprep.subr.mxu0 0.0
    %1841 = vmatpush1.msra.mxu0 0.0
    %1842 = vmatprep.subr.mxu0 0.0
    %1843 = vmatpush1.msra.mxu0 0.0
    %1844 = vmatprep.subr.mxu0 0.0
    %1845 = vmatpush1.msra.mxu0 0.0
    %1846 = vmatprep.subr.mxu0 0.0
    %1847 = vmatpush1.msra.mxu0 0.0
    %1848 = vmatprep.subr.mxu0 0.0
    %1849 = vmatpush1.msra.mxu0 0.0
    %1850 = vmatprep.subr.mxu0 0.0
    %1851 = vmatpush1.msra.mxu0 0.0
    %1852 = vmatprep.subr.mxu0 0.0
    %1853 = vmatpush1.msra.mxu0 0.0
    %1854 = vmatprep.subr.mxu0 0.0
    %1855 = vmatpush1.msra.mxu0 0.0
    %1856 = vmatprep.subr.mxu0 0.0
    %1857 = vmatpush1.msra.mxu0 0.0
    %1858 = vmatprep.subr.mxu0 0.0
    %1859 = vmatpush1.msra.mxu0 0.0
    %1860 = vmatprep.subr.mxu0 0.0
    %1861 = vmatpush1.msra.mxu0 0.0
    %1862 = vmatprep.subr.mxu0 0.0
    %1863 = vmatpush1.msra.mxu0 0.0
    %1864 = vmatprep.subr.mxu0 0.0
    %1865 = vmatpush1.msra.mxu0 0.0
    %1866 = vmatprep.subr.mxu0 0.0
    %1867 = vmatpush1.msra.mxu0 0.0
    %1868 = vmatprep.subr.mxu0 0.0
    %1869 = vmatpush1.msra.mxu0 0.0
    %1870 = vmatprep.mubr.f32.mxu0 0.0
    %1871 = vmatmul.mubr.f32.gmra.mrb[0].mxu0 %v1805
    %v1872 = vpop.f32.mrb[0].mxu0
    %v1873 = vadd.f32 0.0, %v1872
    %v1874 = vpop.f32.mrb[0].mxu0
    %1875 = vdwg.mxu0
    %v1876 = vmul.f32 %v270, %v1873
    %v1877 = vadd.f32 %v1731, %v1876
    %1878 = vmatprep.subr.mxu0 0.0
    %1879 = vmatpush1.msra.mxu0 %v77
    %1880 = vmatprep.subr.mxu0 0.0
    %1881 = vmatpush1.msra.mxu0 %v78
    %1882 = vmatprep.subr.mxu0 0.0
    %1883 = vmatpush1.msra.mxu0 %v79
    %1884 = vmatprep.subr.mxu0 0.0
    %1885 = vmatpush1.msra.mxu0 %v80
    %1886 = vmatprep.subr.mxu0 0.0
    %1887 = vmatpush1.msra.mxu0 %v81
    %1888 = vmatprep.subr.mxu0 0.0
    %1889 = vmatpush1.msra.mxu0 %v82
    %1890 = vmatprep.subr.mxu0 0.0
    %1891 = vmatpush1.msra.mxu0 %v83
    %1892 = vmatprep.subr.mxu0 0.0
    %1893 = vmatpush1.msra.mxu0 %v84
    %1894 = vmatprep.subr.mxu0 0.0
    %1895 = vmatpush1.msra.mxu0 %v85
    %1896 = vmatprep.subr.mxu0 0.0
    %1897 = vmatpush1.msra.mxu0 %v86
    %1898 = vmatprep.subr.mxu0 0.0
    %1899 = vmatpush1.msra.mxu0 %v87
    %1900 = vmatprep.subr.mxu0 0.0
    %1901 = vmatpush1.msra.mxu0 %v88
    %1902 = vmatprep.subr.mxu0 0.0
    %1903 = vmatpush1.msra.mxu0 %v89
    %1904 = vmatprep.subr.mxu0 0.0
    %1905 = vmatpush1.msra.mxu0 %v90
    %1906 = vmatprep.subr.mxu0 0.0
    %1907 = vmatpush1.msra.mxu0 %v91
    %1908 = vmatprep.subr.mxu0 0.0
    %1909 = vmatpush1.msra.mxu0 %v92
    %1910 = vmatprep.subr.mxu0 0.0
    %1911 = vmatpush1.msra.mxu0 0.0
    %1912 = vmatprep.subr.mxu0 0.0
    %1913 = vmatpush1.msra.mxu0 0.0
    %1914 = vmatprep.subr.mxu0 0.0
    %1915 = vmatpush1.msra.mxu0 0.0
    %1916 = vmatprep.subr.mxu0 0.0
    %1917 = vmatpush1.msra.mxu0 0.0
    %1918 = vmatprep.subr.mxu0 0.0
    %1919 = vmatpush1.msra.mxu0 0.0
    %1920 = vmatprep.subr.mxu0 0.0
    %1921 = vmatpush1.msra.mxu0 0.0
    %1922 = vmatprep.subr.mxu0 0.0
    %1923 = vmatpush1.msra.mxu0 0.0
    %1924 = vmatprep.subr.mxu0 0.0
    %1925 = vmatpush1.msra.mxu0 0.0
    %1926 = vmatprep.subr.mxu0 0.0
    %1927 = vmatpush1.msra.mxu0 0.0
    %1928 = vmatprep.subr.mxu0 0.0
    %1929 = vmatpush1.msra.mxu0 0.0
    %1930 = vmatprep.subr.mxu0 0.0
    %1931 = vmatpush1.msra.mxu0 0.0
    %1932 = vmatprep.subr.mxu0 0.0
    %1933 = vmatpush1.msra.mxu0 0.0
    %1934 = vmatprep.subr.mxu0 0.0
    %1935 = vmatpush1.msra.mxu0 0.0
    %1936 = vmatprep.subr.mxu0 0.0
    %1937 = vmatpush1.msra.mxu0 0.0
    %1938 = vmatprep.subr.mxu0 0.0
    %1939 = vmatpush1.msra.mxu0 0.0
    %1940 = vmatprep.subr.mxu0 0.0
    %1941 = vmatpush1.msra.mxu0 0.0
    %1942 = vmatprep.mubr.f32.mxu0 0.0
    %1943 = vmatmul.mubr.f32.gmra.mrb[0].mxu0 %v1877
    %v1944 = vpop.f32.mrb[0].mxu0
    %v1945 = vadd.f32 0.0, %v1944
    %v1946 = vpop.f32.mrb[0].mxu0
    %1947 = vdwg.mxu0
    %v1948 = vtanh.pop %v1945
    %v1949 = vsel %vm127, 1.0, %v1948
    %1950 = vmatprep.subr.mxu0 0.0
    %1951 = vmatpush1.msra.mxu0 %v93
    %1952 = vmatprep.subr.mxu0 0.0
    %1953 = vmatpush1.msra.mxu0 %v94
    %1954 = vmatprep.subr.mxu0 0.0
    %1955 = vmatpush1.msra.mxu0 %v95
    %1956 = vmatprep.subr.mxu0 0.0
    %1957 = vmatpush1.msra.mxu0 %v96
    %1958 = vmatprep.subr.mxu0 0.0
    %1959 = vmatpush1.msra.mxu0 %v97
    %1960 = vmatprep.subr.mxu0 0.0
    %1961 = vmatpush1.msra.mxu0 %v98
    %1962 = vmatprep.subr.mxu0 0.0
    %1963 = vmatpush1.msra.mxu0 %v99
    %1964 = vmatprep.subr.mxu0 0.0
    %1965 = vmatpush1.msra.mxu0 %v100
    %1966 = vmatprep.subr.mxu0 0.0
    %1967 = vmatpush1.msra.mxu0 %v101
    %1968 = vmatprep.subr.mxu0 0.0
    %1969 = vmatpush1.msra.mxu0 %v102
    %1970 = vmatprep.subr.mxu0 0.0
    %1971 = vmatpush1.msra.mxu0 %v103
    %1972 = vmatprep.subr.mxu0 0.0
    %1973 = vmatpush1.msra.mxu0 %v104
    %1974 = vmatprep.subr.mxu0 0.0
    %1975 = vmatpush1.msra.mxu0 %v105
    %1976 = vmatprep.subr.mxu0 0.0
    %1977 = vmatpush1.msra.mxu0 %v106
    %1978 = vmatprep.subr.mxu0 0.0
    %1979 = vmatpush1.msra.mxu0 %v107
    %1980 = vmatprep.subr.mxu0 0.0
    %1981 = vmatpush1.msra.mxu0 %v108
    %1982 = vmatprep.subr.mxu0 0.0
    %1983 = vmatpush1.msra.mxu0 0.0
    %1984 = vmatprep.subr.mxu0 0.0
    %1985 = vmatpush1.msra.mxu0 0.0
    %1986 = vmatprep.subr.mxu0 0.0
    %1987 = vmatpush1.msra.mxu0 0.0
    %1988 = vmatprep.subr.mxu0 0.0
    %1989 = vmatpush1.msra.mxu0 0.0
    %1990 = vmatprep.subr.mxu0 0.0
    %1991 = vmatpush1.msra.mxu0 0.0
    %1992 = vmatprep.subr.mxu0 0.0
    %1993 = vmatpush1.msra.mxu0 0.0
    %1994 = vmatprep.subr.mxu0 0.0
    %1995 = vmatpush1.msra.mxu0 0.0
    %1996 = vmatprep.subr.mxu0 0.0
    %1997 = vmatpush1.msra.mxu0 0.0
    %1998 = vmatprep.subr.mxu0 0.0
    %1999 = vmatpush1.msra.mxu0 0.0
    %2000 = vmatprep.subr.mxu0 0.0
    %2001 = vmatpush1.msra.mxu0 0.0
    %2002 = vmatprep.subr.mxu0 0.0
    %2003 = vmatpush1.msra.mxu0 0.0
    %2004 = vmatprep.subr.mxu0 0.0
    %2005 = vmatpush1.msra.mxu0 0.0
    %2006 = vmatprep.subr.mxu0 0.0
    %2007 = vmatpush1.msra.mxu0 0.0
    %2008 = vmatprep.subr.mxu0 0.0
    %2009 = vmatpush1.msra.mxu0 0.0
    %2010 = vmatprep.subr.mxu0 0.0
    %2011 = vmatpush1.msra.mxu0 0.0
    %2012 = vmatprep.subr.mxu0 0.0
    %2013 = vmatpush1.msra.mxu0 0.0
    %2014 = vmatprep.mubr.f32.mxu0 0.0
    %2015 = vmatmul.mubr.f32.gmra.mrb[0].mxu0 %v1949
    %v2016 = vpop.f32.mrb[0].mxu0
    %v2017 = vadd.f32 0.0, %v2016
    %v2018 = vpop.f32.mrb[0].mxu0
    %2019 = vdwg.mxu0
    %v2020 = vmul.f32 %v270, %v2017
    %v2021 = vadd.f32 %v1877, %v2020
    %v2022 = vmul.f32 %v273, %v2017
    %v2023 = vadd.f32 %v1877, %v2022
    %2024 = vmatprep.subr.mxu0 0.0
    %2025 = vmatpush1.msra.mxu0 %v77
    %2026 = vmatprep.subr.mxu0 0.0
    %2027 = vmatpush1.msra.mxu0 %v78
    %2028 = vmatprep.subr.mxu0 0.0
    %2029 = vmatpush1.msra.mxu0 %v79
    %2030 = vmatprep.subr.mxu0 0.0
    %2031 = vmatpush1.msra.mxu0 %v80
    %2032 = vmatprep.subr.mxu0 0.0
    %2033 = vmatpush1.msra.mxu0 %v81
    %2034 = vmatprep.subr.mxu0 0.0
    %2035 = vmatpush1.msra.mxu0 %v82
    %2036 = vmatprep.subr.mxu0 0.0
    %2037 = vmatpush1.msra.mxu0 %v83
    %2038 = vmatprep.subr.mxu0 0.0
    %2039 = vmatpush1.msra.mxu0 %v84
    %2040 = vmatprep.subr.mxu0 0.0
    %2041 = vmatpush1.msra.mxu0 %v85
    %2042 = vmatprep.subr.mxu0 0.0
    %2043 = vmatpush1.msra.mxu0 %v86
    %2044 = vmatprep.subr.mxu0 0.0
    %2045 = vmatpush1.msra.mxu0 %v87
    %2046 = vmatprep.subr.mxu0 0.0
    %2047 = vmatpush1.msra.mxu0 %v88
    %2048 = vmatprep.subr.mxu0 0.0
    %2049 = vmatpush1.msra.mxu0 %v89
    %2050 = vmatprep.subr.mxu0 0.0
    %2051 = vmatpush1.msra.mxu0 %v90
    %2052 = vmatprep.subr.mxu0 0.0
    %2053 = vmatpush1.msra.mxu0 %v91
    %2054 = vmatprep.subr.mxu0 0.0
    %2055 = vmatpush1.msra.mxu0 %v92
    %2056 = vmatprep.subr.mxu0 0.0
    %2057 = vmatpush1.msra.mxu0 0.0
    %2058 = vmatprep.subr.mxu0 0.0
    %2059 = vmatpush1.msra.mxu0 0.0
    %2060 = vmatprep.subr.mxu0 0.0
    %2061 = vmatpush1.msra.mxu0 0.0
    %2062 = vmatprep.subr.mxu0 0.0
    %2063 = vmatpush1.msra.mxu0 0.0
    %2064 = vmatprep.subr.mxu0 0.0
    %2065 = vmatpush1.msra.mxu0 0.0
    %2066 = vmatprep.subr.mxu0 0.0
    %2067 = vmatpush1.msra.mxu0 0.0
    %2068 = vmatprep.subr.mxu0 0.0
    %2069 = vmatpush1.msra.mxu0 0.0
    %2070 = vmatprep.subr.mxu0 0.0
    %2071 = vmatpush1.msra.mxu0 0.0
    %2072 = vmatprep.subr.mxu0 0.0
    %2073 = vmatpush1.msra.mxu0 0.0
    %2074 = vmatprep.subr.mxu0 0.0
    %2075 = vmatpush1.msra.mxu0 0.0
    %2076 = vmatprep.subr.mxu0 0.0
    %2077 = vmatpush1.msra.mxu0 0.0
    %2078 = vmatprep.subr.mxu0 0.0
    %2079 = vmatpush1.msra.mxu0 0.0
    %2080 = vmatprep.subr.mxu0 0.0
    %2081 = vmatpush1.msra.mxu0 0.0
    %2082 = vmatprep.subr.mxu0 0.0
    %2083 = vmatpush1.msra.mxu0 0.0
    %2084 = vmatprep.subr.mxu0 0.0
    %2085 = vmatpush1.msra.mxu0 0.0
    %2086 = vmatprep.subr.mxu0 0.0
    %2087 = vmatpush1.msra.mxu0 0.0
    %2088 = vmatprep.mubr.f32.mxu0 0.0
    %2089 = vmatmul.mubr.f32.gmra.mrb[0].mxu0 %v2023
    %v2090 = vpop.f32.mrb[0].mxu0
    %v2091 = vadd.f32 0.0, %v2090
    %v2092 = vpop.f32.mrb[0].mxu0
    %2093 = vdwg.mxu0
    %v2094 = vtanh.pop %v2091
    %v2095 = vsel %vm127, 1.0, %v2094
    %2096 = vmatprep.subr.mxu0 0.0
    %2097 = vmatpush1.msra.mxu0 %v93
    %2098 = vmatprep.subr.mxu0 0.0
    %2099 = vmatpush1.msra.mxu0 %v94
    %2100 = vmatprep.subr.mxu0 0.0
    %2101 = vmatpush1.msra.mxu0 %v95
    %2102 = vmatprep.subr.mxu0 0.0
    %2103 = vmatpush1.msra.mxu0 %v96
    %2104 = vmatprep.subr.mxu0 0.0
    %2105 = vmatpush1.msra.mxu0 %v97
    %2106 = vmatprep.subr.mxu0 0.0
    %2107 = vmatpush1.msra.mxu0 %v98
    %2108 = vmatprep.subr.mxu0 0.0
    %2109 = vmatpush1.msra.mxu0 %v99
    %2110 = vmatprep.subr.mxu0 0.0
    %2111 = vmatpush1.msra.mxu0 %v100
    %2112 = vmatprep.subr.mxu0 0.0
    %2113 = vmatpush1.msra.mxu0 %v101
    %2114 = vmatprep.subr.mxu0 0.0
    %2115 = vmatpush1.msra.mxu0 %v102
    %2116 = vmatprep.subr.mxu0 0.0
    %2117 = vmatpush1.msra.mxu0 %v103
    %2118 = vmatprep.subr.mxu0 0.0
    %2119 = vmatpush1.msra.mxu0 %v104
    %2120 = vmatprep.subr.mxu0 0.0
    %2121 = vmatpush1.msra.mxu0 %v105
    %2122 = vmatprep.subr.mxu0 0.0
    %2123 = vmatpush1.msra.mxu0 %v106
    %2124 = vmatprep.subr.mxu0 0.0
    %2125 = vmatpush1.msra.mxu0 %v107
    %2126 = vmatprep.subr.mxu0 0.0
    %2127 = vmatpush1.msra.mxu0 %v108
    %2128 = vmatprep.subr.mxu0 0.0
    %2129 = vmatpush1.msra.mxu0 0.0
    %2130 = vmatprep.subr.mxu0 0.0
    %2131 = vmatpush1.msra.mxu0 0.0
    %2132 = vmatprep.subr.mxu0 0.0
    %2133 = vmatpush1.msra.mxu0 0.0
    %2134 = vmatprep.subr.mxu0 0.0
    %2135 = vmatpush1.msra.mxu0 0.0
    %2136 = vmatprep.subr.mxu0 0.0
    %2137 = vmatpush1.msra.mxu0 0.0
    %2138 = vmatprep.subr.mxu0 0.0
    %2139 = vmatpush1.msra.mxu0 0.0
    %2140 = vmatprep.subr.mxu0 0.0
    %2141 = vmatpush1.msra.mxu0 0.0
    %2142 = vmatprep.subr.mxu0 0.0
    %2143 = vmatpush1.msra.mxu0 0.0
    %2144 = vmatprep.subr.mxu0 0.0
    %2145 = vmatpush1.msra.mxu0 0.0
    %2146 = vmatprep.subr.mxu0 0.0
    %2147 = vmatpush1.msra.mxu0 0.0
    %2148 = vmatprep.subr.mxu0 0.0
    %2149 = vmatpush1.msra.mxu0 0.0
    %2150 = vmatprep.subr.mxu0 0.0
    %2151 = vmatpush1.msra.mxu0 0.0
    %2152 = vmatprep.subr.mxu0 0.0
    %2153 = vmatpush1.msra.mxu0 0.0
    %2154 = vmatprep.subr.mxu0 0.0
    %2155 = vmatpush1.msra.mxu0 0.0
    %2156 = vmatprep.subr.mxu0 0.0
    %2157 = vmatpush1.msra.mxu0 0.0
    %2158 = vmatprep.subr.mxu0 0.0
    %2159 = vmatpush1.msra.mxu0 0.0
    %2160 = vmatprep.mubr.f32.mxu0 0.0
    %2161 = vmatmul.mubr.f32.gmra.mrb[0].mxu0 %v2095
    %v2162 = vpop.f32.mrb[0].mxu0
    %v2163 = vadd.f32 0.0, %v2162
    %v2164 = vpop.f32.mrb[0].mxu0
    %2165 = vdwg.mxu0
    %v2166 = vmul.f32 %v418, %v2163
    %v2167 = vadd.f32 %v2021, %v2166
    %v2168 = vmul.f32 %v273, %v2163
    %v2169 = vadd.f32 %v1877, %v2168
    %2170 = vmatprep.subr.mxu0 0.0
    %2171 = vmatpush1.msra.mxu0 %v77
    %2172 = vmatprep.subr.mxu0 0.0
    %2173 = vmatpush1.msra.mxu0 %v78
    %2174 = vmatprep.subr.mxu0 0.0
    %2175 = vmatpush1.msra.mxu0 %v79
    %2176 = vmatprep.subr.mxu0 0.0
    %2177 = vmatpush1.msra.mxu0 %v80
    %2178 = vmatprep.subr.mxu0 0.0
    %2179 = vmatpush1.msra.mxu0 %v81
    %2180 = vmatprep.subr.mxu0 0.0
    %2181 = vmatpush1.msra.mxu0 %v82
    %2182 = vmatprep.subr.mxu0 0.0
    %2183 = vmatpush1.msra.mxu0 %v83
    %2184 = vmatprep.subr.mxu0 0.0
    %2185 = vmatpush1.msra.mxu0 %v84
    %2186 = vmatprep.subr.mxu0 0.0
    %2187 = vmatpush1.msra.mxu0 %v85
    %2188 = vmatprep.subr.mxu0 0.0
    %2189 = vmatpush1.msra.mxu0 %v86
    %2190 = vmatprep.subr.mxu0 0.0
    %2191 = vmatpush1.msra.mxu0 %v87
    %2192 = vmatprep.subr.mxu0 0.0
    %2193 = vmatpush1.msra.mxu0 %v88
    %2194 = vmatprep.subr.mxu0 0.0
    %2195 = vmatpush1.msra.mxu0 %v89
    %2196 = vmatprep.subr.mxu0 0.0
    %2197 = vmatpush1.msra.mxu0 %v90
    %2198 = vmatprep.subr.mxu0 0.0
    %2199 = vmatpush1.msra.mxu0 %v91
    %2200 = vmatprep.subr.mxu0 0.0
    %2201 = vmatpush1.msra.mxu0 %v92
    %2202 = vmatprep.subr.mxu0 0.0
    %2203 = vmatpush1.msra.mxu0 0.0
    %2204 = vmatprep.subr.mxu0 0.0
    %2205 = vmatpush1.msra.mxu0 0.0
    %2206 = vmatprep.subr.mxu0 0.0
    %2207 = vmatpush1.msra.mxu0 0.0
    %2208 = vmatprep.subr.mxu0 0.0
    %2209 = vmatpush1.msra.mxu0 0.0
    %2210 = vmatprep.subr.mxu0 0.0
    %2211 = vmatpush1.msra.mxu0 0.0
    %2212 = vmatprep.subr.mxu0 0.0
    %2213 = vmatpush1.msra.mxu0 0.0
    %2214 = vmatprep.subr.mxu0 0.0
    %2215 = vmatpush1.msra.mxu0 0.0
    %2216 = vmatprep.subr.mxu0 0.0
    %2217 = vmatpush1.msra.mxu0 0.0
    %2218 = vmatprep.subr.mxu0 0.0
    %2219 = vmatpush1.msra.mxu0 0.0
    %2220 = vmatprep.subr.mxu0 0.0
    %2221 = vmatpush1.msra.mxu0 0.0
    %2222 = vmatprep.subr.mxu0 0.0
    %2223 = vmatpush1.msra.mxu0 0.0
    %2224 = vmatprep.subr.mxu0 0.0
    %2225 = vmatpush1.msra.mxu0 0.0
    %2226 = vmatprep.subr.mxu0 0.0
    %2227 = vmatpush1.msra.mxu0 0.0
    %2228 = vmatprep.subr.mxu0 0.0
    %2229 = vmatpush1.msra.mxu0 0.0
    %2230 = vmatprep.subr.mxu0 0.0
    %2231 = vmatpush1.msra.mxu0 0.0
    %2232 = vmatprep.subr.mxu0 0.0
    %2233 = vmatpush1.msra.mxu0 0.0
    %2234 = vmatprep.mubr.f32.mxu0 0.0
    %2235 = vmatmul.mubr.f32.gmra.mrb[0].mxu0 %v2169
    %v2236 = vpop.f32.mrb[0].mxu0
    %v2237 = vadd.f32 0.0, %v2236
    %v2238 = vpop.f32.mrb[0].mxu0
    %2239 = vdwg.mxu0
    %v2240 = vtanh.pop %v2237
    %v2241 = vsel %vm127, 1.0, %v2240
    %2242 = vmatprep.subr.mxu0 0.0
    %2243 = vmatpush1.msra.mxu0 %v93
    %2244 = vmatprep.subr.mxu0 0.0
    %2245 = vmatpush1.msra.mxu0 %v94
    %2246 = vmatprep.subr.mxu0 0.0
    %2247 = vmatpush1.msra.mxu0 %v95
    %2248 = vmatprep.subr.mxu0 0.0
    %2249 = vmatpush1.msra.mxu0 %v96
    %2250 = vmatprep.subr.mxu0 0.0
    %2251 = vmatpush1.msra.mxu0 %v97
    %2252 = vmatprep.subr.mxu0 0.0
    %2253 = vmatpush1.msra.mxu0 %v98
    %2254 = vmatprep.subr.mxu0 0.0
    %2255 = vmatpush1.msra.mxu0 %v99
    %2256 = vmatprep.subr.mxu0 0.0
    %2257 = vmatpush1.msra.mxu0 %v100
    %2258 = vmatprep.subr.mxu0 0.0
    %2259 = vmatpush1.msra.mxu0 %v101
    %2260 = vmatprep.subr.mxu0 0.0
    %2261 = vmatpush1.msra.mxu0 %v102
    %2262 = vmatprep.subr.mxu0 0.0
    %2263 = vmatpush1.msra.mxu0 %v103
    %2264 = vmatprep.subr.mxu0 0.0
    %2265 = vmatpush1.msra.mxu0 %v104
    %2266 = vmatprep.subr.mxu0 0.0
    %2267 = vmatpush1.msra.mxu0 %v105
    %2268 = vmatprep.subr.mxu0 0.0
    %2269 = vmatpush1.msra.mxu0 %v106
    %2270 = vmatprep.subr.mxu0 0.0
    %2271 = vmatpush1.msra.mxu0 %v107
    %2272 = vmatprep.subr.mxu0 0.0
    %2273 = vmatpush1.msra.mxu0 %v108
    %2274 = vmatprep.subr.mxu0 0.0
    %2275 = vmatpush1.msra.mxu0 0.0
    %2276 = vmatprep.subr.mxu0 0.0
    %2277 = vmatpush1.msra.mxu0 0.0
    %2278 = vmatprep.subr.mxu0 0.0
    %2279 = vmatpush1.msra.mxu0 0.0
    %2280 = vmatprep.subr.mxu0 0.0
    %2281 = vmatpush1.msra.mxu0 0.0
    %2282 = vmatprep.subr.mxu0 0.0
    %2283 = vmatpush1.msra.mxu0 0.0
    %2284 = vmatprep.subr.mxu0 0.0
    %2285 = vmatpush1.msra.mxu0 0.0
    %2286 = vmatprep.subr.mxu0 0.0
    %2287 = vmatpush1.msra.mxu0 0.0
    %2288 = vmatprep.subr.mxu0 0.0
    %2289 = vmatpush1.msra.mxu0 0.0
    %2290 = vmatprep.subr.mxu0 0.0
    %2291 = vmatpush1.msra.mxu0 0.0
    %2292 = vmatprep.subr.mxu0 0.0
    %2293 = vmatpush1.msra.mxu0 0.0
    %2294 = vmatprep.subr.mxu0 0.0
    %2295 = vmatpush1.msra.mxu0 0.0
    %2296 = vmatprep.subr.mxu0 0.0
    %2297 = vmatpush1.msra.mxu0 0.0
    %2298 = vmatprep.subr.mxu0 0.0
    %2299 = vmatpush1.msra.mxu0 0.0
    %2300 = vmatprep.subr.mxu0 0.0
    %2301 = vmatpush1.msra.mxu0 0.0
    %2302 = vmatprep.subr.mxu0 0.0
    %2303 = vmatpush1.msra.mxu0 0.0
    %2304 = vmatprep.subr.mxu0 0.0
    %2305 = vmatpush1.msra.mxu0 0.0
    %2306 = vmatprep.mubr.f32.mxu0 0.0
    %2307 = vmatmul.mubr.f32.gmra.mrb[0].mxu0 %v2241
    %v2308 = vpop.f32.mrb[0].mxu0
    %v2309 = vadd.f32 0.0, %v2308
    %v2310 = vpop.f32.mrb[0].mxu0
    %2311 = vdwg.mxu0
    %v2312 = vmul.f32 %v418, %v2309
    %v2313 = vadd.f32 %v2167, %v2312
    %v2314 = vmul.f32 %v567, %v2309
    %v2315 = vadd.f32 %v1877, %v2314
    %2316 = vmatprep.subr.mxu0 0.0
    %2317 = vmatpush1.msra.mxu0 %v77
    %2318 = vmatprep.subr.mxu0 0.0
    %2319 = vmatpush1.msra.mxu0 %v78
    %2320 = vmatprep.subr.mxu0 0.0
    %2321 = vmatpush1.msra.mxu0 %v79
    %2322 = vmatprep.subr.mxu0 0.0
    %2323 = vmatpush1.msra.mxu0 %v80
    %2324 = vmatprep.subr.mxu0 0.0
    %2325 = vmatpush1.msra.mxu0 %v81
    %2326 = vmatprep.subr.mxu0 0.0
    %2327 = vmatpush1.msra.mxu0 %v82
    %2328 = vmatprep.subr.mxu0 0.0
    %2329 = vmatpush1.msra.mxu0 %v83
    %2330 = vmatprep.subr.mxu0 0.0
    %2331 = vmatpush1.msra.mxu0 %v84
    %2332 = vmatprep.subr.mxu0 0.0
    %2333 = vmatpush1.msra.mxu0 %v85
    %2334 = vmatprep.subr.mxu0 0.0
    %2335 = vmatpush1.msra.mxu0 %v86
    %2336 = vmatprep.subr.mxu0 0.0
    %2337 = vmatpush1.msra.mxu0 %v87
    %2338 = vmatprep.subr.mxu0 0.0
    %2339 = vmatpush1.msra.mxu0 %v88
    %2340 = vmatprep.subr.mxu0 0.0
    %2341 = vmatpush1.msra.mxu0 %v89
    %2342 = vmatprep.subr.mxu0 0.0
    %2343 = vmatpush1.msra.mxu0 %v90
    %2344 = vmatprep.subr.mxu0 0.0
    %2345 = vmatpush1.msra.mxu0 %v91
    %2346 = vmatprep.subr.mxu0 0.0
    %2347 = vmatpush1.msra.mxu0 %v92
    %2348 = vmatprep.subr.mxu0 0.0
    %2349 = vmatpush1.msra.mxu0 0.0
    %2350 = vmatprep.subr.mxu0 0.0
    %2351 = vmatpush1.msra.mxu0 0.0
    %2352 = vmatprep.subr.mxu0 0.0
    %2353 = vmatpush1.msra.mxu0 0.0
    %2354 = vmatprep.subr.mxu0 0.0
    %2355 = vmatpush1.msra.mxu0 0.0
    %2356 = vmatprep.subr.mxu0 0.0
    %2357 = vmatpush1.msra.mxu0 0.0
    %2358 = vmatprep.subr.mxu0 0.0
    %2359 = vmatpush1.msra.mxu0 0.0
    %2360 = vmatprep.subr.mxu0 0.0
    %2361 = vmatpush1.msra.mxu0 0.0
    %2362 = vmatprep.subr.mxu0 0.0
    %2363 = vmatpush1.msra.mxu0 0.0
    %2364 = vmatprep.subr.mxu0 0.0
    %2365 = vmatpush1.msra.mxu0 0.0
    %2366 = vmatprep.subr.mxu0 0.0
    %2367 = vmatpush1.msra.mxu0 0.0
    %2368 = vmatprep.subr.mxu0 0.0
    %2369 = vmatpush1.msra.mxu0 0.0
    %2370 = vmatprep.subr.mxu0 0.0
    %2371 = vmatpush1.msra.mxu0 0.0
    %2372 = vmatprep.subr.mxu0 0.0
    %2373 = vmatpush1.msra.mxu0 0.0
    %2374 = vmatprep.subr.mxu0 0.0
    %2375 = vmatpush1.msra.mxu0 0.0
    %2376 = vmatprep.subr.mxu0 0.0
    %2377 = vmatpush1.msra.mxu0 0.0
    %2378 = vmatprep.subr.mxu0 0.0
    %2379 = vmatpush1.msra.mxu0 0.0
    %2380 = vmatprep.mubr.f32.mxu0 0.0
    %2381 = vmatmul.mubr.f32.gmra.mrb[0].mxu0 %v2315
    %v2382 = vpop.f32.mrb[0].mxu0
    %v2383 = vadd.f32 0.0, %v2382
    %v2384 = vpop.f32.mrb[0].mxu0
    %2385 = vdwg.mxu0
    %v2386 = vtanh.pop %v2383
    %v2387 = vsel %vm127, 1.0, %v2386
    %2388 = vmatprep.subr.mxu0 0.0
    %2389 = vmatpush1.msra.mxu0 %v93
    %2390 = vmatprep.subr.mxu0 0.0
    %2391 = vmatpush1.msra.mxu0 %v94
    %2392 = vmatprep.subr.mxu0 0.0
    %2393 = vmatpush1.msra.mxu0 %v95
    %2394 = vmatprep.subr.mxu0 0.0
    %2395 = vmatpush1.msra.mxu0 %v96
    %2396 = vmatprep.subr.mxu0 0.0
    %2397 = vmatpush1.msra.mxu0 %v97
    %2398 = vmatprep.subr.mxu0 0.0
    %2399 = vmatpush1.msra.mxu0 %v98
    %2400 = vmatprep.subr.mxu0 0.0
    %2401 = vmatpush1.msra.mxu0 %v99
    %2402 = vmatprep.subr.mxu0 0.0
    %2403 = vmatpush1.msra.mxu0 %v100
    %2404 = vmatprep.subr.mxu0 0.0
    %2405 = vmatpush1.msra.mxu0 %v101
    %2406 = vmatprep.subr.mxu0 0.0
    %2407 = vmatpush1.msra.mxu0 %v102
    %2408 = vmatprep.subr.mxu0 0.0
    %2409 = vmatpush1.msra.mxu0 %v103
    %2410 = vmatprep.subr.mxu0 0.0
    %2411 = vmatpush1.msra.mxu0 %v104
    %2412 = vmatprep.subr.mxu0 0.0
    %2413 = vmatpush1.msra.mxu0 %v105
    %2414 = vmatprep.subr.mxu0 0.0
    %2415 = vmatpush1.msra.mxu0 %v106
    %2416 = vmatprep.subr.mxu0 0.0
    %2417 = vmatpush1.msra.mxu0 %v107
    %2418 = vmatprep.subr.mxu0 0.0
    %2419 = vmatpush1.msra.mxu0 %v108
    %2420 = vmatprep.subr.mxu0 0.0
    %2421 = vmatpush1.msra.mxu0 0.0
    %2422 = vmatprep.subr.mxu0 0.0
    %2423 = vmatpush1.msra.mxu0 0.0
    %2424 = vmatprep.subr.mxu0 0.0
    %2425 = vmatpush1.msra.mxu0 0.0
    %2426 = vmatprep.subr.mxu0 0.0
    %2427 = vmatpush1.msra.mxu0 0.0
    %2428 = vmatprep.subr.mxu0 0.0
    %2429 = vmatpush1.msra.mxu0 0.0
    %2430 = vmatprep.subr.mxu0 0.0
    %2431 = vmatpush1.msra.mxu0 0.0
    %2432 = vmatprep.subr.mxu0 0.0
    %2433 = vmatpush1.msra.mxu0 0.0
    %2434 = vmatprep.subr.mxu0 0.0
    %2435 = vmatpush1.msra.mxu0 0.0
    %2436 = vmatprep.subr.mxu0 0.0
    %2437 = vmatpush1.msra.mxu0 0.0
    %2438 = vmatprep.subr.mxu0 0.0
    %2439 = vmatpush1.msra.mxu0 0.0
    %2440 = vmatprep.subr.mxu0 0.0
    %2441 = vmatpush1.msra.mxu0 0.0
    %2442 = vmatprep.subr.mxu0 0.0
    %2443 = vmatpush1.msra.mxu0 0.0
    %2444 = vmatprep.subr.mxu0 0.0
    %2445 = vmatpush1.msra.mxu0 0.0
    %2446 = vmatprep.subr.mxu0 0.0
    %2447 = vmatpush1.msra.mxu0 0.0
    %2448 = vmatprep.subr.mxu0 0.0
    %2449 = vmatpush1.msra.mxu0 0.0
    %2450 = vmatprep.subr.mxu0 0.0
    %2451 = vmatpush1.msra.mxu0 0.0
    %2452 = vmatprep.mubr.f32.mxu0 0.0
    %2453 = vmatmul.mubr.f32.gmra.mrb[0].mxu0 %v2387
    %v2454 = vpop.f32.mrb[0].mxu0
    %v2455 = vadd.f32 0.0, %v2454
    %v2456 = vpop.f32.mrb[0].mxu0
    %2457 = vdwg.mxu0
    %v2458 = vmul.f32 %v270, %v2455
    %v2459 = vadd.f32 %v2313, %v2458
    %2460 = vmatprep.subr.mxu0 0.0
    %2461 = vmatpush1.msra.mxu0 %v77
    %2462 = vmatprep.subr.mxu0 0.0
    %2463 = vmatpush1.msra.mxu0 %v78
    %2464 = vmatprep.subr.mxu0 0.0
    %2465 = vmatpush1.msra.mxu0 %v79
    %2466 = vmatprep.subr.mxu0 0.0
    %2467 = vmatpush1.msra.mxu0 %v80
    %2468 = vmatprep.subr.mxu0 0.0
    %2469 = vmatpush1.msra.mxu0 %v81
    %2470 = vmatprep.subr.mxu0 0.0
    %2471 = vmatpush1.msra.mxu0 %v82
    %2472 = vmatprep.subr.mxu0 0.0
    %2473 = vmatpush1.msra.mxu0 %v83
    %2474 = vmatprep.subr.mxu0 0.0
    %2475 = vmatpush1.msra.mxu0 %v84
    %2476 = vmatprep.subr.mxu0 0.0
    %2477 = vmatpush1.msra.mxu0 %v85
    %2478 = vmatprep.subr.mxu0 0.0
    %2479 = vmatpush1.msra.mxu0 %v86
    %2480 = vmatprep.subr.mxu0 0.0
    %2481 = vmatpush1.msra.mxu0 %v87
    %2482 = vmatprep.subr.mxu0 0.0
    %2483 = vmatpush1.msra.mxu0 %v88
    %2484 = vmatprep.subr.mxu0 0.0
    %2485 = vmatpush1.msra.mxu0 %v89
    %2486 = vmatprep.subr.mxu0 0.0
    %2487 = vmatpush1.msra.mxu0 %v90
    %2488 = vmatprep.subr.mxu0 0.0
    %2489 = vmatpush1.msra.mxu0 %v91
    %2490 = vmatprep.subr.mxu0 0.0
    %2491 = vmatpush1.msra.mxu0 %v92
    %2492 = vmatprep.subr.mxu0 0.0
    %2493 = vmatpush1.msra.mxu0 0.0
    %2494 = vmatprep.subr.mxu0 0.0
    %2495 = vmatpush1.msra.mxu0 0.0
    %2496 = vmatprep.subr.mxu0 0.0
    %2497 = vmatpush1.msra.mxu0 0.0
    %2498 = vmatprep.subr.mxu0 0.0
    %2499 = vmatpush1.msra.mxu0 0.0
    %2500 = vmatprep.subr.mxu0 0.0
    %2501 = vmatpush1.msra.mxu0 0.0
    %2502 = vmatprep.subr.mxu0 0.0
    %2503 = vmatpush1.msra.mxu0 0.0
    %2504 = vmatprep.subr.mxu0 0.0
    %2505 = vmatpush1.msra.mxu0 0.0
    %2506 = vmatprep.subr.mxu0 0.0
    %2507 = vmatpush1.msra.mxu0 0.0
    %2508 = vmatprep.subr.mxu0 0.0
    %2509 = vmatpush1.msra.mxu0 0.0
    %2510 = vmatprep.subr.mxu0 0.0
    %2511 = vmatpush1.msra.mxu0 0.0
    %2512 = vmatprep.subr.mxu0 0.0
    %2513 = vmatpush1.msra.mxu0 0.0
    %2514 = vmatprep.subr.mxu0 0.0
    %2515 = vmatpush1.msra.mxu0 0.0
    %2516 = vmatprep.subr.mxu0 0.0
    %2517 = vmatpush1.msra.mxu0 0.0
    %2518 = vmatprep.subr.mxu0 0.0
    %2519 = vmatpush1.msra.mxu0 0.0
    %2520 = vmatprep.subr.mxu0 0.0
    %2521 = vmatpush1.msra.mxu0 0.0
    %2522 = vmatprep.subr.mxu0 0.0
    %2523 = vmatpush1.msra.mxu0 0.0
    %2524 = vmatprep.mubr.f32.mxu0 0.0
    %2525 = vmatmul.mubr.f32.gmra.mrb[0].mxu0 %v2459
    %v2526 = vpop.f32.mrb[0].mxu0
    %v2527 = vadd.f32 0.0, %v2526
    %v2528 = vpop.f32.mrb[0].mxu0
    %2529 = vdwg.mxu0
    %v2530 = vtanh.pop %v2527
    %v2531 = vsel %vm127, 1.0, %v2530
    %2532 = vmatprep.subr.mxu0 0.0
    %2533 = vmatpush1.msra.mxu0 %v93
    %2534 = vmatprep.subr.mxu0 0.0
    %2535 = vmatpush1.msra.mxu0 %v94
    %2536 = vmatprep.subr.mxu0 0.0
    %2537 = vmatpush1.msra.mxu0 %v95
    %2538 = vmatprep.subr.mxu0 0.0
    %2539 = vmatpush1.msra.mxu0 %v96
    %2540 = vmatprep.subr.mxu0 0.0
    %2541 = vmatpush1.msra.mxu0 %v97
    %2542 = vmatprep.subr.mxu0 0.0
    %2543 = vmatpush1.msra.mxu0 %v98
    %2544 = vmatprep.subr.mxu0 0.0
    %2545 = vmatpush1.msra.mxu0 %v99
    %2546 = vmatprep.subr.mxu0 0.0
    %2547 = vmatpush1.msra.mxu0 %v100
    %2548 = vmatprep.subr.mxu0 0.0
    %2549 = vmatpush1.msra.mxu0 %v101
    %2550 = vmatprep.subr.mxu0 0.0
    %2551 = vmatpush1.msra.mxu0 %v102
    %2552 = vmatprep.subr.mxu0 0.0
    %2553 = vmatpush1.msra.mxu0 %v103
    %2554 = vmatprep.subr.mxu0 0.0
    %2555 = vmatpush1.msra.mxu0 %v104
    %2556 = vmatprep.subr.mxu0 0.0
    %2557 = vmatpush1.msra.mxu0 %v105
    %2558 = vmatprep.subr.mxu0 0.0
    %2559 = vmatpush1.msra.mxu0 %v106
    %2560 = vmatprep.subr.mxu0 0.0
    %2561 = vmatpush1.msra.mxu0 %v107
    %2562 = vmatprep.subr.mxu0 0.0
    %2563 = vmatpush1.msra.mxu0 %v108
    %2564 = vmatprep.subr.mxu0 0.0
    %2565 = vmatpush1.msra.mxu0 0.0
    %2566 = vmatprep.subr.mxu0 0.0
    %2567 = vmatpush1.msra.mxu0 0.0
    %2568 = vmatprep.subr.mxu0 0.0
    %2569 = vmatpush1.msra.mxu0 0.0
    %2570 = vmatprep.subr.mxu0 0.0
    %2571 = vmatpush1.msra.mxu0 0.0
    %2572 = vmatprep.subr.mxu0 0.0
    %2573 = vmatpush1.msra.mxu0 0.0
    %2574 = vmatprep.subr.mxu0 0.0
    %2575 = vmatpush1.msra.mxu0 0.0
    %2576 = vmatprep.subr.mxu0 0.0
    %2577 = vmatpush1.msra.mxu0 0.0
    %2578 = vmatprep.subr.mxu0 0.0
    %2579 = vmatpush1.msra.mxu0 0.0
    %2580 = vmatprep.subr.mxu0 0.0
    %2581 = vmatpush1.msra.mxu0 0.0
    %2582 = vmatprep.subr.mxu0 0.0
    %2583 = vmatpush1.msra.mxu0 0.0
    %2584 = vmatprep.subr.mxu0 0.0
    %2585 = vmatpush1.msra.mxu0 0.0
    %2586 = vmatprep.subr.mxu0 0.0
    %2587 = vmatpush1.msra.mxu0 0.0
    %2588 = vmatprep.subr.mxu0 0.0
    %2589 = vmatpush1.msra.mxu0 0.0
    %2590 = vmatprep.subr.mxu0 0.0
    %2591 = vmatpush1.msra.mxu0 0.0
    %2592 = vmatprep.subr.mxu0 0.0
    %2593 = vmatpush1.msra.mxu0 0.0
    %2594 = vmatprep.subr.mxu0 0.0
    %2595 = vmatpush1.msra.mxu0 0.0
    %2596 = vmatprep.mubr.f32.mxu0 0.0
    %2597 = vmatmul.mubr.f32.gmra.mrb[0].mxu0 %v2531
    %v2598 = vpop.f32.mrb[0].mxu0
    %v2599 = vadd.f32 0.0, %v2598
    %v2600 = vpop.f32.mrb[0].mxu0
    %2601 = vdwg.mxu0
    %v2602 = vmul.f32 %v270, %v2599
    %v2603 = vadd.f32 %v2459, %v2602
    %v2604 = vmul.f32 %v273, %v2599
    %v2605 = vadd.f32 %v2459, %v2604
    %2606 = vmatprep.subr.mxu0 0.0
    %2607 = vmatpush1.msra.mxu0 %v77
    %2608 = vmatprep.subr.mxu0 0.0
    %2609 = vmatpush1.msra.mxu0 %v78
    %2610 = vmatprep.subr.mxu0 0.0
    %2611 = vmatpush1.msra.mxu0 %v79
    %2612 = vmatprep.subr.mxu0 0.0
    %2613 = vmatpush1.msra.mxu0 %v80
    %2614 = vmatprep.subr.mxu0 0.0
    %2615 = vmatpush1.msra.mxu0 %v81
    %2616 = vmatprep.subr.mxu0 0.0
    %2617 = vmatpush1.msra.mxu0 %v82
    %2618 = vmatprep.subr.mxu0 0.0
    %2619 = vmatpush1.msra.mxu0 %v83
    %2620 = vmatprep.subr.mxu0 0.0
    %2621 = vmatpush1.msra.mxu0 %v84
    %2622 = vmatprep.subr.mxu0 0.0
    %2623 = vmatpush1.msra.mxu0 %v85
    %2624 = vmatprep.subr.mxu0 0.0
    %2625 = vmatpush1.msra.mxu0 %v86
    %2626 = vmatprep.subr.mxu0 0.0
    %2627 = vmatpush1.msra.mxu0 %v87
    %2628 = vmatprep.subr.mxu0 0.0
    %2629 = vmatpush1.msra.mxu0 %v88
    %2630 = vmatprep.subr.mxu0 0.0
    %2631 = vmatpush1.msra.mxu0 %v89
    %2632 = vmatprep.subr.mxu0 0.0
    %2633 = vmatpush1.msra.mxu0 %v90
    %2634 = vmatprep.subr.mxu0 0.0
    %2635 = vmatpush1.msra.mxu0 %v91
    %2636 = vmatprep.subr.mxu0 0.0
    %2637 = vmatpush1.msra.mxu0 %v92
    %2638 = vmatprep.subr.mxu0 0.0
    %2639 = vmatpush1.msra.mxu0 0.0
    %2640 = vmatprep.subr.mxu0 0.0
    %2641 = vmatpush1.msra.mxu0 0.0
    %2642 = vmatprep.subr.mxu0 0.0
    %2643 = vmatpush1.msra.mxu0 0.0
    %2644 = vmatprep.subr.mxu0 0.0
    %2645 = vmatpush1.msra.mxu0 0.0
    %2646 = vmatprep.subr.mxu0 0.0
    %2647 = vmatpush1.msra.mxu0 0.0
    %2648 = vmatprep.subr.mxu0 0.0
    %2649 = vmatpush1.msra.mxu0 0.0
    %2650 = vmatprep.subr.mxu0 0.0
    %2651 = vmatpush1.msra.mxu0 0.0
    %2652 = vmatprep.subr.mxu0 0.0
    %2653 = vmatpush1.msra.mxu0 0.0
    %2654 = vmatprep.subr.mxu0 0.0
    %2655 = vmatpush1.msra.mxu0 0.0
    %2656 = vmatprep.subr.mxu0 0.0
    %2657 = vmatpush1.msra.mxu0 0.0
    %2658 = vmatprep.subr.mxu0 0.0
    %2659 = vmatpush1.msra.mxu0 0.0
    %2660 = vmatprep.subr.mxu0 0.0
    %2661 = vmatpush1.msra.mxu0 0.0
    %2662 = vmatprep.subr.mxu0 0.0
    %2663 = vmatpush1.msra.mxu0 0.0
    %2664 = vmatprep.subr.mxu0 0.0
    %2665 = vmatpush1.msra.mxu0 0.0
    %2666 = vmatprep.subr.mxu0 0.0
    %2667 = vmatpush1.msra.mxu0 0.0
    %2668 = vmatprep.subr.mxu0 0.0
    %2669 = vmatpush1.msra.mxu0 0.0
    %2670 = vmatprep.mubr.f32.mxu0 0.0
    %2671 = vmatmul.mubr.f32.gmra.mrb[0].mxu0 %v2605
    %v2672 = vpop.f32.mrb[0].mxu0
    %v2673 = vadd.f32 0.0, %v2672
    %v2674 = vpop.f32.mrb[0].mxu0
    %2675 = vdwg.mxu0
    %v2676 = vtanh.pop %v2673
    %v2677 = vsel %vm127, 1.0, %v2676
    %2678 = vmatprep.subr.mxu0 0.0
    %2679 = vmatpush1.msra.mxu0 %v93
    %2680 = vmatprep.subr.mxu0 0.0
    %2681 = vmatpush1.msra.mxu0 %v94
    %2682 = vmatprep.subr.mxu0 0.0
    %2683 = vmatpush1.msra.mxu0 %v95
    %2684 = vmatprep.subr.mxu0 0.0
    %2685 = vmatpush1.msra.mxu0 %v96
    %2686 = vmatprep.subr.mxu0 0.0
    %2687 = vmatpush1.msra.mxu0 %v97
    %2688 = vmatprep.subr.mxu0 0.0
    %2689 = vmatpush1.msra.mxu0 %v98
    %2690 = vmatprep.subr.mxu0 0.0
    %2691 = vmatpush1.msra.mxu0 %v99
    %2692 = vmatprep.subr.mxu0 0.0
    %2693 = vmatpush1.msra.mxu0 %v100
    %2694 = vmatprep.subr.mxu0 0.0
    %2695 = vmatpush1.msra.mxu0 %v101
    %2696 = vmatprep.subr.mxu0 0.0
    %2697 = vmatpush1.msra.mxu0 %v102
    %2698 = vmatprep.subr.mxu0 0.0
    %2699 = vmatpush1.msra.mxu0 %v103
    %2700 = vmatprep.subr.mxu0 0.0
    %2701 = vmatpush1.msra.mxu0 %v104
    %2702 = vmatprep.subr.mxu0 0.0
    %2703 = vmatpush1.msra.mxu0 %v105
    %2704 = vmatprep.subr.mxu0 0.0
    %2705 = vmatpush1.msra.mxu0 %v106
    %2706 = vmatprep.subr.mxu0 0.0
    %2707 = vmatpush1.msra.mxu0 %v107
    %2708 = vmatprep.subr.mxu0 0.0
    %2709 = vmatpush1.msra.mxu0 %v108
    %2710 = vmatprep.subr.mxu0 0.0
    %2711 = vmatpush1.msra.mxu0 0.0
    %2712 = vmatprep.subr.mxu0 0.0
    %2713 = vmatpush1.msra.mxu0 0.0
    %2714 = vmatprep.subr.mxu0 0.0
    %2715 = vmatpush1.msra.mxu0 0.0
    %2716 = vmatprep.subr.mxu0 0.0
    %2717 = vmatpush1.msra.mxu0 0.0
    %2718 = vmatprep.subr.mxu0 0.0
    %2719 = vmatpush1.msra.mxu0 0.0
    %2720 = vmatprep.subr.mxu0 0.0
    %2721 = vmatpush1.msra.mxu0 0.0
    %2722 = vmatprep.subr.mxu0 0.0
    %2723 = vmatpush1.msra.mxu0 0.0
    %2724 = vmatprep.subr.mxu0 0.0
    %2725 = vmatpush1.msra.mxu0 0.0
    %2726 = vmatprep.subr.mxu0 0.0
    %2727 = vmatpush1.msra.mxu0 0.0
    %2728 = vmatprep.subr.mxu0 0.0
    %2729 = vmatpush1.msra.mxu0 0.0
    %2730 = vmatprep.subr.mxu0 0.0
    %2731 = vmatpush1.msra.mxu0 0.0
    %2732 = vmatprep.subr.mxu0 0.0
    %2733 = vmatpush1.msra.mxu0 0.0
    %2734 = vmatprep.subr.mxu0 0.0
    %2735 = vmatpush1.msra.mxu0 0.0
    %2736 = vmatprep.subr.mxu0 0.0
    %2737 = vmatpush1.msra.mxu0 0.0
    %2738 = vmatprep.subr.mxu0 0.0
    %2739 = vmatpush1.msra.mxu0 0.0
    %2740 = vmatprep.subr.mxu0 0.0
    %2741 = vmatpush1.msra.mxu0 0.0
    %2742 = vmatprep.mubr.f32.mxu0 0.0
    %2743 = vmatmul.mubr.f32.gmra.mrb[0].mxu0 %v2677
    %v2744 = vpop.f32.mrb[0].mxu0
    %v2745 = vadd.f32 0.0, %v2744
    %v2746 = vpop.f32.mrb[0].mxu0
    %2747 = vdwg.mxu0
    %v2748 = vmul.f32 %v418, %v2745
    %v2749 = vadd.f32 %v2603, %v2748
    %v2750 = vmul.f32 %v273, %v2745
    %v2751 = vadd.f32 %v2459, %v2750
    %2752 = vmatprep.subr.mxu0 0.0
    %2753 = vmatpush1.msra.mxu0 %v77
    %2754 = vmatprep.subr.mxu0 0.0
    %2755 = vmatpush1.msra.mxu0 %v78
    %2756 = vmatprep.subr.mxu0 0.0
    %2757 = vmatpush1.msra.mxu0 %v79
    %2758 = vmatprep.subr.mxu0 0.0
    %2759 = vmatpush1.msra.mxu0 %v80
    %2760 = vmatprep.subr.mxu0 0.0
    %2761 = vmatpush1.msra.mxu0 %v81
    %2762 = vmatprep.subr.mxu0 0.0
    %2763 = vmatpush1.msra.mxu0 %v82
    %2764 = vmatprep.subr.mxu0 0.0
    %2765 = vmatpush1.msra.mxu0 %v83
    %2766 = vmatprep.subr.mxu0 0.0
    %2767 = vmatpush1.msra.mxu0 %v84
    %2768 = vmatprep.subr.mxu0 0.0
    %2769 = vmatpush1.msra.mxu0 %v85
    %2770 = vmatprep.subr.mxu0 0.0
    %2771 = vmatpush1.msra.mxu0 %v86
    %2772 = vmatprep.subr.mxu0 0.0
    %2773 = vmatpush1.msra.mxu0 %v87
    %2774 = vmatprep.subr.mxu0 0.0
    %2775 = vmatpush1.msra.mxu0 %v88
    %2776 = vmatprep.subr.mxu0 0.0
    %2777 = vmatpush1.msra.mxu0 %v89
    %2778 = vmatprep.subr.mxu0 0.0
    %2779 = vmatpush1.msra.mxu0 %v90
    %2780 = vmatprep.subr.mxu0 0.0
    %2781 = vmatpush1.msra.mxu0 %v91
    %2782 = vmatprep.subr.mxu0 0.0
    %2783 = vmatpush1.msra.mxu0 %v92
    %2784 = vmatprep.subr.mxu0 0.0
    %2785 = vmatpush1.msra.mxu0 0.0
    %2786 = vmatprep.subr.mxu0 0.0
    %2787 = vmatpush1.msra.mxu0 0.0
    %2788 = vmatprep.subr.mxu0 0.0
    %2789 = vmatpush1.msra.mxu0 0.0
    %2790 = vmatprep.subr.mxu0 0.0
    %2791 = vmatpush1.msra.mxu0 0.0
    %2792 = vmatprep.subr.mxu0 0.0
    %2793 = vmatpush1.msra.mxu0 0.0
    %2794 = vmatprep.subr.mxu0 0.0
    %2795 = vmatpush1.msra.mxu0 0.0
    %2796 = vmatprep.subr.mxu0 0.0
    %2797 = vmatpush1.msra.mxu0 0.0
    %2798 = vmatprep.subr.mxu0 0.0
    %2799 = vmatpush1.msra.mxu0 0.0
    %2800 = vmatprep.subr.mxu0 0.0
    %2801 = vmatpush1.msra.mxu0 0.0
    %2802 = vmatprep.subr.mxu0 0.0
    %2803 = vmatpush1.msra.mxu0 0.0
    %2804 = vmatprep.subr.mxu0 0.0
    %2805 = vmatpush1.msra.mxu0 0.0
    %2806 = vmatprep.subr.mxu0 0.0
    %2807 = vmatpush1.msra.mxu0 0.0
    %2808 = vmatprep.subr.mxu0 0.0
    %2809 = vmatpush1.msra.mxu0 0.0
    %2810 = vmatprep.subr.mxu0 0.0
    %2811 = vmatpush1.msra.mxu0 0.0
    %2812 = vmatprep.subr.mxu0 0.0
    %2813 = vmatpush1.msra.mxu0 0.0
    %2814 = vmatprep.subr.mxu0 0.0
    %2815 = vmatpush1.msra.mxu0 0.0
    %2816 = vmatprep.mubr.f32.mxu0 0.0
    %2817 = vmatmul.mubr.f32.gmra.mrb[0].mxu0 %v2751
    %v2818 = vpop.f32.mrb[0].mxu0
    %v2819 = vadd.f32 0.0, %v2818
    %v2820 = vpop.f32.mrb[0].mxu0
    %2821 = vdwg.mxu0
    %v2822 = vtanh.pop %v2819
    %v2823 = vsel %vm127, 1.0, %v2822
    %2824 = vmatprep.subr.mxu0 0.0
    %2825 = vmatpush1.msra.mxu0 %v93
    %2826 = vmatprep.subr.mxu0 0.0
    %2827 = vmatpush1.msra.mxu0 %v94
    %2828 = vmatprep.subr.mxu0 0.0
    %2829 = vmatpush1.msra.mxu0 %v95
    %2830 = vmatprep.subr.mxu0 0.0
    %2831 = vmatpush1.msra.mxu0 %v96
    %2832 = vmatprep.subr.mxu0 0.0
    %2833 = vmatpush1.msra.mxu0 %v97
    %2834 = vmatprep.subr.mxu0 0.0
    %2835 = vmatpush1.msra.mxu0 %v98
    %2836 = vmatprep.subr.mxu0 0.0
    %2837 = vmatpush1.msra.mxu0 %v99
    %2838 = vmatprep.subr.mxu0 0.0
    %2839 = vmatpush1.msra.mxu0 %v100
    %2840 = vmatprep.subr.mxu0 0.0
    %2841 = vmatpush1.msra.mxu0 %v101
    %2842 = vmatprep.subr.mxu0 0.0
    %2843 = vmatpush1.msra.mxu0 %v102
    %2844 = vmatprep.subr.mxu0 0.0
    %2845 = vmatpush1.msra.mxu0 %v103
    %2846 = vmatprep.subr.mxu0 0.0
    %2847 = vmatpush1.msra.mxu0 %v104
    %2848 = vmatprep.subr.mxu0 0.0
    %2849 = vmatpush1.msra.mxu0 %v105
    %2850 = vmatprep.subr.mxu0 0.0
    %2851 = vmatpush1.msra.mxu0 %v106
    %2852 = vmatprep.subr.mxu0 0.0
    %2853 = vmatpush1.msra.mxu0 %v107
    %2854 = vmatprep.subr.mxu0 0.0
    %2855 = vmatpush1.msra.mxu0 %v108
    %2856 = vmatprep.subr.mxu0 0.0
    %2857 = vmatpush1.msra.mxu0 0.0
    %2858 = vmatprep.subr.mxu0 0.0
    %2859 = vmatpush1.msra.mxu0 0.0
    %2860 = vmatprep.subr.mxu0 0.0
    %2861 = vmatpush1.msra.mxu0 0.0
    %2862 = vmatprep.subr.mxu0 0.0
    %2863 = vmatpush1.msra.mxu0 0.0
    %2864 = vmatprep.subr.mxu0 0.0
    %2865 = vmatpush1.msra.mxu0 0.0
    %2866 = vmatprep.subr.mxu0 0.0
    %2867 = vmatpush1.msra.mxu0 0.0
    %2868 = vmatprep.subr.mxu0 0.0
    %2869 = vmatpush1.msra.mxu0 0.0
    %2870 = vmatprep.subr.mxu0 0.0
    %2871 = vmatpush1.msra.mxu0 0.0
    %2872 = vmatprep.subr.mxu0 0.0
    %2873 = vmatpush1.msra.mxu0 0.0
    %2874 = vmatprep.subr.mxu0 0.0
    %2875 = vmatpush1.msra.mxu0 0.0
    %2876 = vmatprep.subr.mxu0 0.0
    %2877 = vmatpush1.msra.mxu0 0.0
    %2878 = vmatprep.subr.mxu0 0.0
    %2879 = vmatpush1.msra.mxu0 0.0
    %2880 = vmatprep.subr.mxu0 0.0
    %2881 = vmatpush1.msra.mxu0 0.0
    %2882 = vmatprep.subr.mxu0 0.0
    %2883 = vmatpush1.msra.mxu0 0.0
    %2884 = vmatprep.subr.mxu0 0.0
    %2885 = vmatpush1.msra.mxu0 0.0
    %2886 = vmatprep.subr.mxu0 0.0
    %2887 = vmatpush1.msra.mxu0 0.0
    %2888 = vmatprep.mubr.f32.mxu0 0.0
    %2889 = vmatmul.mubr.f32.gmra.mrb[0].mxu0 %v2823
    %v2890 = vpop.f32.mrb[0].mxu0
    %v2891 = vadd.f32 0.0, %v2890
    %v2892 = vpop.f32.mrb[0].mxu0
    %2893 = vdwg.mxu0
    %v2894 = vmul.f32 %v418, %v2891
    %v2895 = vadd.f32 %v2749, %v2894
    %v2896 = vmul.f32 %v567, %v2891
    %v2897 = vadd.f32 %v2459, %v2896
    %2898 = vmatprep.subr.mxu0 0.0
    %2899 = vmatpush1.msra.mxu0 %v77
    %2900 = vmatprep.subr.mxu0 0.0
    %2901 = vmatpush1.msra.mxu0 %v78
    %2902 = vmatprep.subr.mxu0 0.0
    %2903 = vmatpush1.msra.mxu0 %v79
    %2904 = vmatprep.subr.mxu0 0.0
    %2905 = vmatpush1.msra.mxu0 %v80
    %2906 = vmatprep.subr.mxu0 0.0
    %2907 = vmatpush1.msra.mxu0 %v81
    %2908 = vmatprep.subr.mxu0 0.0
    %2909 = vmatpush1.msra.mxu0 %v82
    %2910 = vmatprep.subr.mxu0 0.0
    %2911 = vmatpush1.msra.mxu0 %v83
    %2912 = vmatprep.subr.mxu0 0.0
    %2913 = vmatpush1.msra.mxu0 %v84
    %2914 = vmatprep.subr.mxu0 0.0
    %2915 = vmatpush1.msra.mxu0 %v85
    %2916 = vmatprep.subr.mxu0 0.0
    %2917 = vmatpush1.msra.mxu0 %v86
    %2918 = vmatprep.subr.mxu0 0.0
    %2919 = vmatpush1.msra.mxu0 %v87
    %2920 = vmatprep.subr.mxu0 0.0
    %2921 = vmatpush1.msra.mxu0 %v88
    %2922 = vmatprep.subr.mxu0 0.0
    %2923 = vmatpush1.msra.mxu0 %v89
    %2924 = vmatprep.subr.mxu0 0.0
    %2925 = vmatpush1.msra.mxu0 %v90
    %2926 = vmatprep.subr.mxu0 0.0
    %2927 = vmatpush1.msra.mxu0 %v91
    %2928 = vmatprep.subr.mxu0 0.0
    %2929 = vmatpush1.msra.mxu0 %v92
    %2930 = vmatprep.subr.mxu0 0.0
    %2931 = vmatpush1.msra.mxu0 0.0
    %2932 = vmatprep.subr.mxu0 0.0
    %2933 = vmatpush1.msra.mxu0 0.0
    %2934 = vmatprep.subr.mxu0 0.0
    %2935 = vmatpush1.msra.mxu0 0.0
    %2936 = vmatprep.subr.mxu0 0.0
    %2937 = vmatpush1.msra.mxu0 0.0
    %2938 = vmatprep.subr.mxu0 0.0
    %2939 = vmatpush1.msra.mxu0 0.0
    %2940 = vmatprep.subr.mxu0 0.0
    %2941 = vmatpush1.msra.mxu0 0.0
    %2942 = vmatprep.subr.mxu0 0.0
    %2943 = vmatpush1.msra.mxu0 0.0
    %2944 = vmatprep.subr.mxu0 0.0
    %2945 = vmatpush1.msra.mxu0 0.0
    %2946 = vmatprep.subr.mxu0 0.0
    %2947 = vmatpush1.msra.mxu0 0.0
    %2948 = vmatprep.subr.mxu0 0.0
    %2949 = vmatpush1.msra.mxu0 0.0
    %2950 = vmatprep.subr.mxu0 0.0
    %2951 = vmatpush1.msra.mxu0 0.0
    %2952 = vmatprep.subr.mxu0 0.0
    %2953 = vmatpush1.msra.mxu0 0.0
    %2954 = vmatprep.subr.mxu0 0.0
    %2955 = vmatpush1.msra.mxu0 0.0
    %2956 = vmatprep.subr.mxu0 0.0
    %2957 = vmatpush1.msra.mxu0 0.0
    %2958 = vmatprep.subr.mxu0 0.0
    %2959 = vmatpush1.msra.mxu0 0.0
    %2960 = vmatprep.subr.mxu0 0.0
    %2961 = vmatpush1.msra.mxu0 0.0
    %2962 = vmatprep.mubr.f32.mxu0 0.0
    %2963 = vmatmul.mubr.f32.gmra.mrb[0].mxu0 %v2897
    %v2964 = vpop.f32.mrb[0].mxu0
    %v2965 = vadd.f32 0.0, %v2964
    %v2966 = vpop.f32.mrb[0].mxu0
    %2967 = vdwg.mxu0
    %v2968 = vtanh.pop %v2965
    %v2969 = vsel %vm127, 1.0, %v2968
    %2970 = vmatprep.subr.mxu0 0.0
    %2971 = vmatpush1.msra.mxu0 %v93
    %2972 = vmatprep.subr.mxu0 0.0
    %2973 = vmatpush1.msra.mxu0 %v94
    %2974 = vmatprep.subr.mxu0 0.0
    %2975 = vmatpush1.msra.mxu0 %v95
    %2976 = vmatprep.subr.mxu0 0.0
    %2977 = vmatpush1.msra.mxu0 %v96
    %2978 = vmatprep.subr.mxu0 0.0
    %2979 = vmatpush1.msra.mxu0 %v97
    %2980 = vmatprep.subr.mxu0 0.0
    %2981 = vmatpush1.msra.mxu0 %v98
    %2982 = vmatprep.subr.mxu0 0.0
    %2983 = vmatpush1.msra.mxu0 %v99
    %2984 = vmatprep.subr.mxu0 0.0
    %2985 = vmatpush1.msra.mxu0 %v100
    %2986 = vmatprep.subr.mxu0 0.0
    %2987 = vmatpush1.msra.mxu0 %v101
    %2988 = vmatprep.subr.mxu0 0.0
    %2989 = vmatpush1.msra.mxu0 %v102
    %2990 = vmatprep.subr.mxu0 0.0
    %2991 = vmatpush1.msra.mxu0 %v103
    %2992 = vmatprep.subr.mxu0 0.0
    %2993 = vmatpush1.msra.mxu0 %v104
    %2994 = vmatprep.subr.mxu0 0.0
    %2995 = vmatpush1.msra.mxu0 %v105
    %2996 = vmatprep.subr.mxu0 0.0
    %2997 = vmatpush1.msra.mxu0 %v106
    %2998 = vmatprep.subr.mxu0 0.0
    %2999 = vmatpush1.msra.mxu0 %v107
    %3000 = vmatprep.subr.mxu0 0.0
    %3001 = vmatpush1.msra.mxu0 %v108
    %3002 = vmatprep.subr.mxu0 0.0
    %3003 = vmatpush1.msra.mxu0 0.0
    %3004 = vmatprep.subr.mxu0 0.0
    %3005 = vmatpush1.msra.mxu0 0.0
    %3006 = vmatprep.subr.mxu0 0.0
    %3007 = vmatpush1.msra.mxu0 0.0
    %3008 = vmatprep.subr.mxu0 0.0
    %3009 = vmatpush1.msra.mxu0 0.0
    %3010 = vmatprep.subr.mxu0 0.0
    %3011 = vmatpush1.msra.mxu0 0.0
    %3012 = vmatprep.subr.mxu0 0.0
    %3013 = vmatpush1.msra.mxu0 0.0
    %3014 = vmatprep.subr.mxu0 0.0
    %3015 = vmatpush1.msra.mxu0 0.0
    %3016 = vmatprep.subr.mxu0 0.0
    %3017 = vmatpush1.msra.mxu0 0.0
    %3018 = vmatprep.subr.mxu0 0.0
    %3019 = vmatpush1.msra.mxu0 0.0
    %3020 = vmatprep.subr.mxu0 0.0
    %3021 = vmatpush1.msra.mxu0 0.0
    %3022 = vmatprep.subr.mxu0 0.0
    %3023 = vmatpush1.msra.mxu0 0.0
    %3024 = vmatprep.subr.mxu0 0.0
    %3025 = vmatpush1.msra.mxu0 0.0
    %3026 = vmatprep.subr.mxu0 0.0
    %3027 = vmatpush1.msra.mxu0 0.0
    %3028 = vmatprep.subr.mxu0 0.0
    %3029 = vmatpush1.msra.mxu0 0.0
    %3030 = vmatprep.subr.mxu0 0.0
    %3031 = vmatpush1.msra.mxu0 0.0
    %3032 = vmatprep.subr.mxu0 0.0
    %3033 = vmatpush1.msra.mxu0 0.0
    %3034 = vmatprep.mubr.f32.mxu0 0.0
    %3035 = vmatmul.mubr.f32.gmra.mrb[0].mxu0 %v2969
    %v3036 = vpop.f32.mrb[0].mxu0
    %v3037 = vadd.f32 0.0, %v3036
    %v3038 = vpop.f32.mrb[0].mxu0
    %3039 = vdwg.mxu0
    %v3040 = vmul.f32 %v270, %v3037
    %v3041 = vadd.f32 %v2895, %v3040
    %3042 = vmatprep.subr.mxu0 0.0
    %3043 = vmatpush1.msra.mxu0 %v77
    %3044 = vmatprep.subr.mxu0 0.0
    %3045 = vmatpush1.msra.mxu0 %v78
    %3046 = vmatprep.subr.mxu0 0.0
    %3047 = vmatpush1.msra.mxu0 %v79
    %3048 = vmatprep.subr.mxu0 0.0
    %3049 = vmatpush1.msra.mxu0 %v80
    %3050 = vmatprep.subr.mxu0 0.0
    %3051 = vmatpush1.msra.mxu0 %v81
    %3052 = vmatprep.subr.mxu0 0.0
    %3053 = vmatpush1.msra.mxu0 %v82
    %3054 = vmatprep.subr.mxu0 0.0
    %3055 = vmatpush1.msra.mxu0 %v83
    %3056 = vmatprep.subr.mxu0 0.0
    %3057 = vmatpush1.msra.mxu0 %v84
    %3058 = vmatprep.subr.mxu0 0.0
    %3059 = vmatpush1.msra.mxu0 %v85
    %3060 = vmatprep.subr.mxu0 0.0
    %3061 = vmatpush1.msra.mxu0 %v86
    %3062 = vmatprep.subr.mxu0 0.0
    %3063 = vmatpush1.msra.mxu0 %v87
    %3064 = vmatprep.subr.mxu0 0.0
    %3065 = vmatpush1.msra.mxu0 %v88
    %3066 = vmatprep.subr.mxu0 0.0
    %3067 = vmatpush1.msra.mxu0 %v89
    %3068 = vmatprep.subr.mxu0 0.0
    %3069 = vmatpush1.msra.mxu0 %v90
    %3070 = vmatprep.subr.mxu0 0.0
    %3071 = vmatpush1.msra.mxu0 %v91
    %3072 = vmatprep.subr.mxu0 0.0
    %3073 = vmatpush1.msra.mxu0 %v92
    %3074 = vmatprep.subr.mxu0 0.0
    %3075 = vmatpush1.msra.mxu0 0.0
    %3076 = vmatprep.subr.mxu0 0.0
    %3077 = vmatpush1.msra.mxu0 0.0
    %3078 = vmatprep.subr.mxu0 0.0
    %3079 = vmatpush1.msra.mxu0 0.0
    %3080 = vmatprep.subr.mxu0 0.0
    %3081 = vmatpush1.msra.mxu0 0.0
    %3082 = vmatprep.subr.mxu0 0.0
    %3083 = vmatpush1.msra.mxu0 0.0
    %3084 = vmatprep.subr.mxu0 0.0
    %3085 = vmatpush1.msra.mxu0 0.0
    %3086 = vmatprep.subr.mxu0 0.0
    %3087 = vmatpush1.msra.mxu0 0.0
    %3088 = vmatprep.subr.mxu0 0.0
    %3089 = vmatpush1.msra.mxu0 0.0
    %3090 = vmatprep.subr.mxu0 0.0
    %3091 = vmatpush1.msra.mxu0 0.0
    %3092 = vmatprep.subr.mxu0 0.0
    %3093 = vmatpush1.msra.mxu0 0.0
    %3094 = vmatprep.subr.mxu0 0.0
    %3095 = vmatpush1.msra.mxu0 0.0
    %3096 = vmatprep.subr.mxu0 0.0
    %3097 = vmatpush1.msra.mxu0 0.0
    %3098 = vmatprep.subr.mxu0 0.0
    %3099 = vmatpush1.msra.mxu0 0.0
    %3100 = vmatprep.subr.mxu0 0.0
    %3101 = vmatpush1.msra.mxu0 0.0
    %3102 = vmatprep.subr.mxu0 0.0
    %3103 = vmatpush1.msra.mxu0 0.0
    %3104 = vmatprep.subr.mxu0 0.0
    %3105 = vmatpush1.msra.mxu0 0.0
    %3106 = vmatprep.mubr.f32.mxu0 0.0
    %3107 = vmatmul.mubr.f32.gmra.mrb[0].mxu0 %v3041
    %v3108 = vpop.f32.mrb[0].mxu0
    %v3109 = vadd.f32 0.0, %v3108
    %v3110 = vpop.f32.mrb[0].mxu0
    %3111 = vdwg.mxu0
    %v3112 = vtanh.pop %v3109
    %v3113 = vsel %vm127, 1.0, %v3112
    %3114 = vmatprep.subr.mxu0 0.0
    %3115 = vmatpush1.msra.mxu0 %v93
    %3116 = vmatprep.subr.mxu0 0.0
    %3117 = vmatpush1.msra.mxu0 %v94
    %3118 = vmatprep.subr.mxu0 0.0
    %3119 = vmatpush1.msra.mxu0 %v95
    %3120 = vmatprep.subr.mxu0 0.0
    %3121 = vmatpush1.msra.mxu0 %v96
    %3122 = vmatprep.subr.mxu0 0.0
    %3123 = vmatpush1.msra.mxu0 %v97
    %3124 = vmatprep.subr.mxu0 0.0
    %3125 = vmatpush1.msra.mxu0 %v98
    %3126 = vmatprep.subr.mxu0 0.0
    %3127 = vmatpush1.msra.mxu0 %v99
    %3128 = vmatprep.subr.mxu0 0.0
    %3129 = vmatpush1.msra.mxu0 %v100
    %3130 = vmatprep.subr.mxu0 0.0
    %3131 = vmatpush1.msra.mxu0 %v101
    %3132 = vmatprep.subr.mxu0 0.0
    %3133 = vmatpush1.msra.mxu0 %v102
    %3134 = vmatprep.subr.mxu0 0.0
    %3135 = vmatpush1.msra.mxu0 %v103
    %3136 = vmatprep.subr.mxu0 0.0
    %3137 = vmatpush1.msra.mxu0 %v104
    %3138 = vmatprep.subr.mxu0 0.0
    %3139 = vmatpush1.msra.mxu0 %v105
    %3140 = vmatprep.subr.mxu0 0.0
    %3141 = vmatpush1.msra.mxu0 %v106
    %3142 = vmatprep.subr.mxu0 0.0
    %3143 = vmatpush1.msra.mxu0 %v107
    %3144 = vmatprep.subr.mxu0 0.0
    %3145 = vmatpush1.msra.mxu0 %v108
    %3146 = vmatprep.subr.mxu0 0.0
    %3147 = vmatpush1.msra.mxu0 0.0
    %3148 = vmatprep.subr.mxu0 0.0
    %3149 = vmatpush1.msra.mxu0 0.0
    %3150 = vmatprep.subr.mxu0 0.0
    %3151 = vmatpush1.msra.mxu0 0.0
    %3152 = vmatprep.subr.mxu0 0.0
    %3153 = vmatpush1.msra.mxu0 0.0
    %3154 = vmatprep.subr.mxu0 0.0
    %3155 = vmatpush1.msra.mxu0 0.0
    %3156 = vmatprep.subr.mxu0 0.0
    %3157 = vmatpush1.msra.mxu0 0.0
    %3158 = vmatprep.subr.mxu0 0.0
    %3159 = vmatpush1.msra.mxu0 0.0
    %3160 = vmatprep.subr.mxu0 0.0
    %3161 = vmatpush1.msra.mxu0 0.0
    %3162 = vmatprep.subr.mxu0 0.0
    %3163 = vmatpush1.msra.mxu0 0.0
    %3164 = vmatprep.subr.mxu0 0.0
    %3165 = vmatpush1.msra.mxu0 0.0
    %3166 = vmatprep.subr.mxu0 0.0
    %3167 = vmatpush1.msra.mxu0 0.0
    %3168 = vmatprep.subr.mxu0 0.0
    %3169 = vmatpush1.msra.mxu0 0.0
    %3170 = vmatprep.subr.mxu0 0.0
    %3171 = vmatpush1.msra.mxu0 0.0
    %3172 = vmatprep.subr.mxu0 0.0
    %3173 = vmatpush1.msra.mxu0 0.0
    %3174 = vmatprep.subr.mxu0 0.0
    %3175 = vmatpush1.msra.mxu0 0.0
    %3176 = vmatprep.subr.mxu0 0.0
    %3177 = vmatpush1.msra.mxu0 0.0
    %3178 = vmatprep.mubr.f32.mxu0 0.0
    %3179 = vmatmul.mubr.f32.gmra.mrb[0].mxu0 %v3113
    %v3180 = vpop.f32.mrb[0].mxu0
    %v3181 = vadd.f32 0.0, %v3180
    %v3182 = vpop.f32.mrb[0].mxu0
    %3183 = vdwg.mxu0
    %v3184 = vmul.f32 %v270, %v3181
    %v3185 = vadd.f32 %v3041, %v3184
    %v3186 = vmul.f32 %v273, %v3181
    %v3187 = vadd.f32 %v3041, %v3186
    %3188 = vmatprep.subr.mxu0 0.0
    %3189 = vmatpush1.msra.mxu0 %v77
    %3190 = vmatprep.subr.mxu0 0.0
    %3191 = vmatpush1.msra.mxu0 %v78
    %3192 = vmatprep.subr.mxu0 0.0
    %3193 = vmatpush1.msra.mxu0 %v79
    %3194 = vmatprep.subr.mxu0 0.0
    %3195 = vmatpush1.msra.mxu0 %v80
    %3196 = vmatprep.subr.mxu0 0.0
    %3197 = vmatpush1.msra.mxu0 %v81
    %3198 = vmatprep.subr.mxu0 0.0
    %3199 = vmatpush1.msra.mxu0 %v82
    %3200 = vmatprep.subr.mxu0 0.0
    %3201 = vmatpush1.msra.mxu0 %v83
    %3202 = vmatprep.subr.mxu0 0.0
    %3203 = vmatpush1.msra.mxu0 %v84
    %3204 = vmatprep.subr.mxu0 0.0
    %3205 = vmatpush1.msra.mxu0 %v85
    %3206 = vmatprep.subr.mxu0 0.0
    %3207 = vmatpush1.msra.mxu0 %v86
    %3208 = vmatprep.subr.mxu0 0.0
    %3209 = vmatpush1.msra.mxu0 %v87
    %3210 = vmatprep.subr.mxu0 0.0
    %3211 = vmatpush1.msra.mxu0 %v88
    %3212 = vmatprep.subr.mxu0 0.0
    %3213 = vmatpush1.msra.mxu0 %v89
    %3214 = vmatprep.subr.mxu0 0.0
    %3215 = vmatpush1.msra.mxu0 %v90
    %3216 = vmatprep.subr.mxu0 0.0
    %3217 = vmatpush1.msra.mxu0 %v91
    %3218 = vmatprep.subr.mxu0 0.0
    %3219 = vmatpush1.msra.mxu0 %v92
    %3220 = vmatprep.subr.mxu0 0.0
    %3221 = vmatpush1.msra.mxu0 0.0
    %3222 = vmatprep.subr.mxu0 0.0
    %3223 = vmatpush1.msra.mxu0 0.0
    %3224 = vmatprep.subr.mxu0 0.0
    %3225 = vmatpush1.msra.mxu0 0.0
    %3226 = vmatprep.subr.mxu0 0.0
    %3227 = vmatpush1.msra.mxu0 0.0
    %3228 = vmatprep.subr.mxu0 0.0
    %3229 = vmatpush1.msra.mxu0 0.0
    %3230 = vmatprep.subr.mxu0 0.0
    %3231 = vmatpush1.msra.mxu0 0.0
    %3232 = vmatprep.subr.mxu0 0.0
    %3233 = vmatpush1.msra.mxu0 0.0
    %3234 = vmatprep.subr.mxu0 0.0
    %3235 = vmatpush1.msra.mxu0 0.0
    %3236 = vmatprep.subr.mxu0 0.0
    %3237 = vmatpush1.msra.mxu0 0.0
    %3238 = vmatprep.subr.mxu0 0.0
    %3239 = vmatpush1.msra.mxu0 0.0
    %3240 = vmatprep.subr.mxu0 0.0
    %3241 = vmatpush1.msra.mxu0 0.0
    %3242 = vmatprep.subr.mxu0 0.0
    %3243 = vmatpush1.msra.mxu0 0.0
    %3244 = vmatprep.subr.mxu0 0.0
    %3245 = vmatpush1.msra.mxu0 0.0
    %3246 = vmatprep.subr.mxu0 0.0
    %3247 = vmatpush1.msra.mxu0 0.0
    %3248 = vmatprep.subr.mxu0 0.0
    %3249 = vmatpush1.msra.mxu0 0.0
    %3250 = vmatprep.subr.mxu0 0.0
    %3251 = vmatpush1.msra.mxu0 0.0
    %3252 = vmatprep.mubr.f32.mxu0 0.0
    %3253 = vmatmul.mubr.f32.gmra.mrb[0].mxu0 %v3187
    %v3254 = vpop.f32.mrb[0].mxu0
    %v3255 = vadd.f32 0.0, %v3254
    %v3256 = vpop.f32.mrb[0].mxu0
    %3257 = vdwg.mxu0
    %v3258 = vtanh.pop %v3255
    %v3259 = vsel %vm127, 1.0, %v3258
    %3260 = vmatprep.subr.mxu0 0.0
    %3261 = vmatpush1.msra.mxu0 %v93
    %3262 = vmatprep.subr.mxu0 0.0
    %3263 = vmatpush1.msra.mxu0 %v94
    %3264 = vmatprep.subr.mxu0 0.0
    %3265 = vmatpush1.msra.mxu0 %v95
    %3266 = vmatprep.subr.mxu0 0.0
    %3267 = vmatpush1.msra.mxu0 %v96
    %3268 = vmatprep.subr.mxu0 0.0
    %3269 = vmatpush1.msra.mxu0 %v97
    %3270 = vmatprep.subr.mxu0 0.0
    %3271 = vmatpush1.msra.mxu0 %v98
    %3272 = vmatprep.subr.mxu0 0.0
    %3273 = vmatpush1.msra.mxu0 %v99
    %3274 = vmatprep.subr.mxu0 0.0
    %3275 = vmatpush1.msra.mxu0 %v100
    %3276 = vmatprep.subr.mxu0 0.0
    %3277 = vmatpush1.msra.mxu0 %v101
    %3278 = vmatprep.subr.mxu0 0.0
    %3279 = vmatpush1.msra.mxu0 %v102
    %3280 = vmatprep.subr.mxu0 0.0
    %3281 = vmatpush1.msra.mxu0 %v103
    %3282 = vmatprep.subr.mxu0 0.0
    %3283 = vmatpush1.msra.mxu0 %v104
    %3284 = vmatprep.subr.mxu0 0.0
    %3285 = vmatpush1.msra.mxu0 %v105
    %3286 = vmatprep.subr.mxu0 0.0
    %3287 = vmatpush1.msra.mxu0 %v106
    %3288 = vmatprep.subr.mxu0 0.0
    %3289 = vmatpush1.msra.mxu0 %v107
    %3290 = vmatprep.subr.mxu0 0.0
    %3291 = vmatpush1.msra.mxu0 %v108
    %3292 = vmatprep.subr.mxu0 0.0
    %3293 = vmatpush1.msra.mxu0 0.0
    %3294 = vmatprep.subr.mxu0 0.0
    %3295 = vmatpush1.msra.mxu0 0.0
    %3296 = vmatprep.subr.mxu0 0.0
    %3297 = vmatpush1.msra.mxu0 0.0
    %3298 = vmatprep.subr.mxu0 0.0
    %3299 = vmatpush1.msra.mxu0 0.0
    %3300 = vmatprep.subr.mxu0 0.0
    %3301 = vmatpush1.msra.mxu0 0.0
    %3302 = vmatprep.subr.mxu0 0.0
    %3303 = vmatpush1.msra.mxu0 0.0
    %3304 = vmatprep.subr.mxu0 0.0
    %3305 = vmatpush1.msra.mxu0 0.0
    %3306 = vmatprep.subr.mxu0 0.0
    %3307 = vmatpush1.msra.mxu0 0.0
    %3308 = vmatprep.subr.mxu0 0.0
    %3309 = vmatpush1.msra.mxu0 0.0
    %3310 = vmatprep.subr.mxu0 0.0
    %3311 = vmatpush1.msra.mxu0 0.0
    %3312 = vmatprep.subr.mxu0 0.0
    %3313 = vmatpush1.msra.mxu0 0.0
    %3314 = vmatprep.subr.mxu0 0.0
    %3315 = vmatpush1.msra.mxu0 0.0
    %3316 = vmatprep.subr.mxu0 0.0
    %3317 = vmatpush1.msra.mxu0 0.0
    %3318 = vmatprep.subr.mxu0 0.0
    %3319 = vmatpush1.msra.mxu0 0.0
    %3320 = vmatprep.subr.mxu0 0.0
    %3321 = vmatpush1.msra.mxu0 0.0
    %3322 = vmatprep.subr.mxu0 0.0
    %3323 = vmatpush1.msra.mxu0 0.0
    %3324 = vmatprep.mubr.f32.mxu0 0.0
    %3325 = vmatmul.mubr.f32.gmra.mrb[0].mxu0 %v3259
    %v3326 = vpop.f32.mrb[0].mxu0
    %v3327 = vadd.f32 0.0, %v3326
    %v3328 = vpop.f32.mrb[0].mxu0
    %3329 = vdwg.mxu0
    %v3330 = vmul.f32 %v418, %v3327
    %v3331 = vadd.f32 %v3185, %v3330
    %v3332 = vmul.f32 %v273, %v3327
    %v3333 = vadd.f32 %v3041, %v3332
    %3334 = vmatprep.subr.mxu0 0.0
    %3335 = vmatpush1.msra.mxu0 %v77
    %3336 = vmatprep.subr.mxu0 0.0
    %3337 = vmatpush1.msra.mxu0 %v78
    %3338 = vmatprep.subr.mxu0 0.0
    %3339 = vmatpush1.msra.mxu0 %v79
    %3340 = vmatprep.subr.mxu0 0.0
    %3341 = vmatpush1.msra.mxu0 %v80
    %3342 = vmatprep.subr.mxu0 0.0
    %3343 = vmatpush1.msra.mxu0 %v81
    %3344 = vmatprep.subr.mxu0 0.0
    %3345 = vmatpush1.msra.mxu0 %v82
    %3346 = vmatprep.subr.mxu0 0.0
    %3347 = vmatpush1.msra.mxu0 %v83
    %3348 = vmatprep.subr.mxu0 0.0
    %3349 = vmatpush1.msra.mxu0 %v84
    %3350 = vmatprep.subr.mxu0 0.0
    %3351 = vmatpush1.msra.mxu0 %v85
    %3352 = vmatprep.subr.mxu0 0.0
    %3353 = vmatpush1.msra.mxu0 %v86
    %3354 = vmatprep.subr.mxu0 0.0
    %3355 = vmatpush1.msra.mxu0 %v87
    %3356 = vmatprep.subr.mxu0 0.0
    %3357 = vmatpush1.msra.mxu0 %v88
    %3358 = vmatprep.subr.mxu0 0.0
    %3359 = vmatpush1.msra.mxu0 %v89
    %3360 = vmatprep.subr.mxu0 0.0
    %3361 = vmatpush1.msra.mxu0 %v90
    %3362 = vmatprep.subr.mxu0 0.0
    %3363 = vmatpush1.msra.mxu0 %v91
    %3364 = vmatprep.subr.mxu0 0.0
    %3365 = vmatpush1.msra.mxu0 %v92
    %3366 = vmatprep.subr.mxu0 0.0
    %3367 = vmatpush1.msra.mxu0 0.0
    %3368 = vmatprep.subr.mxu0 0.0
    %3369 = vmatpush1.msra.mxu0 0.0
    %3370 = vmatprep.subr.mxu0 0.0
    %3371 = vmatpush1.msra.mxu0 0.0
    %3372 = vmatprep.subr.mxu0 0.0
    %3373 = vmatpush1.msra.mxu0 0.0
    %3374 = vmatprep.subr.mxu0 0.0
    %3375 = vmatpush1.msra.mxu0 0.0
    %3376 = vmatprep.subr.mxu0 0.0
    %3377 = vmatpush1.msra.mxu0 0.0
    %3378 = vmatprep.subr.mxu0 0.0
    %3379 = vmatpush1.msra.mxu0 0.0
    %3380 = vmatprep.subr.mxu0 0.0
    %3381 = vmatpush1.msra.mxu0 0.0
    %3382 = vmatprep.subr.mxu0 0.0
    %3383 = vmatpush1.msra.mxu0 0.0
    %3384 = vmatprep.subr.mxu0 0.0
    %3385 = vmatpush1.msra.mxu0 0.0
    %3386 = vmatprep.subr.mxu0 0.0
    %3387 = vmatpush1.msra.mxu0 0.0
    %3388 = vmatprep.subr.mxu0 0.0
    %3389 = vmatpush1.msra.mxu0 0.0
    %3390 = vmatprep.subr.mxu0 0.0
    %3391 = vmatpush1.msra.mxu0 0.0
    %3392 = vmatprep.subr.mxu0 0.0
    %3393 = vmatpush1.msra.mxu0 0.0
    %3394 = vmatprep.subr.mxu0 0.0
    %3395 = vmatpush1.msra.mxu0 0.0
    %3396 = vmatprep.subr.mxu0 0.0
    %3397 = vmatpush1.msra.mxu0 0.0
    %3398 = vmatprep.mubr.f32.mxu0 0.0
    %3399 = vmatmul.mubr.f32.gmra.mrb[0].mxu0 %v3333
    %v3400 = vpop.f32.mrb[0].mxu0
    %v3401 = vadd.f32 0.0, %v3400
    %v3402 = vpop.f32.mrb[0].mxu0
    %3403 = vdwg.mxu0
    %v3404 = vtanh.pop %v3401
    %v3405 = vsel %vm127, 1.0, %v3404
    %3406 = vmatprep.subr.mxu0 0.0
    %3407 = vmatpush1.msra.mxu0 %v93
    %3408 = vmatprep.subr.mxu0 0.0
    %3409 = vmatpush1.msra.mxu0 %v94
    %3410 = vmatprep.subr.mxu0 0.0
    %3411 = vmatpush1.msra.mxu0 %v95
    %3412 = vmatprep.subr.mxu0 0.0
    %3413 = vmatpush1.msra.mxu0 %v96
    %3414 = vmatprep.subr.mxu0 0.0
    %3415 = vmatpush1.msra.mxu0 %v97
    %3416 = vmatprep.subr.mxu0 0.0
    %3417 = vmatpush1.msra.mxu0 %v98
    %3418 = vmatprep.subr.mxu0 0.0
    %3419 = vmatpush1.msra.mxu0 %v99
    %3420 = vmatprep.subr.mxu0 0.0
    %3421 = vmatpush1.msra.mxu0 %v100
    %3422 = vmatprep.subr.mxu0 0.0
    %3423 = vmatpush1.msra.mxu0 %v101
    %3424 = vmatprep.subr.mxu0 0.0
    %3425 = vmatpush1.msra.mxu0 %v102
    %3426 = vmatprep.subr.mxu0 0.0
    %3427 = vmatpush1.msra.mxu0 %v103
    %3428 = vmatprep.subr.mxu0 0.0
    %3429 = vmatpush1.msra.mxu0 %v104
    %3430 = vmatprep.subr.mxu0 0.0
    %3431 = vmatpush1.msra.mxu0 %v105
    %3432 = vmatprep.subr.mxu0 0.0
    %3433 = vmatpush1.msra.mxu0 %v106
    %3434 = vmatprep.subr.mxu0 0.0
    %3435 = vmatpush1.msra.mxu0 %v107
    %3436 = vmatprep.subr.mxu0 0.0
    %3437 = vmatpush1.msra.mxu0 %v108
    %3438 = vmatprep.subr.mxu0 0.0
    %3439 = vmatpush1.msra.mxu0 0.0
    %3440 = vmatprep.subr.mxu0 0.0
    %3441 = vmatpush1.msra.mxu0 0.0
    %3442 = vmatprep.subr.mxu0 0.0
    %3443 = vmatpush1.msra.mxu0 0.0
    %3444 = vmatprep.subr.mxu0 0.0
    %3445 = vmatpush1.msra.mxu0 0.0
    %3446 = vmatprep.subr.mxu0 0.0
    %3447 = vmatpush1.msra.mxu0 0.0
    %3448 = vmatprep.subr.mxu0 0.0
    %3449 = vmatpush1.msra.mxu0 0.0
    %3450 = vmatprep.subr.mxu0 0.0
    %3451 = vmatpush1.msra.mxu0 0.0
    %3452 = vmatprep.subr.mxu0 0.0
    %3453 = vmatpush1.msra.mxu0 0.0
    %3454 = vmatprep.subr.mxu0 0.0
    %3455 = vmatpush1.msra.mxu0 0.0
    %3456 = vmatprep.subr.mxu0 0.0
    %3457 = vmatpush1.msra.mxu0 0.0
    %3458 = vmatprep.subr.mxu0 0.0
    %3459 = vmatpush1.msra.mxu0 0.0
    %3460 = vmatprep.subr.mxu0 0.0
    %3461 = vmatpush1.msra.mxu0 0.0
    %3462 = vmatprep.subr.mxu0 0.0
    %3463 = vmatpush1.msra.mxu0 0.0
    %3464 = vmatprep.subr.mxu0 0.0
    %3465 = vmatpush1.msra.mxu0 0.0
    %3466 = vmatprep.subr.mxu0 0.0
    %3467 = vmatpush1.msra.mxu0 0.0
    %3468 = vmatprep.subr.mxu0 0.0
    %3469 = vmatpush1.msra.mxu0 0.0
    %3470 = vmatprep.mubr.f32.mxu0 0.0
    %3471 = vmatmul.mubr.f32.gmra.mrb[0].mxu0 %v3405
    %v3472 = vpop.f32.mrb[0].mxu0
    %v3473 = vadd.f32 0.0, %v3472
    %v3474 = vpop.f32.mrb[0].mxu0
    %3475 = vdwg.mxu0
    %v3476 = vmul.f32 %v418, %v3473
    %v3477 = vadd.f32 %v3331, %v3476
    %v3478 = vmul.f32 %v567, %v3473
    %v3479 = vadd.f32 %v3041, %v3478
    %3480 = vmatprep.subr.mxu0 0.0
    %3481 = vmatpush1.msra.mxu0 %v77
    %3482 = vmatprep.subr.mxu0 0.0
    %3483 = vmatpush1.msra.mxu0 %v78
    %3484 = vmatprep.subr.mxu0 0.0
    %3485 = vmatpush1.msra.mxu0 %v79
    %3486 = vmatprep.subr.mxu0 0.0
    %3487 = vmatpush1.msra.mxu0 %v80
    %3488 = vmatprep.subr.mxu0 0.0
    %3489 = vmatpush1.msra.mxu0 %v81
    %3490 = vmatprep.subr.mxu0 0.0
    %3491 = vmatpush1.msra.mxu0 %v82
    %3492 = vmatprep.subr.mxu0 0.0
    %3493 = vmatpush1.msra.mxu0 %v83
    %3494 = vmatprep.subr.mxu0 0.0
    %3495 = vmatpush1.msra.mxu0 %v84
    %3496 = vmatprep.subr.mxu0 0.0
    %3497 = vmatpush1.msra.mxu0 %v85
    %3498 = vmatprep.subr.mxu0 0.0
    %3499 = vmatpush1.msra.mxu0 %v86
    %3500 = vmatprep.subr.mxu0 0.0
    %3501 = vmatpush1.msra.mxu0 %v87
    %3502 = vmatprep.subr.mxu0 0.0
    %3503 = vmatpush1.msra.mxu0 %v88
    %3504 = vmatprep.subr.mxu0 0.0
    %3505 = vmatpush1.msra.mxu0 %v89
    %3506 = vmatprep.subr.mxu0 0.0
    %3507 = vmatpush1.msra.mxu0 %v90
    %3508 = vmatprep.subr.mxu0 0.0
    %3509 = vmatpush1.msra.mxu0 %v91
    %3510 = vmatprep.subr.mxu0 0.0
    %3511 = vmatpush1.msra.mxu0 %v92
    %3512 = vmatprep.subr.mxu0 0.0
    %3513 = vmatpush1.msra.mxu0 0.0
    %3514 = vmatprep.subr.mxu0 0.0
    %3515 = vmatpush1.msra.mxu0 0.0
    %3516 = vmatprep.subr.mxu0 0.0
    %3517 = vmatpush1.msra.mxu0 0.0
    %3518 = vmatprep.subr.mxu0 0.0
    %3519 = vmatpush1.msra.mxu0 0.0
    %3520 = vmatprep.subr.mxu0 0.0
    %3521 = vmatpush1.msra.mxu0 0.0
    %3522 = vmatprep.subr.mxu0 0.0
    %3523 = vmatpush1.msra.mxu0 0.0
    %3524 = vmatprep.subr.mxu0 0.0
    %3525 = vmatpush1.msra.mxu0 0.0
    %3526 = vmatprep.subr.mxu0 0.0
    %3527 = vmatpush1.msra.mxu0 0.0
    %3528 = vmatprep.subr.mxu0 0.0
    %3529 = vmatpush1.msra.mxu0 0.0
    %3530 = vmatprep.subr.mxu0 0.0
    %3531 = vmatpush1.msra.mxu0 0.0
    %3532 = vmatprep.subr.mxu0 0.0
    %3533 = vmatpush1.msra.mxu0 0.0
    %3534 = vmatprep.subr.mxu0 0.0
    %3535 = vmatpush1.msra.mxu0 0.0
    %3536 = vmatprep.subr.mxu0 0.0
    %3537 = vmatpush1.msra.mxu0 0.0
    %3538 = vmatprep.subr.mxu0 0.0
    %3539 = vmatpush1.msra.mxu0 0.0
    %3540 = vmatprep.subr.mxu0 0.0
    %3541 = vmatpush1.msra.mxu0 0.0
    %3542 = vmatprep.subr.mxu0 0.0
    %3543 = vmatpush1.msra.mxu0 0.0
    %3544 = vmatprep.mubr.f32.mxu0 0.0
    %3545 = vmatmul.mubr.f32.gmra.mrb[0].mxu0 %v3479
    %v3546 = vpop.f32.mrb[0].mxu0
    %v3547 = vadd.f32 0.0, %v3546
    %v3548 = vpop.f32.mrb[0].mxu0
    %3549 = vdwg.mxu0
    %v3550 = vtanh.pop %v3547
    %v3551 = vsel %vm127, 1.0, %v3550
    %3552 = vmatprep.subr.mxu0 0.0
    %3553 = vmatpush1.msra.mxu0 %v93
    %3554 = vmatprep.subr.mxu0 0.0
    %3555 = vmatpush1.msra.mxu0 %v94
    %3556 = vmatprep.subr.mxu0 0.0
    %3557 = vmatpush1.msra.mxu0 %v95
    %3558 = vmatprep.subr.mxu0 0.0
    %3559 = vmatpush1.msra.mxu0 %v96
    %3560 = vmatprep.subr.mxu0 0.0
    %3561 = vmatpush1.msra.mxu0 %v97
    %3562 = vmatprep.subr.mxu0 0.0
    %3563 = vmatpush1.msra.mxu0 %v98
    %3564 = vmatprep.subr.mxu0 0.0
    %3565 = vmatpush1.msra.mxu0 %v99
    %3566 = vmatprep.subr.mxu0 0.0
    %3567 = vmatpush1.msra.mxu0 %v100
    %3568 = vmatprep.subr.mxu0 0.0
    %3569 = vmatpush1.msra.mxu0 %v101
    %3570 = vmatprep.subr.mxu0 0.0
    %3571 = vmatpush1.msra.mxu0 %v102
    %3572 = vmatprep.subr.mxu0 0.0
    %3573 = vmatpush1.msra.mxu0 %v103
    %3574 = vmatprep.subr.mxu0 0.0
    %3575 = vmatpush1.msra.mxu0 %v104
    %3576 = vmatprep.subr.mxu0 0.0
    %3577 = vmatpush1.msra.mxu0 %v105
    %3578 = vmatprep.subr.mxu0 0.0
    %3579 = vmatpush1.msra.mxu0 %v106
    %3580 = vmatprep.subr.mxu0 0.0
    %3581 = vmatpush1.msra.mxu0 %v107
    %3582 = vmatprep.subr.mxu0 0.0
    %3583 = vmatpush1.msra.mxu0 %v108
    %3584 = vmatprep.subr.mxu0 0.0
    %3585 = vmatpush1.msra.mxu0 0.0
    %3586 = vmatprep.subr.mxu0 0.0
    %3587 = vmatpush1.msra.mxu0 0.0
    %3588 = vmatprep.subr.mxu0 0.0
    %3589 = vmatpush1.msra.mxu0 0.0
    %3590 = vmatprep.subr.mxu0 0.0
    %3591 = vmatpush1.msra.mxu0 0.0
    %3592 = vmatprep.subr.mxu0 0.0
    %3593 = vmatpush1.msra.mxu0 0.0
    %3594 = vmatprep.subr.mxu0 0.0
    %3595 = vmatpush1.msra.mxu0 0.0
    %3596 = vmatprep.subr.mxu0 0.0
    %3597 = vmatpush1.msra.mxu0 0.0
    %3598 = vmatprep.subr.mxu0 0.0
    %3599 = vmatpush1.msra.mxu0 0.0
    %3600 = vmatprep.subr.mxu0 0.0
    %3601 = vmatpush1.msra.mxu0 0.0
    %3602 = vmatprep.subr.mxu0 0.0
    %3603 = vmatpush1.msra.mxu0 0.0
    %3604 = vmatprep.subr.mxu0 0.0
    %3605 = vmatpush1.msra.mxu0 0.0
    %3606 = vmatprep.subr.mxu0 0.0
    %3607 = vmatpush1.msra.mxu0 0.0
    %3608 = vmatprep.subr.mxu0 0.0
    %3609 = vmatpush1.msra.mxu0 0.0
    %3610 = vmatprep.subr.mxu0 0.0
    %3611 = vmatpush1.msra.mxu0 0.0
    %3612 = vmatprep.subr.mxu0 0.0
    %3613 = vmatpush1.msra.mxu0 0.0
    %3614 = vmatprep.subr.mxu0 0.0
    %3615 = vmatpush1.msra.mxu0 0.0
    %3616 = vmatprep.mubr.f32.mxu0 0.0
    %3617 = vmatmul.mubr.f32.gmra.mrb[0].mxu0 %v3551
    %v3618 = vpop.f32.mrb[0].mxu0
    %v3619 = vadd.f32 0.0, %v3618
    %v3620 = vpop.f32.mrb[0].mxu0
    %3621 = vdwg.mxu0
    %v3622 = vmul.f32 %v270, %v3619
    %v3623 = vadd.f32 %v3477, %v3622
    %3624 = vmatprep.subr.mxu0 0.0
    %3625 = vmatpush1.msra.mxu0 %v77
    %3626 = vmatprep.subr.mxu0 0.0
    %3627 = vmatpush1.msra.mxu0 %v78
    %3628 = vmatprep.subr.mxu0 0.0
    %3629 = vmatpush1.msra.mxu0 %v79
    %3630 = vmatprep.subr.mxu0 0.0
    %3631 = vmatpush1.msra.mxu0 %v80
    %3632 = vmatprep.subr.mxu0 0.0
    %3633 = vmatpush1.msra.mxu0 %v81
    %3634 = vmatprep.subr.mxu0 0.0
    %3635 = vmatpush1.msra.mxu0 %v82
    %3636 = vmatprep.subr.mxu0 0.0
    %3637 = vmatpush1.msra.mxu0 %v83
    %3638 = vmatprep.subr.mxu0 0.0
    %3639 = vmatpush1.msra.mxu0 %v84
    %3640 = vmatprep.subr.mxu0 0.0
    %3641 = vmatpush1.msra.mxu0 %v85
    %3642 = vmatprep.subr.mxu0 0.0
    %3643 = vmatpush1.msra.mxu0 %v86
    %3644 = vmatprep.subr.mxu0 0.0
    %3645 = vmatpush1.msra.mxu0 %v87
    %3646 = vmatprep.subr.mxu0 0.0
    %3647 = vmatpush1.msra.mxu0 %v88
    %3648 = vmatprep.subr.mxu0 0.0
    %3649 = vmatpush1.msra.mxu0 %v89
    %3650 = vmatprep.subr.mxu0 0.0
    %3651 = vmatpush1.msra.mxu0 %v90
    %3652 = vmatprep.subr.mxu0 0.0
    %3653 = vmatpush1.msra.mxu0 %v91
    %3654 = vmatprep.subr.mxu0 0.0
    %3655 = vmatpush1.msra.mxu0 %v92
    %3656 = vmatprep.subr.mxu0 0.0
    %3657 = vmatpush1.msra.mxu0 0.0
    %3658 = vmatprep.subr.mxu0 0.0
    %3659 = vmatpush1.msra.mxu0 0.0
    %3660 = vmatprep.subr.mxu0 0.0
    %3661 = vmatpush1.msra.mxu0 0.0
    %3662 = vmatprep.subr.mxu0 0.0
    %3663 = vmatpush1.msra.mxu0 0.0
    %3664 = vmatprep.subr.mxu0 0.0
    %3665 = vmatpush1.msra.mxu0 0.0
    %3666 = vmatprep.subr.mxu0 0.0
    %3667 = vmatpush1.msra.mxu0 0.0
    %3668 = vmatprep.subr.mxu0 0.0
    %3669 = vmatpush1.msra.mxu0 0.0
    %3670 = vmatprep.subr.mxu0 0.0
    %3671 = vmatpush1.msra.mxu0 0.0
    %3672 = vmatprep.subr.mxu0 0.0
    %3673 = vmatpush1.msra.mxu0 0.0
    %3674 = vmatprep.subr.mxu0 0.0
    %3675 = vmatpush1.msra.mxu0 0.0
    %3676 = vmatprep.subr.mxu0 0.0
    %3677 = vmatpush1.msra.mxu0 0.0
    %3678 = vmatprep.subr.mxu0 0.0
    %3679 = vmatpush1.msra.mxu0 0.0
    %3680 = vmatprep.subr.mxu0 0.0
    %3681 = vmatpush1.msra.mxu0 0.0
    %3682 = vmatprep.subr.mxu0 0.0
    %3683 = vmatpush1.msra.mxu0 0.0
    %3684 = vmatprep.subr.mxu0 0.0
    %3685 = vmatpush1.msra.mxu0 0.0
    %3686 = vmatprep.subr.mxu0 0.0
    %3687 = vmatpush1.msra.mxu0 0.0
    %3688 = vmatprep.mubr.f32.mxu0 0.0
    %3689 = vmatmul.mubr.f32.gmra.mrb[0].mxu0 %v3623
    %v3690 = vpop.f32.mrb[0].mxu0
    %v3691 = vadd.f32 0.0, %v3690
    %v3692 = vpop.f32.mrb[0].mxu0
    %3693 = vdwg.mxu0
    %v3694 = vtanh.pop %v3691
    %v3695 = vsel %vm127, 1.0, %v3694
    %3696 = vmatprep.subr.mxu0 0.0
    %3697 = vmatpush1.msra.mxu0 %v93
    %3698 = vmatprep.subr.mxu0 0.0
    %3699 = vmatpush1.msra.mxu0 %v94
    %3700 = vmatprep.subr.mxu0 0.0
    %3701 = vmatpush1.msra.mxu0 %v95
    %3702 = vmatprep.subr.mxu0 0.0
    %3703 = vmatpush1.msra.mxu0 %v96
    %3704 = vmatprep.subr.mxu0 0.0
    %3705 = vmatpush1.msra.mxu0 %v97
    %3706 = vmatprep.subr.mxu0 0.0
    %3707 = vmatpush1.msra.mxu0 %v98
    %3708 = vmatprep.subr.mxu0 0.0
    %3709 = vmatpush1.msra.mxu0 %v99
    %3710 = vmatprep.subr.mxu0 0.0
    %3711 = vmatpush1.msra.mxu0 %v100
    %3712 = vmatprep.subr.mxu0 0.0
    %3713 = vmatpush1.msra.mxu0 %v101
    %3714 = vmatprep.subr.mxu0 0.0
    %3715 = vmatpush1.msra.mxu0 %v102
    %3716 = vmatprep.subr.mxu0 0.0
    %3717 = vmatpush1.msra.mxu0 %v103
    %3718 = vmatprep.subr.mxu0 0.0
    %3719 = vmatpush1.msra.mxu0 %v104
    %3720 = vmatprep.subr.mxu0 0.0
    %3721 = vmatpush1.msra.mxu0 %v105
    %3722 = vmatprep.subr.mxu0 0.0
    %3723 = vmatpush1.msra.mxu0 %v106
    %3724 = vmatprep.subr.mxu0 0.0
    %3725 = vmatpush1.msra.mxu0 %v107
    %3726 = vmatprep.subr.mxu0 0.0
    %3727 = vmatpush1.msra.mxu0 %v108
    %3728 = vmatprep.subr.mxu0 0.0
    %3729 = vmatpush1.msra.mxu0 0.0
    %3730 = vmatprep.subr.mxu0 0.0
    %3731 = vmatpush1.msra.mxu0 0.0
    %3732 = vmatprep.subr.mxu0 0.0
    %3733 = vmatpush1.msra.mxu0 0.0
    %3734 = vmatprep.subr.mxu0 0.0
    %3735 = vmatpush1.msra.mxu0 0.0
    %3736 = vmatprep.subr.mxu0 0.0
    %3737 = vmatpush1.msra.mxu0 0.0
    %3738 = vmatprep.subr.mxu0 0.0
    %3739 = vmatpush1.msra.mxu0 0.0
    %3740 = vmatprep.subr.mxu0 0.0
    %3741 = vmatpush1.msra.mxu0 0.0
    %3742 = vmatprep.subr.mxu0 0.0
    %3743 = vmatpush1.msra.mxu0 0.0
    %3744 = vmatprep.subr.mxu0 0.0
    %3745 = vmatpush1.msra.mxu0 0.0
    %3746 = vmatprep.subr.mxu0 0.0
    %3747 = vmatpush1.msra.mxu0 0.0
    %3748 = vmatprep.subr.mxu0 0.0
    %3749 = vmatpush1.msra.mxu0 0.0
    %3750 = vmatprep.subr.mxu0 0.0
    %3751 = vmatpush1.msra.mxu0 0.0
    %3752 = vmatprep.subr.mxu0 0.0
    %3753 = vmatpush1.msra.mxu0 0.0
    %3754 = vmatprep.subr.mxu0 0.0
    %3755 = vmatpush1.msra.mxu0 0.0
    %3756 = vmatprep.subr.mxu0 0.0
    %3757 = vmatpush1.msra.mxu0 0.0
    %3758 = vmatprep.subr.mxu0 0.0
    %3759 = vmatpush1.msra.mxu0 0.0
    %3760 = vmatprep.mubr.f32.mxu0 0.0
    %3761 = vmatmul.mubr.f32.gmra.mrb[0].mxu0 %v3695
    %v3762 = vpop.f32.mrb[0].mxu0
    %v3763 = vadd.f32 0.0, %v3762
    %v3764 = vpop.f32.mrb[0].mxu0
    %3765 = vdwg.mxu0
    %v3766 = vmul.f32 %v270, %v3763
    %v3767 = vadd.f32 %v3623, %v3766
    %v3768 = vmul.f32 %v273, %v3763
    %v3769 = vadd.f32 %v3623, %v3768
    %3770 = vmatprep.subr.mxu0 0.0
    %3771 = vmatpush1.msra.mxu0 %v77
    %3772 = vmatprep.subr.mxu0 0.0
    %3773 = vmatpush1.msra.mxu0 %v78
    %3774 = vmatprep.subr.mxu0 0.0
    %3775 = vmatpush1.msra.mxu0 %v79
    %3776 = vmatprep.subr.mxu0 0.0
    %3777 = vmatpush1.msra.mxu0 %v80
    %3778 = vmatprep.subr.mxu0 0.0
    %3779 = vmatpush1.msra.mxu0 %v81
    %3780 = vmatprep.subr.mxu0 0.0
    %3781 = vmatpush1.msra.mxu0 %v82
    %3782 = vmatprep.subr.mxu0 0.0
    %3783 = vmatpush1.msra.mxu0 %v83
    %3784 = vmatprep.subr.mxu0 0.0
    %3785 = vmatpush1.msra.mxu0 %v84
    %3786 = vmatprep.subr.mxu0 0.0
    %3787 = vmatpush1.msra.mxu0 %v85
    %3788 = vmatprep.subr.mxu0 0.0
    %3789 = vmatpush1.msra.mxu0 %v86
    %3790 = vmatprep.subr.mxu0 0.0
    %3791 = vmatpush1.msra.mxu0 %v87
    %3792 = vmatprep.subr.mxu0 0.0
    %3793 = vmatpush1.msra.mxu0 %v88
    %3794 = vmatprep.subr.mxu0 0.0
    %3795 = vmatpush1.msra.mxu0 %v89
    %3796 = vmatprep.subr.mxu0 0.0
    %3797 = vmatpush1.msra.mxu0 %v90
    %3798 = vmatprep.subr.mxu0 0.0
    %3799 = vmatpush1.msra.mxu0 %v91
    %3800 = vmatprep.subr.mxu0 0.0
    %3801 = vmatpush1.msra.mxu0 %v92
    %3802 = vmatprep.subr.mxu0 0.0
    %3803 = vmatpush1.msra.mxu0 0.0
    %3804 = vmatprep.subr.mxu0 0.0
    %3805 = vmatpush1.msra.mxu0 0.0
    %3806 = vmatprep.subr.mxu0 0.0
    %3807 = vmatpush1.msra.mxu0 0.0
    %3808 = vmatprep.subr.mxu0 0.0
    %3809 = vmatpush1.msra.mxu0 0.0
    %3810 = vmatprep.subr.mxu0 0.0
    %3811 = vmatpush1.msra.mxu0 0.0
    %3812 = vmatprep.subr.mxu0 0.0
    %3813 = vmatpush1.msra.mxu0 0.0
    %3814 = vmatprep.subr.mxu0 0.0
    %3815 = vmatpush1.msra.mxu0 0.0
    %3816 = vmatprep.subr.mxu0 0.0
    %3817 = vmatpush1.msra.mxu0 0.0
    %3818 = vmatprep.subr.mxu0 0.0
    %3819 = vmatpush1.msra.mxu0 0.0
    %3820 = vmatprep.subr.mxu0 0.0
    %3821 = vmatpush1.msra.mxu0 0.0
    %3822 = vmatprep.subr.mxu0 0.0
    %3823 = vmatpush1.msra.mxu0 0.0
    %3824 = vmatprep.subr.mxu0 0.0
    %3825 = vmatpush1.msra.mxu0 0.0
    %3826 = vmatprep.subr.mxu0 0.0
    %3827 = vmatpush1.msra.mxu0 0.0
    %3828 = vmatprep.subr.mxu0 0.0
    %3829 = vmatpush1.msra.mxu0 0.0
    %3830 = vmatprep.subr.mxu0 0.0
    %3831 = vmatpush1.msra.mxu0 0.0
    %3832 = vmatprep.subr.mxu0 0.0
    %3833 = vmatpush1.msra.mxu0 0.0
    %3834 = vmatprep.mubr.f32.mxu0 0.0
    %3835 = vmatmul.mubr.f32.gmra.mrb[0].mxu0 %v3769
    %v3836 = vpop.f32.mrb[0].mxu0
    %v3837 = vadd.f32 0.0, %v3836
    %v3838 = vpop.f32.mrb[0].mxu0
    %3839 = vdwg.mxu0
    %v3840 = vtanh.pop %v3837
    %v3841 = vsel %vm127, 1.0, %v3840
    %3842 = vmatprep.subr.mxu0 0.0
    %3843 = vmatpush1.msra.mxu0 %v93
    %3844 = vmatprep.subr.mxu0 0.0
    %3845 = vmatpush1.msra.mxu0 %v94
    %3846 = vmatprep.subr.mxu0 0.0
    %3847 = vmatpush1.msra.mxu0 %v95
    %3848 = vmatprep.subr.mxu0 0.0
    %3849 = vmatpush1.msra.mxu0 %v96
    %3850 = vmatprep.subr.mxu0 0.0
    %3851 = vmatpush1.msra.mxu0 %v97
    %3852 = vmatprep.subr.mxu0 0.0
    %3853 = vmatpush1.msra.mxu0 %v98
    %3854 = vmatprep.subr.mxu0 0.0
    %3855 = vmatpush1.msra.mxu0 %v99
    %3856 = vmatprep.subr.mxu0 0.0
    %3857 = vmatpush1.msra.mxu0 %v100
    %3858 = vmatprep.subr.mxu0 0.0
    %3859 = vmatpush1.msra.mxu0 %v101
    %3860 = vmatprep.subr.mxu0 0.0
    %3861 = vmatpush1.msra.mxu0 %v102
    %3862 = vmatprep.subr.mxu0 0.0
    %3863 = vmatpush1.msra.mxu0 %v103
    %3864 = vmatprep.subr.mxu0 0.0
    %3865 = vmatpush1.msra.mxu0 %v104
    %3866 = vmatprep.subr.mxu0 0.0
    %3867 = vmatpush1.msra.mxu0 %v105
    %3868 = vmatprep.subr.mxu0 0.0
    %3869 = vmatpush1.msra.mxu0 %v106
    %3870 = vmatprep.subr.mxu0 0.0
    %3871 = vmatpush1.msra.mxu0 %v107
    %3872 = vmatprep.subr.mxu0 0.0
    %3873 = vmatpush1.msra.mxu0 %v108
    %3874 = vmatprep.subr.mxu0 0.0
    %3875 = vmatpush1.msra.mxu0 0.0
    %3876 = vmatprep.subr.mxu0 0.0
    %3877 = vmatpush1.msra.mxu0 0.0
    %3878 = vmatprep.subr.mxu0 0.0
    %3879 = vmatpush1.msra.mxu0 0.0
    %3880 = vmatprep.subr.mxu0 0.0
    %3881 = vmatpush1.msra.mxu0 0.0
    %3882 = vmatprep.subr.mxu0 0.0
    %3883 = vmatpush1.msra.mxu0 0.0
    %3884 = vmatprep.subr.mxu0 0.0
    %3885 = vmatpush1.msra.mxu0 0.0
    %3886 = vmatprep.subr.mxu0 0.0
    %3887 = vmatpush1.msra.mxu0 0.0
    %3888 = vmatprep.subr.mxu0 0.0
    %3889 = vmatpush1.msra.mxu0 0.0
    %3890 = vmatprep.subr.mxu0 0.0
    %3891 = vmatpush1.msra.mxu0 0.0
    %3892 = vmatprep.subr.mxu0 0.0
    %3893 = vmatpush1.msra.mxu0 0.0
    %3894 = vmatprep.subr.mxu0 0.0
    %3895 = vmatpush1.msra.mxu0 0.0
    %3896 = vmatprep.subr.mxu0 0.0
    %3897 = vmatpush1.msra.mxu0 0.0
    %3898 = vmatprep.subr.mxu0 0.0
    %3899 = vmatpush1.msra.mxu0 0.0
    %3900 = vmatprep.subr.mxu0 0.0
    %3901 = vmatpush1.msra.mxu0 0.0
    %3902 = vmatprep.subr.mxu0 0.0
    %3903 = vmatpush1.msra.mxu0 0.0
    %3904 = vmatprep.subr.mxu0 0.0
    %3905 = vmatpush1.msra.mxu0 0.0
    %3906 = vmatprep.mubr.f32.mxu0 0.0
    %3907 = vmatmul.mubr.f32.gmra.mrb[0].mxu0 %v3841
    %v3908 = vpop.f32.mrb[0].mxu0
    %v3909 = vadd.f32 0.0, %v3908
    %v3910 = vpop.f32.mrb[0].mxu0
    %3911 = vdwg.mxu0
    %v3912 = vmul.f32 %v418, %v3909
    %v3913 = vadd.f32 %v3767, %v3912
    %v3914 = vmul.f32 %v273, %v3909
    %v3915 = vadd.f32 %v3623, %v3914
    %3916 = vmatprep.subr.mxu0 0.0
    %3917 = vmatpush1.msra.mxu0 %v77
    %3918 = vmatprep.subr.mxu0 0.0
    %3919 = vmatpush1.msra.mxu0 %v78
    %3920 = vmatprep.subr.mxu0 0.0
    %3921 = vmatpush1.msra.mxu0 %v79
    %3922 = vmatprep.subr.mxu0 0.0
    %3923 = vmatpush1.msra.mxu0 %v80
    %3924 = vmatprep.subr.mxu0 0.0
    %3925 = vmatpush1.msra.mxu0 %v81
    %3926 = vmatprep.subr.mxu0 0.0
    %3927 = vmatpush1.msra.mxu0 %v82
    %3928 = vmatprep.subr.mxu0 0.0
    %3929 = vmatpush1.msra.mxu0 %v83
    %3930 = vmatprep.subr.mxu0 0.0
    %3931 = vmatpush1.msra.mxu0 %v84
    %3932 = vmatprep.subr.mxu0 0.0
    %3933 = vmatpush1.msra.mxu0 %v85
    %3934 = vmatprep.subr.mxu0 0.0
    %3935 = vmatpush1.msra.mxu0 %v86
    %3936 = vmatprep.subr.mxu0 0.0
    %3937 = vmatpush1.msra.mxu0 %v87
    %3938 = vmatprep.subr.mxu0 0.0
    %3939 = vmatpush1.msra.mxu0 %v88
    %3940 = vmatprep.subr.mxu0 0.0
    %3941 = vmatpush1.msra.mxu0 %v89
    %3942 = vmatprep.subr.mxu0 0.0
    %3943 = vmatpush1.msra.mxu0 %v90
    %3944 = vmatprep.subr.mxu0 0.0
    %3945 = vmatpush1.msra.mxu0 %v91
    %3946 = vmatprep.subr.mxu0 0.0
    %3947 = vmatpush1.msra.mxu0 %v92
    %3948 = vmatprep.subr.mxu0 0.0
    %3949 = vmatpush1.msra.mxu0 0.0
    %3950 = vmatprep.subr.mxu0 0.0
    %3951 = vmatpush1.msra.mxu0 0.0
    %3952 = vmatprep.subr.mxu0 0.0
    %3953 = vmatpush1.msra.mxu0 0.0
    %3954 = vmatprep.subr.mxu0 0.0
    %3955 = vmatpush1.msra.mxu0 0.0
    %3956 = vmatprep.subr.mxu0 0.0
    %3957 = vmatpush1.msra.mxu0 0.0
    %3958 = vmatprep.subr.mxu0 0.0
    %3959 = vmatpush1.msra.mxu0 0.0
    %3960 = vmatprep.subr.mxu0 0.0
    %3961 = vmatpush1.msra.mxu0 0.0
    %3962 = vmatprep.subr.mxu0 0.0
    %3963 = vmatpush1.msra.mxu0 0.0
    %3964 = vmatprep.subr.mxu0 0.0
    %3965 = vmatpush1.msra.mxu0 0.0
    %3966 = vmatprep.subr.mxu0 0.0
    %3967 = vmatpush1.msra.mxu0 0.0
    %3968 = vmatprep.subr.mxu0 0.0
    %3969 = vmatpush1.msra.mxu0 0.0
    %3970 = vmatprep.subr.mxu0 0.0
    %3971 = vmatpush1.msra.mxu0 0.0
    %3972 = vmatprep.subr.mxu0 0.0
    %3973 = vmatpush1.msra.mxu0 0.0
    %3974 = vmatprep.subr.mxu0 0.0
    %3975 = vmatpush1.msra.mxu0 0.0
    %3976 = vmatprep.subr.mxu0 0.0
    %3977 = vmatpush1.msra.mxu0 0.0
    %3978 = vmatprep.subr.mxu0 0.0
    %3979 = vmatpush1.msra.mxu0 0.0
    %3980 = vmatprep.mubr.f32.mxu0 0.0
    %3981 = vmatmul.mubr.f32.gmra.mrb[0].mxu0 %v3915
    %v3982 = vpop.f32.mrb[0].mxu0
    %v3983 = vadd.f32 0.0, %v3982
    %v3984 = vpop.f32.mrb[0].mxu0
    %3985 = vdwg.mxu0
    %v3986 = vtanh.pop %v3983
    %v3987 = vsel %vm127, 1.0, %v3986
    %3988 = vmatprep.subr.mxu0 0.0
    %3989 = vmatpush1.msra.mxu0 %v93
    %3990 = vmatprep.subr.mxu0 0.0
    %3991 = vmatpush1.msra.mxu0 %v94
    %3992 = vmatprep.subr.mxu0 0.0
    %3993 = vmatpush1.msra.mxu0 %v95
    %3994 = vmatprep.subr.mxu0 0.0
    %3995 = vmatpush1.msra.mxu0 %v96
    %3996 = vmatprep.subr.mxu0 0.0
    %3997 = vmatpush1.msra.mxu0 %v97
    %3998 = vmatprep.subr.mxu0 0.0
    %3999 = vmatpush1.msra.mxu0 %v98
    %4000 = vmatprep.subr.mxu0 0.0
    %4001 = vmatpush1.msra.mxu0 %v99
    %4002 = vmatprep.subr.mxu0 0.0
    %4003 = vmatpush1.msra.mxu0 %v100
    %4004 = vmatprep.subr.mxu0 0.0
    %4005 = vmatpush1.msra.mxu0 %v101
    %4006 = vmatprep.subr.mxu0 0.0
    %4007 = vmatpush1.msra.mxu0 %v102
    %4008 = vmatprep.subr.mxu0 0.0
    %4009 = vmatpush1.msra.mxu0 %v103
    %4010 = vmatprep.subr.mxu0 0.0
    %4011 = vmatpush1.msra.mxu0 %v104
    %4012 = vmatprep.subr.mxu0 0.0
    %4013 = vmatpush1.msra.mxu0 %v105
    %4014 = vmatprep.subr.mxu0 0.0
    %4015 = vmatpush1.msra.mxu0 %v106
    %4016 = vmatprep.subr.mxu0 0.0
    %4017 = vmatpush1.msra.mxu0 %v107
    %4018 = vmatprep.subr.mxu0 0.0
    %4019 = vmatpush1.msra.mxu0 %v108
    %4020 = vmatprep.subr.mxu0 0.0
    %4021 = vmatpush1.msra.mxu0 0.0
    %4022 = vmatprep.subr.mxu0 0.0
    %4023 = vmatpush1.msra.mxu0 0.0
    %4024 = vmatprep.subr.mxu0 0.0
    %4025 = vmatpush1.msra.mxu0 0.0
    %4026 = vmatprep.subr.mxu0 0.0
    %4027 = vmatpush1.msra.mxu0 0.0
    %4028 = vmatprep.subr.mxu0 0.0
    %4029 = vmatpush1.msra.mxu0 0.0
    %4030 = vmatprep.subr.mxu0 0.0
    %4031 = vmatpush1.msra.mxu0 0.0
    %4032 = vmatprep.subr.mxu0 0.0
    %4033 = vmatpush1.msra.mxu0 0.0
    %4034 = vmatprep.subr.mxu0 0.0
    %4035 = vmatpush1.msra.mxu0 0.0
    %4036 = vmatprep.subr.mxu0 0.0
    %4037 = vmatpush1.msra.mxu0 0.0
    %4038 = vmatprep.subr.mxu0 0.0
    %4039 = vmatpush1.msra.mxu0 0.0
    %4040 = vmatprep.subr.mxu0 0.0
    %4041 = vmatpush1.msra.mxu0 0.0
    %4042 = vmatprep.subr.mxu0 0.0
    %4043 = vmatpush1.msra.mxu0 0.0
    %4044 = vmatprep.subr.mxu0 0.0
    %4045 = vmatpush1.msra.mxu0 0.0
    %4046 = vmatprep.subr.mxu0 0.0
    %4047 = vmatpush1.msra.mxu0 0.0
    %4048 = vmatprep.subr.mxu0 0.0
    %4049 = vmatpush1.msra.mxu0 0.0
    %4050 = vmatprep.subr.mxu0 0.0
    %4051 = vmatpush1.msra.mxu0 0.0
    %4052 = vmatprep.mubr.f32.mxu0 0.0
    %4053 = vmatmul.mubr.f32.gmra.mrb[0].mxu0 %v3987
    %v4054 = vpop.f32.mrb[0].mxu0
    %v4055 = vadd.f32 0.0, %v4054
    %v4056 = vpop.f32.mrb[0].mxu0
    %4057 = vdwg.mxu0
    %v4058 = vmul.f32 %v418, %v4055
    %v4059 = vadd.f32 %v3913, %v4058
    %v4060 = vmul.f32 %v567, %v4055
    %v4061 = vadd.f32 %v3623, %v4060
    %4062 = vmatprep.subr.mxu0 0.0
    %4063 = vmatpush1.msra.mxu0 %v77
    %4064 = vmatprep.subr.mxu0 0.0
    %4065 = vmatpush1.msra.mxu0 %v78
    %4066 = vmatprep.subr.mxu0 0.0
    %4067 = vmatpush1.msra.mxu0 %v79
    %4068 = vmatprep.subr.mxu0 0.0
    %4069 = vmatpush1.msra.mxu0 %v80
    %4070 = vmatprep.subr.mxu0 0.0
    %4071 = vmatpush1.msra.mxu0 %v81
    %4072 = vmatprep.subr.mxu0 0.0
    %4073 = vmatpush1.msra.mxu0 %v82
    %4074 = vmatprep.subr.mxu0 0.0
    %4075 = vmatpush1.msra.mxu0 %v83
    %4076 = vmatprep.subr.mxu0 0.0
    %4077 = vmatpush1.msra.mxu0 %v84
    %4078 = vmatprep.subr.mxu0 0.0
    %4079 = vmatpush1.msra.mxu0 %v85
    %4080 = vmatprep.subr.mxu0 0.0
    %4081 = vmatpush1.msra.mxu0 %v86
    %4082 = vmatprep.subr.mxu0 0.0
    %4083 = vmatpush1.msra.mxu0 %v87
    %4084 = vmatprep.subr.mxu0 0.0
    %4085 = vmatpush1.msra.mxu0 %v88
    %4086 = vmatprep.subr.mxu0 0.0
    %4087 = vmatpush1.msra.mxu0 %v89
    %4088 = vmatprep.subr.mxu0 0.0
    %4089 = vmatpush1.msra.mxu0 %v90
    %4090 = vmatprep.subr.mxu0 0.0
    %4091 = vmatpush1.msra.mxu0 %v91
    %4092 = vmatprep.subr.mxu0 0.0
    %4093 = vmatpush1.msra.mxu0 %v92
    %4094 = vmatprep.subr.mxu0 0.0
    %4095 = vmatpush1.msra.mxu0 0.0
    %4096 = vmatprep.subr.mxu0 0.0
    %4097 = vmatpush1.msra.mxu0 0.0
    %4098 = vmatprep.subr.mxu0 0.0
    %4099 = vmatpush1.msra.mxu0 0.0
    %4100 = vmatprep.subr.mxu0 0.0
    %4101 = vmatpush1.msra.mxu0 0.0
    %4102 = vmatprep.subr.mxu0 0.0
    %4103 = vmatpush1.msra.mxu0 0.0
    %4104 = vmatprep.subr.mxu0 0.0
    %4105 = vmatpush1.msra.mxu0 0.0
    %4106 = vmatprep.subr.mxu0 0.0
    %4107 = vmatpush1.msra.mxu0 0.0
    %4108 = vmatprep.subr.mxu0 0.0
    %4109 = vmatpush1.msra.mxu0 0.0
    %4110 = vmatprep.subr.mxu0 0.0
    %4111 = vmatpush1.msra.mxu0 0.0
    %4112 = vmatprep.subr.mxu0 0.0
    %4113 = vmatpush1.msra.mxu0 0.0
    %4114 = vmatprep.subr.mxu0 0.0
    %4115 = vmatpush1.msra.mxu0 0.0
    %4116 = vmatprep.subr.mxu0 0.0
    %4117 = vmatpush1.msra.mxu0 0.0
    %4118 = vmatprep.subr.mxu0 0.0
    %4119 = vmatpush1.msra.mxu0 0.0
    %4120 = vmatprep.subr.mxu0 0.0
    %4121 = vmatpush1.msra.mxu0 0.0
    %4122 = vmatprep.subr.mxu0 0.0
    %4123 = vmatpush1.msra.mxu0 0.0
    %4124 = vmatprep.subr.mxu0 0.0
    %4125 = vmatpush1.msra.mxu0 0.0
    %4126 = vmatprep.mubr.f32.mxu0 0.0
    %4127 = vmatmul.mubr.f32.gmra.mrb[0].mxu0 %v4061
    %v4128 = vpop.f32.mrb[0].mxu0
    %v4129 = vadd.f32 0.0, %v4128
    %v4130 = vpop.f32.mrb[0].mxu0
    %4131 = vdwg.mxu0
    %v4132 = vtanh.pop %v4129
    %v4133 = vsel %vm127, 1.0, %v4132
    %4134 = vmatprep.subr.mxu0 0.0
    %4135 = vmatpush1.msra.mxu0 %v93
    %4136 = vmatprep.subr.mxu0 0.0
    %4137 = vmatpush1.msra.mxu0 %v94
    %4138 = vmatprep.subr.mxu0 0.0
    %4139 = vmatpush1.msra.mxu0 %v95
    %4140 = vmatprep.subr.mxu0 0.0
    %4141 = vmatpush1.msra.mxu0 %v96
    %4142 = vmatprep.subr.mxu0 0.0
    %4143 = vmatpush1.msra.mxu0 %v97
    %4144 = vmatprep.subr.mxu0 0.0
    %4145 = vmatpush1.msra.mxu0 %v98
    %4146 = vmatprep.subr.mxu0 0.0
    %4147 = vmatpush1.msra.mxu0 %v99
    %4148 = vmatprep.subr.mxu0 0.0
    %4149 = vmatpush1.msra.mxu0 %v100
    %4150 = vmatprep.subr.mxu0 0.0
    %4151 = vmatpush1.msra.mxu0 %v101
    %4152 = vmatprep.subr.mxu0 0.0
    %4153 = vmatpush1.msra.mxu0 %v102
    %4154 = vmatprep.subr.mxu0 0.0
    %4155 = vmatpush1.msra.mxu0 %v103
    %4156 = vmatprep.subr.mxu0 0.0
    %4157 = vmatpush1.msra.mxu0 %v104
    %4158 = vmatprep.subr.mxu0 0.0
    %4159 = vmatpush1.msra.mxu0 %v105
    %4160 = vmatprep.subr.mxu0 0.0
    %4161 = vmatpush1.msra.mxu0 %v106
    %4162 = vmatprep.subr.mxu0 0.0
    %4163 = vmatpush1.msra.mxu0 %v107
    %4164 = vmatprep.subr.mxu0 0.0
    %4165 = vmatpush1.msra.mxu0 %v108
    %4166 = vmatprep.subr.mxu0 0.0
    %4167 = vmatpush1.msra.mxu0 0.0
    %4168 = vmatprep.subr.mxu0 0.0
    %4169 = vmatpush1.msra.mxu0 0.0
    %4170 = vmatprep.subr.mxu0 0.0
    %4171 = vmatpush1.msra.mxu0 0.0
    %4172 = vmatprep.subr.mxu0 0.0
    %4173 = vmatpush1.msra.mxu0 0.0
    %4174 = vmatprep.subr.mxu0 0.0
    %4175 = vmatpush1.msra.mxu0 0.0
    %4176 = vmatprep.subr.mxu0 0.0
    %4177 = vmatpush1.msra.mxu0 0.0
    %4178 = vmatprep.subr.mxu0 0.0
    %4179 = vmatpush1.msra.mxu0 0.0
    %4180 = vmatprep.subr.mxu0 0.0
    %4181 = vmatpush1.msra.mxu0 0.0
    %4182 = vmatprep.subr.mxu0 0.0
    %4183 = vmatpush1.msra.mxu0 0.0
    %4184 = vmatprep.subr.mxu0 0.0
    %4185 = vmatpush1.msra.mxu0 0.0
    %4186 = vmatprep.subr.mxu0 0.0
    %4187 = vmatpush1.msra.mxu0 0.0
    %4188 = vmatprep.subr.mxu0 0.0
    %4189 = vmatpush1.msra.mxu0 0.0
    %4190 = vmatprep.subr.mxu0 0.0
    %4191 = vmatpush1.msra.mxu0 0.0
    %4192 = vmatprep.subr.mxu0 0.0
    %4193 = vmatpush1.msra.mxu0 0.0
    %4194 = vmatprep.subr.mxu0 0.0
    %4195 = vmatpush1.msra.mxu0 0.0
    %4196 = vmatprep.subr.mxu0 0.0
    %4197 = vmatpush1.msra.mxu0 0.0
    %4198 = vmatprep.mubr.f32.mxu0 0.0
    %4199 = vmatmul.mubr.f32.gmra.mrb[0].mxu0 %v4133
    %v4200 = vpop.f32.mrb[0].mxu0
    %v4201 = vadd.f32 0.0, %v4200
    %v4202 = vpop.f32.mrb[0].mxu0
    %4203 = vdwg.mxu0
    %v4204 = vmul.f32 %v270, %v4201
    %v4205 = vadd.f32 %v4059, %v4204
    %4206 = vmatprep.subr.mxu0 0.0
    %4207 = vmatpush1.msra.mxu0 %v77
    %4208 = vmatprep.subr.mxu0 0.0
    %4209 = vmatpush1.msra.mxu0 %v78
    %4210 = vmatprep.subr.mxu0 0.0
    %4211 = vmatpush1.msra.mxu0 %v79
    %4212 = vmatprep.subr.mxu0 0.0
    %4213 = vmatpush1.msra.mxu0 %v80
    %4214 = vmatprep.subr.mxu0 0.0
    %4215 = vmatpush1.msra.mxu0 %v81
    %4216 = vmatprep.subr.mxu0 0.0
    %4217 = vmatpush1.msra.mxu0 %v82
    %4218 = vmatprep.subr.mxu0 0.0
    %4219 = vmatpush1.msra.mxu0 %v83
    %4220 = vmatprep.subr.mxu0 0.0
    %4221 = vmatpush1.msra.mxu0 %v84
    %4222 = vmatprep.subr.mxu0 0.0
    %4223 = vmatpush1.msra.mxu0 %v85
    %4224 = vmatprep.subr.mxu0 0.0
    %4225 = vmatpush1.msra.mxu0 %v86
    %4226 = vmatprep.subr.mxu0 0.0
    %4227 = vmatpush1.msra.mxu0 %v87
    %4228 = vmatprep.subr.mxu0 0.0
    %4229 = vmatpush1.msra.mxu0 %v88
    %4230 = vmatprep.subr.mxu0 0.0
    %4231 = vmatpush1.msra.mxu0 %v89
    %4232 = vmatprep.subr.mxu0 0.0
    %4233 = vmatpush1.msra.mxu0 %v90
    %4234 = vmatprep.subr.mxu0 0.0
    %4235 = vmatpush1.msra.mxu0 %v91
    %4236 = vmatprep.subr.mxu0 0.0
    %4237 = vmatpush1.msra.mxu0 %v92
    %4238 = vmatprep.subr.mxu0 0.0
    %4239 = vmatpush1.msra.mxu0 0.0
    %4240 = vmatprep.subr.mxu0 0.0
    %4241 = vmatpush1.msra.mxu0 0.0
    %4242 = vmatprep.subr.mxu0 0.0
    %4243 = vmatpush1.msra.mxu0 0.0
    %4244 = vmatprep.subr.mxu0 0.0
    %4245 = vmatpush1.msra.mxu0 0.0
    %4246 = vmatprep.subr.mxu0 0.0
    %4247 = vmatpush1.msra.mxu0 0.0
    %4248 = vmatprep.subr.mxu0 0.0
    %4249 = vmatpush1.msra.mxu0 0.0
    %4250 = vmatprep.subr.mxu0 0.0
    %4251 = vmatpush1.msra.mxu0 0.0
    %4252 = vmatprep.subr.mxu0 0.0
    %4253 = vmatpush1.msra.mxu0 0.0
    %4254 = vmatprep.subr.mxu0 0.0
    %4255 = vmatpush1.msra.mxu0 0.0
    %4256 = vmatprep.subr.mxu0 0.0
    %4257 = vmatpush1.msra.mxu0 0.0
    %4258 = vmatprep.subr.mxu0 0.0
    %4259 = vmatpush1.msra.mxu0 0.0
    %4260 = vmatprep.subr.mxu0 0.0
    %4261 = vmatpush1.msra.mxu0 0.0
    %4262 = vmatprep.subr.mxu0 0.0
    %4263 = vmatpush1.msra.mxu0 0.0
    %4264 = vmatprep.subr.mxu0 0.0
    %4265 = vmatpush1.msra.mxu0 0.0
    %4266 = vmatprep.subr.mxu0 0.0
    %4267 = vmatpush1.msra.mxu0 0.0
    %4268 = vmatprep.subr.mxu0 0.0
    %4269 = vmatpush1.msra.mxu0 0.0
    %4270 = vmatprep.mubr.f32.mxu0 0.0
    %4271 = vmatmul.mubr.f32.gmra.mrb[0].mxu0 %v4205
    %v4272 = vpop.f32.mrb[0].mxu0
    %v4273 = vadd.f32 0.0, %v4272
    %v4274 = vpop.f32.mrb[0].mxu0
    %4275 = vdwg.mxu0
    %v4276 = vtanh.pop %v4273
    %v4277 = vsel %vm127, 1.0, %v4276
    %4278 = vmatprep.subr.mxu0 0.0
    %4279 = vmatpush1.msra.mxu0 %v93
    %4280 = vmatprep.subr.mxu0 0.0
    %4281 = vmatpush1.msra.mxu0 %v94
    %4282 = vmatprep.subr.mxu0 0.0
    %4283 = vmatpush1.msra.mxu0 %v95
    %4284 = vmatprep.subr.mxu0 0.0
    %4285 = vmatpush1.msra.mxu0 %v96
    %4286 = vmatprep.subr.mxu0 0.0
    %4287 = vmatpush1.msra.mxu0 %v97
    %4288 = vmatprep.subr.mxu0 0.0
    %4289 = vmatpush1.msra.mxu0 %v98
    %4290 = vmatprep.subr.mxu0 0.0
    %4291 = vmatpush1.msra.mxu0 %v99
    %4292 = vmatprep.subr.mxu0 0.0
    %4293 = vmatpush1.msra.mxu0 %v100
    %4294 = vmatprep.subr.mxu0 0.0
    %4295 = vmatpush1.msra.mxu0 %v101
    %4296 = vmatprep.subr.mxu0 0.0
    %4297 = vmatpush1.msra.mxu0 %v102
    %4298 = vmatprep.subr.mxu0 0.0
    %4299 = vmatpush1.msra.mxu0 %v103
    %4300 = vmatprep.subr.mxu0 0.0
    %4301 = vmatpush1.msra.mxu0 %v104
    %4302 = vmatprep.subr.mxu0 0.0
    %4303 = vmatpush1.msra.mxu0 %v105
    %4304 = vmatprep.subr.mxu0 0.0
    %4305 = vmatpush1.msra.mxu0 %v106
    %4306 = vmatprep.subr.mxu0 0.0
    %4307 = vmatpush1.msra.mxu0 %v107
    %4308 = vmatprep.subr.mxu0 0.0
    %4309 = vmatpush1.msra.mxu0 %v108
    %4310 = vmatprep.subr.mxu0 0.0
    %4311 = vmatpush1.msra.mxu0 0.0
    %4312 = vmatprep.subr.mxu0 0.0
    %4313 = vmatpush1.msra.mxu0 0.0
    %4314 = vmatprep.subr.mxu0 0.0
    %4315 = vmatpush1.msra.mxu0 0.0
    %4316 = vmatprep.subr.mxu0 0.0
    %4317 = vmatpush1.msra.mxu0 0.0
    %4318 = vmatprep.subr.mxu0 0.0
    %4319 = vmatpush1.msra.mxu0 0.0
    %4320 = vmatprep.subr.mxu0 0.0
    %4321 = vmatpush1.msra.mxu0 0.0
    %4322 = vmatprep.subr.mxu0 0.0
    %4323 = vmatpush1.msra.mxu0 0.0
    %4324 = vmatprep.subr.mxu0 0.0
    %4325 = vmatpush1.msra.mxu0 0.0
    %4326 = vmatprep.subr.mxu0 0.0
    %4327 = vmatpush1.msra.mxu0 0.0
    %4328 = vmatprep.subr.mxu0 0.0
    %4329 = vmatpush1.msra.mxu0 0.0
    %4330 = vmatprep.subr.mxu0 0.0
    %4331 = vmatpush1.msra.mxu0 0.0
    %4332 = vmatprep.subr.mxu0 0.0
    %4333 = vmatpush1.msra.mxu0 0.0
    %4334 = vmatprep.subr.mxu0 0.0
    %4335 = vmatpush1.msra.mxu0 0.0
    %4336 = vmatprep.subr.mxu0 0.0
    %4337 = vmatpush1.msra.mxu0 0.0
    %4338 = vmatprep.subr.mxu0 0.0
    %4339 = vmatpush1.msra.mxu0 0.0
    %4340 = vmatprep.subr.mxu0 0.0
    %4341 = vmatpush1.msra.mxu0 0.0
    %4342 = vmatprep.mubr.f32.mxu0 0.0
    %4343 = vmatmul.mubr.f32.gmra.mrb[0].mxu0 %v4277
    %v4344 = vpop.f32.mrb[0].mxu0
    %v4345 = vadd.f32 0.0, %v4344
    %v4346 = vpop.f32.mrb[0].mxu0
    %4347 = vdwg.mxu0
    %v4348 = vmul.f32 %v270, %v4345
    %v4349 = vadd.f32 %v4205, %v4348
    %v4350 = vmul.f32 %v273, %v4345
    %v4351 = vadd.f32 %v4205, %v4350
    %4352 = vmatprep.subr.mxu0 0.0
    %4353 = vmatpush1.msra.mxu0 %v77
    %4354 = vmatprep.subr.mxu0 0.0
    %4355 = vmatpush1.msra.mxu0 %v78
    %4356 = vmatprep.subr.mxu0 0.0
    %4357 = vmatpush1.msra.mxu0 %v79
    %4358 = vmatprep.subr.mxu0 0.0
    %4359 = vmatpush1.msra.mxu0 %v80
    %4360 = vmatprep.subr.mxu0 0.0
    %4361 = vmatpush1.msra.mxu0 %v81
    %4362 = vmatprep.subr.mxu0 0.0
    %4363 = vmatpush1.msra.mxu0 %v82
    %4364 = vmatprep.subr.mxu0 0.0
    %4365 = vmatpush1.msra.mxu0 %v83
    %4366 = vmatprep.subr.mxu0 0.0
    %4367 = vmatpush1.msra.mxu0 %v84
    %4368 = vmatprep.subr.mxu0 0.0
    %4369 = vmatpush1.msra.mxu0 %v85
    %4370 = vmatprep.subr.mxu0 0.0
    %4371 = vmatpush1.msra.mxu0 %v86
    %4372 = vmatprep.subr.mxu0 0.0
    %4373 = vmatpush1.msra.mxu0 %v87
    %4374 = vmatprep.subr.mxu0 0.0
    %4375 = vmatpush1.msra.mxu0 %v88
    %4376 = vmatprep.subr.mxu0 0.0
    %4377 = vmatpush1.msra.mxu0 %v89
    %4378 = vmatprep.subr.mxu0 0.0
    %4379 = vmatpush1.msra.mxu0 %v90
    %4380 = vmatprep.subr.mxu0 0.0
    %4381 = vmatpush1.msra.mxu0 %v91
    %4382 = vmatprep.subr.mxu0 0.0
    %4383 = vmatpush1.msra.mxu0 %v92
    %4384 = vmatprep.subr.mxu0 0.0
    %4385 = vmatpush1.msra.mxu0 0.0
    %4386 = vmatprep.subr.mxu0 0.0
    %4387 = vmatpush1.msra.mxu0 0.0
    %4388 = vmatprep.subr.mxu0 0.0
    %4389 = vmatpush1.msra.mxu0 0.0
    %4390 = vmatprep.subr.mxu0 0.0
    %4391 = vmatpush1.msra.mxu0 0.0
    %4392 = vmatprep.subr.mxu0 0.0
    %4393 = vmatpush1.msra.mxu0 0.0
    %4394 = vmatprep.subr.mxu0 0.0
    %4395 = vmatpush1.msra.mxu0 0.0
    %4396 = vmatprep.subr.mxu0 0.0
    %4397 = vmatpush1.msra.mxu0 0.0
    %4398 = vmatprep.subr.mxu0 0.0
    %4399 = vmatpush1.msra.mxu0 0.0
    %4400 = vmatprep.subr.mxu0 0.0
    %4401 = vmatpush1.msra.mxu0 0.0
    %4402 = vmatprep.subr.mxu0 0.0
    %4403 = vmatpush1.msra.mxu0 0.0
    %4404 = vmatprep.subr.mxu0 0.0
    %4405 = vmatpush1.msra.mxu0 0.0
    %4406 = vmatprep.subr.mxu0 0.0
    %4407 = vmatpush1.msra.mxu0 0.0
    %4408 = vmatprep.subr.mxu0 0.0
    %4409 = vmatpush1.msra.mxu0 0.0
    %4410 = vmatprep.subr.mxu0 0.0
    %4411 = vmatpush1.msra.mxu0 0.0
    %4412 = vmatprep.subr.mxu0 0.0
    %4413 = vmatpush1.msra.mxu0 0.0
    %4414 = vmatprep.subr.mxu0 0.0
    %4415 = vmatpush1.msra.mxu0 0.0
    %4416 = vmatprep.mubr.f32.mxu0 0.0
    %4417 = vmatmul.mubr.f32.gmra.mrb[0].mxu0 %v4351
    %v4418 = vpop.f32.mrb[0].mxu0
    %v4419 = vadd.f32 0.0, %v4418
    %v4420 = vpop.f32.mrb[0].mxu0
    %4421 = vdwg.mxu0
    %v4422 = vtanh.pop %v4419
    %v4423 = vsel %vm127, 1.0, %v4422
    %4424 = vmatprep.subr.mxu0 0.0
    %4425 = vmatpush1.msra.mxu0 %v93
    %4426 = vmatprep.subr.mxu0 0.0
    %4427 = vmatpush1.msra.mxu0 %v94
    %4428 = vmatprep.subr.mxu0 0.0
    %4429 = vmatpush1.msra.mxu0 %v95
    %4430 = vmatprep.subr.mxu0 0.0
    %4431 = vmatpush1.msra.mxu0 %v96
    %4432 = vmatprep.subr.mxu0 0.0
    %4433 = vmatpush1.msra.mxu0 %v97
    %4434 = vmatprep.subr.mxu0 0.0
    %4435 = vmatpush1.msra.mxu0 %v98
    %4436 = vmatprep.subr.mxu0 0.0
    %4437 = vmatpush1.msra.mxu0 %v99
    %4438 = vmatprep.subr.mxu0 0.0
    %4439 = vmatpush1.msra.mxu0 %v100
    %4440 = vmatprep.subr.mxu0 0.0
    %4441 = vmatpush1.msra.mxu0 %v101
    %4442 = vmatprep.subr.mxu0 0.0
    %4443 = vmatpush1.msra.mxu0 %v102
    %4444 = vmatprep.subr.mxu0 0.0
    %4445 = vmatpush1.msra.mxu0 %v103
    %4446 = vmatprep.subr.mxu0 0.0
    %4447 = vmatpush1.msra.mxu0 %v104
    %4448 = vmatprep.subr.mxu0 0.0
    %4449 = vmatpush1.msra.mxu0 %v105
    %4450 = vmatprep.subr.mxu0 0.0
    %4451 = vmatpush1.msra.mxu0 %v106
    %4452 = vmatprep.subr.mxu0 0.0
    %4453 = vmatpush1.msra.mxu0 %v107
    %4454 = vmatprep.subr.mxu0 0.0
    %4455 = vmatpush1.msra.mxu0 %v108
    %4456 = vmatprep.subr.mxu0 0.0
    %4457 = vmatpush1.msra.mxu0 0.0
    %4458 = vmatprep.subr.mxu0 0.0
    %4459 = vmatpush1.msra.mxu0 0.0
    %4460 = vmatprep.subr.mxu0 0.0
    %4461 = vmatpush1.msra.mxu0 0.0
    %4462 = vmatprep.subr.mxu0 0.0
    %4463 = vmatpush1.msra.mxu0 0.0
    %4464 = vmatprep.subr.mxu0 0.0
    %4465 = vmatpush1.msra.mxu0 0.0
    %4466 = vmatprep.subr.mxu0 0.0
    %4467 = vmatpush1.msra.mxu0 0.0
    %4468 = vmatprep.subr.mxu0 0.0
    %4469 = vmatpush1.msra.mxu0 0.0
    %4470 = vmatprep.subr.mxu0 0.0
    %4471 = vmatpush1.msra.mxu0 0.0
    %4472 = vmatprep.subr.mxu0 0.0
    %4473 = vmatpush1.msra.mxu0 0.0
    %4474 = vmatprep.subr.mxu0 0.0
    %4475 = vmatpush1.msra.mxu0 0.0
    %4476 = vmatprep.subr.mxu0 0.0
    %4477 = vmatpush1.msra.mxu0 0.0
    %4478 = vmatprep.subr.mxu0 0.0
    %4479 = vmatpush1.msra.mxu0 0.0
    %4480 = vmatprep.subr.mxu0 0.0
    %4481 = vmatpush1.msra.mxu0 0.0
    %4482 = vmatprep.subr.mxu0 0.0
    %4483 = vmatpush1.msra.mxu0 0.0
    %4484 = vmatprep.subr.mxu0 0.0
    %4485 = vmatpush1.msra.mxu0 0.0
    %4486 = vmatprep.subr.mxu0 0.0
    %4487 = vmatpush1.msra.mxu0 0.0
    %4488 = vmatprep.mubr.f32.mxu0 0.0
    %4489 = vmatmul.mubr.f32.gmra.mrb[0].mxu0 %v4423
    %v4490 = vpop.f32.mrb[0].mxu0
    %v4491 = vadd.f32 0.0, %v4490
    %v4492 = vpop.f32.mrb[0].mxu0
    %4493 = vdwg.mxu0
    %v4494 = vmul.f32 %v418, %v4491
    %v4495 = vadd.f32 %v4349, %v4494
    %v4496 = vmul.f32 %v273, %v4491
    %v4497 = vadd.f32 %v4205, %v4496
    %4498 = vmatprep.subr.mxu0 0.0
    %4499 = vmatpush1.msra.mxu0 %v77
    %4500 = vmatprep.subr.mxu0 0.0
    %4501 = vmatpush1.msra.mxu0 %v78
    %4502 = vmatprep.subr.mxu0 0.0
    %4503 = vmatpush1.msra.mxu0 %v79
    %4504 = vmatprep.subr.mxu0 0.0
    %4505 = vmatpush1.msra.mxu0 %v80
    %4506 = vmatprep.subr.mxu0 0.0
    %4507 = vmatpush1.msra.mxu0 %v81
    %4508 = vmatprep.subr.mxu0 0.0
    %4509 = vmatpush1.msra.mxu0 %v82
    %4510 = vmatprep.subr.mxu0 0.0
    %4511 = vmatpush1.msra.mxu0 %v83
    %4512 = vmatprep.subr.mxu0 0.0
    %4513 = vmatpush1.msra.mxu0 %v84
    %4514 = vmatprep.subr.mxu0 0.0
    %4515 = vmatpush1.msra.mxu0 %v85
    %4516 = vmatprep.subr.mxu0 0.0
    %4517 = vmatpush1.msra.mxu0 %v86
    %4518 = vmatprep.subr.mxu0 0.0
    %4519 = vmatpush1.msra.mxu0 %v87
    %4520 = vmatprep.subr.mxu0 0.0
    %4521 = vmatpush1.msra.mxu0 %v88
    %4522 = vmatprep.subr.mxu0 0.0
    %4523 = vmatpush1.msra.mxu0 %v89
    %4524 = vmatprep.subr.mxu0 0.0
    %4525 = vmatpush1.msra.mxu0 %v90
    %4526 = vmatprep.subr.mxu0 0.0
    %4527 = vmatpush1.msra.mxu0 %v91
    %4528 = vmatprep.subr.mxu0 0.0
    %4529 = vmatpush1.msra.mxu0 %v92
    %4530 = vmatprep.subr.mxu0 0.0
    %4531 = vmatpush1.msra.mxu0 0.0
    %4532 = vmatprep.subr.mxu0 0.0
    %4533 = vmatpush1.msra.mxu0 0.0
    %4534 = vmatprep.subr.mxu0 0.0
    %4535 = vmatpush1.msra.mxu0 0.0
    %4536 = vmatprep.subr.mxu0 0.0
    %4537 = vmatpush1.msra.mxu0 0.0
    %4538 = vmatprep.subr.mxu0 0.0
    %4539 = vmatpush1.msra.mxu0 0.0
    %4540 = vmatprep.subr.mxu0 0.0
    %4541 = vmatpush1.msra.mxu0 0.0
    %4542 = vmatprep.subr.mxu0 0.0
    %4543 = vmatpush1.msra.mxu0 0.0
    %4544 = vmatprep.subr.mxu0 0.0
    %4545 = vmatpush1.msra.mxu0 0.0
    %4546 = vmatprep.subr.mxu0 0.0
    %4547 = vmatpush1.msra.mxu0 0.0
    %4548 = vmatprep.subr.mxu0 0.0
    %4549 = vmatpush1.msra.mxu0 0.0
    %4550 = vmatprep.subr.mxu0 0.0
    %4551 = vmatpush1.msra.mxu0 0.0
    %4552 = vmatprep.subr.mxu0 0.0
    %4553 = vmatpush1.msra.mxu0 0.0
    %4554 = vmatprep.subr.mxu0 0.0
    %4555 = vmatpush1.msra.mxu0 0.0
    %4556 = vmatprep.subr.mxu0 0.0
    %4557 = vmatpush1.msra.mxu0 0.0
    %4558 = vmatprep.subr.mxu0 0.0
    %4559 = vmatpush1.msra.mxu0 0.0
    %4560 = vmatprep.subr.mxu0 0.0
    %4561 = vmatpush1.msra.mxu0 0.0
    %4562 = vmatprep.mubr.f32.mxu0 0.0
    %4563 = vmatmul.mubr.f32.gmra.mrb[0].mxu0 %v4497
    %v4564 = vpop.f32.mrb[0].mxu0
    %v4565 = vadd.f32 0.0, %v4564
    %v4566 = vpop.f32.mrb[0].mxu0
    %4567 = vdwg.mxu0
    %v4568 = vtanh.pop %v4565
    %v4569 = vsel %vm127, 1.0, %v4568
    %4570 = vmatprep.subr.mxu0 0.0
    %4571 = vmatpush1.msra.mxu0 %v93
    %4572 = vmatprep.subr.mxu0 0.0
    %4573 = vmatpush1.msra.mxu0 %v94
    %4574 = vmatprep.subr.mxu0 0.0
    %4575 = vmatpush1.msra.mxu0 %v95
    %4576 = vmatprep.subr.mxu0 0.0
    %4577 = vmatpush1.msra.mxu0 %v96
    %4578 = vmatprep.subr.mxu0 0.0
    %4579 = vmatpush1.msra.mxu0 %v97
    %4580 = vmatprep.subr.mxu0 0.0
    %4581 = vmatpush1.msra.mxu0 %v98
    %4582 = vmatprep.subr.mxu0 0.0
    %4583 = vmatpush1.msra.mxu0 %v99
    %4584 = vmatprep.subr.mxu0 0.0
    %4585 = vmatpush1.msra.mxu0 %v100
    %4586 = vmatprep.subr.mxu0 0.0
    %4587 = vmatpush1.msra.mxu0 %v101
    %4588 = vmatprep.subr.mxu0 0.0
    %4589 = vmatpush1.msra.mxu0 %v102
    %4590 = vmatprep.subr.mxu0 0.0
    %4591 = vmatpush1.msra.mxu0 %v103
    %4592 = vmatprep.subr.mxu0 0.0
    %4593 = vmatpush1.msra.mxu0 %v104
    %4594 = vmatprep.subr.mxu0 0.0
    %4595 = vmatpush1.msra.mxu0 %v105
    %4596 = vmatprep.subr.mxu0 0.0
    %4597 = vmatpush1.msra.mxu0 %v106
    %4598 = vmatprep.subr.mxu0 0.0
    %4599 = vmatpush1.msra.mxu0 %v107
    %4600 = vmatprep.subr.mxu0 0.0
    %4601 = vmatpush1.msra.mxu0 %v108
    %4602 = vmatprep.subr.mxu0 0.0
    %4603 = vmatpush1.msra.mxu0 0.0
    %4604 = vmatprep.subr.mxu0 0.0
    %4605 = vmatpush1.msra.mxu0 0.0
    %4606 = vmatprep.subr.mxu0 0.0
    %4607 = vmatpush1.msra.mxu0 0.0
    %4608 = vmatprep.subr.mxu0 0.0
    %4609 = vmatpush1.msra.mxu0 0.0
    %4610 = vmatprep.subr.mxu0 0.0
    %4611 = vmatpush1.msra.mxu0 0.0
    %4612 = vmatprep.subr.mxu0 0.0
    %4613 = vmatpush1.msra.mxu0 0.0
    %4614 = vmatprep.subr.mxu0 0.0
    %4615 = vmatpush1.msra.mxu0 0.0
    %4616 = vmatprep.subr.mxu0 0.0
    %4617 = vmatpush1.msra.mxu0 0.0
    %4618 = vmatprep.subr.mxu0 0.0
    %4619 = vmatpush1.msra.mxu0 0.0
    %4620 = vmatprep.subr.mxu0 0.0
    %4621 = vmatpush1.msra.mxu0 0.0
    %4622 = vmatprep.subr.mxu0 0.0
    %4623 = vmatpush1.msra.mxu0 0.0
    %4624 = vmatprep.subr.mxu0 0.0
    %4625 = vmatpush1.msra.mxu0 0.0
    %4626 = vmatprep.subr.mxu0 0.0
    %4627 = vmatpush1.msra.mxu0 0.0
    %4628 = vmatprep.subr.mxu0 0.0
    %4629 = vmatpush1.msra.mxu0 0.0
    %4630 = vmatprep.subr.mxu0 0.0
    %4631 = vmatpush1.msra.mxu0 0.0
    %4632 = vmatprep.subr.mxu0 0.0
    %4633 = vmatpush1.msra.mxu0 0.0
    %4634 = vmatprep.mubr.f32.mxu0 0.0
    %4635 = vmatmul.mubr.f32.gmra.mrb[0].mxu0 %v4569
    %v4636 = vpop.f32.mrb[0].mxu0
    %v4637 = vadd.f32 0.0, %v4636
    %v4638 = vpop.f32.mrb[0].mxu0
    %4639 = vdwg.mxu0
    %v4640 = vmul.f32 %v418, %v4637
    %v4641 = vadd.f32 %v4495, %v4640
    %v4642 = vmul.f32 %v567, %v4637
    %v4643 = vadd.f32 %v4205, %v4642
    %4644 = vmatprep.subr.mxu0 0.0
    %4645 = vmatpush1.msra.mxu0 %v77
    %4646 = vmatprep.subr.mxu0 0.0
    %4647 = vmatpush1.msra.mxu0 %v78
    %4648 = vmatprep.subr.mxu0 0.0
    %4649 = vmatpush1.msra.mxu0 %v79
    %4650 = vmatprep.subr.mxu0 0.0
    %4651 = vmatpush1.msra.mxu0 %v80
    %4652 = vmatprep.subr.mxu0 0.0
    %4653 = vmatpush1.msra.mxu0 %v81
    %4654 = vmatprep.subr.mxu0 0.0
    %4655 = vmatpush1.msra.mxu0 %v82
    %4656 = vmatprep.subr.mxu0 0.0
    %4657 = vmatpush1.msra.mxu0 %v83
    %4658 = vmatprep.subr.mxu0 0.0
    %4659 = vmatpush1.msra.mxu0 %v84
    %4660 = vmatprep.subr.mxu0 0.0
    %4661 = vmatpush1.msra.mxu0 %v85
    %4662 = vmatprep.subr.mxu0 0.0
    %4663 = vmatpush1.msra.mxu0 %v86
    %4664 = vmatprep.subr.mxu0 0.0
    %4665 = vmatpush1.msra.mxu0 %v87
    %4666 = vmatprep.subr.mxu0 0.0
    %4667 = vmatpush1.msra.mxu0 %v88
    %4668 = vmatprep.subr.mxu0 0.0
    %4669 = vmatpush1.msra.mxu0 %v89
    %4670 = vmatprep.subr.mxu0 0.0
    %4671 = vmatpush1.msra.mxu0 %v90
    %4672 = vmatprep.subr.mxu0 0.0
    %4673 = vmatpush1.msra.mxu0 %v91
    %4674 = vmatprep.subr.mxu0 0.0
    %4675 = vmatpush1.msra.mxu0 %v92
    %4676 = vmatprep.subr.mxu0 0.0
    %4677 = vmatpush1.msra.mxu0 0.0
    %4678 = vmatprep.subr.mxu0 0.0
    %4679 = vmatpush1.msra.mxu0 0.0
    %4680 = vmatprep.subr.mxu0 0.0
    %4681 = vmatpush1.msra.mxu0 0.0
    %4682 = vmatprep.subr.mxu0 0.0
    %4683 = vmatpush1.msra.mxu0 0.0
    %4684 = vmatprep.subr.mxu0 0.0
    %4685 = vmatpush1.msra.mxu0 0.0
    %4686 = vmatprep.subr.mxu0 0.0
    %4687 = vmatpush1.msra.mxu0 0.0
    %4688 = vmatprep.subr.mxu0 0.0
    %4689 = vmatpush1.msra.mxu0 0.0
    %4690 = vmatprep.subr.mxu0 0.0
    %4691 = vmatpush1.msra.mxu0 0.0
    %4692 = vmatprep.subr.mxu0 0.0
    %4693 = vmatpush1.msra.mxu0 0.0
    %4694 = vmatprep.subr.mxu0 0.0
    %4695 = vmatpush1.msra.mxu0 0.0
    %4696 = vmatprep.subr.mxu0 0.0
    %4697 = vmatpush1.msra.mxu0 0.0
    %4698 = vmatprep.subr.mxu0 0.0
    %4699 = vmatpush1.msra.mxu0 0.0
    %4700 = vmatprep.subr.mxu0 0.0
    %4701 = vmatpush1.msra.mxu0 0.0
    %4702 = vmatprep.subr.mxu0 0.0
    %4703 = vmatpush1.msra.mxu0 0.0
    %4704 = vmatprep.subr.mxu0 0.0
    %4705 = vmatpush1.msra.mxu0 0.0
    %4706 = vmatprep.subr.mxu0 0.0
    %4707 = vmatpush1.msra.mxu0 0.0
    %4708 = vmatprep.mubr.f32.mxu0 0.0
    %4709 = vmatmul.mubr.f32.gmra.mrb[0].mxu0 %v4643
    %v4710 = vpop.f32.mrb[0].mxu0
    %v4711 = vadd.f32 0.0, %v4710
    %v4712 = vpop.f32.mrb[0].mxu0
    %4713 = vdwg.mxu0
    %v4714 = vtanh.pop %v4711
    %v4715 = vsel %vm127, 1.0, %v4714
    %4716 = vmatprep.subr.mxu0 0.0
    %4717 = vmatpush1.msra.mxu0 %v93
    %4718 = vmatprep.subr.mxu0 0.0
    %4719 = vmatpush1.msra.mxu0 %v94
    %4720 = vmatprep.subr.mxu0 0.0
    %4721 = vmatpush1.msra.mxu0 %v95
    %4722 = vmatprep.subr.mxu0 0.0
    %4723 = vmatpush1.msra.mxu0 %v96
    %4724 = vmatprep.subr.mxu0 0.0
    %4725 = vmatpush1.msra.mxu0 %v97
    %4726 = vmatprep.subr.mxu0 0.0
    %4727 = vmatpush1.msra.mxu0 %v98
    %4728 = vmatprep.subr.mxu0 0.0
    %4729 = vmatpush1.msra.mxu0 %v99
    %4730 = vmatprep.subr.mxu0 0.0
    %4731 = vmatpush1.msra.mxu0 %v100
    %4732 = vmatprep.subr.mxu0 0.0
    %4733 = vmatpush1.msra.mxu0 %v101
    %4734 = vmatprep.subr.mxu0 0.0
    %4735 = vmatpush1.msra.mxu0 %v102
    %4736 = vmatprep.subr.mxu0 0.0
    %4737 = vmatpush1.msra.mxu0 %v103
    %4738 = vmatprep.subr.mxu0 0.0
    %4739 = vmatpush1.msra.mxu0 %v104
    %4740 = vmatprep.subr.mxu0 0.0
    %4741 = vmatpush1.msra.mxu0 %v105
    %4742 = vmatprep.subr.mxu0 0.0
    %4743 = vmatpush1.msra.mxu0 %v106
    %4744 = vmatprep.subr.mxu0 0.0
    %4745 = vmatpush1.msra.mxu0 %v107
    %4746 = vmatprep.subr.mxu0 0.0
    %4747 = vmatpush1.msra.mxu0 %v108
    %4748 = vmatprep.subr.mxu0 0.0
    %4749 = vmatpush1.msra.mxu0 0.0
    %4750 = vmatprep.subr.mxu0 0.0
    %4751 = vmatpush1.msra.mxu0 0.0
    %4752 = vmatprep.subr.mxu0 0.0
    %4753 = vmatpush1.msra.mxu0 0.0
    %4754 = vmatprep.subr.mxu0 0.0
    %4755 = vmatpush1.msra.mxu0 0.0
    %4756 = vmatprep.subr.mxu0 0.0
    %4757 = vmatpush1.msra.mxu0 0.0
    %4758 = vmatprep.subr.mxu0 0.0
    %4759 = vmatpush1.msra.mxu0 0.0
    %4760 = vmatprep.subr.mxu0 0.0
    %4761 = vmatpush1.msra.mxu0 0.0
    %4762 = vmatprep.subr.mxu0 0.0
    %4763 = vmatpush1.msra.mxu0 0.0
    %4764 = vmatprep.subr.mxu0 0.0
    %4765 = vmatpush1.msra.mxu0 0.0
    %4766 = vmatprep.subr.mxu0 0.0
    %4767 = vmatpush1.msra.mxu0 0.0
    %4768 = vmatprep.subr.mxu0 0.0
    %4769 = vmatpush1.msra.mxu0 0.0
    %4770 = vmatprep.subr.mxu0 0.0
    %4771 = vmatpush1.msra.mxu0 0.0
    %4772 = vmatprep.subr.mxu0 0.0
    %4773 = vmatpush1.msra.mxu0 0.0
    %4774 = vmatprep.subr.mxu0 0.0
    %4775 = vmatpush1.msra.mxu0 0.0
    %4776 = vmatprep.subr.mxu0 0.0
    %4777 = vmatpush1.msra.mxu0 0.0
    %4778 = vmatprep.subr.mxu0 0.0
    %4779 = vmatpush1.msra.mxu0 0.0
    %4780 = vmatprep.mubr.f32.mxu0 0.0
    %4781 = vmatmul.mubr.f32.gmra.mrb[0].mxu0 %v4715
    %v4782 = vpop.f32.mrb[0].mxu0
    %v4783 = vadd.f32 0.0, %v4782
    %v4784 = vpop.f32.mrb[0].mxu0
    %4785 = vdwg.mxu0
    %v4786 = vmul.f32 %v270, %v4783
    %v4787 = vadd.f32 %v4641, %v4786
    %s4788 = ssub.f32 1.0, %s111
    %v4789 = vstv %s4788
    %v4790 = vmul.f32 %v4789, %v76
    %v4791 = vstv %s111
    %v4792 = vmul.f32 %v4791, %v4787
    %v4793 = vadd.f32 %v4790, %v4792
    %4794 = vst [vmem:[#allocation10] sm:$0xff] %v4793
    // Predicated region
    $region42: #{tpu_custom_call.1} parent=1 // pred_check
      _
    $region43: #{tpu_custom_call.1} parent=1 // pred_check_branch
      %4796 = sbr.rel (0) target = $region45
    $region44: #{tpu_custom_call.1} parent=1 // pred_region
      %s4798 = ssub.s32 128, 128
      %4799 = vsyncadd [#allocation4], %s4798
      %s4801 = sshll.u32 [#allocation10], 4
      %s4802 = int_to_ptr.vmem [resolvable:$true] %s4801
      %4804 = dma.vmem_to_hbm [thread:$0]  %s4802, 128, %s6, [#allocation4]
    $region45: #{tpu_custom_call.1} parent=1 // pred_fallthru
      _
    // Predicated region
    $region46: #{tpu_custom_call.1} parent=1 // pred_check
      _
    $region47: #{tpu_custom_call.1} parent=1 // pred_check_branch
      %4806 = sbr.rel (0) target = $region49
    $region48: #{tpu_custom_call.1} parent=1 // pred_region
      %4807 = dma.done [#allocation4], 128
    $region49: #{tpu_custom_call.1} parent=1 // pred_fallthru
      _
    %4808 = vsyncpa [#allocation3], 1
    %4809 = vsyncpa [#allocation8], 1
    %4810 = vsyncpa [#allocation4], 1
    %4811 = vsyncpa [#allocation5], 1

</llo_original>
